<compile_context>
chip_gen: v7x
topology: tpu7x:2x2x1
jax: 0.10.0
libtpu: 0.0.40
codegen_flags: <defaults>
</compile_context>

<pallas_src>
import jax
import jax.numpy as jnp
from jax.experimental import pallas as pl
from jax.experimental.pallas import tpu as pltpu


# ------------------------------ model constants -----------------------------

C_IN, H, W = 3, 16, 16
HW = H * W                        # 256 -> lane dimension
CIN_PAD = 16                      # pad input channels to a full bf16 sublane tile
C_AGENT, C_RNET = 16, 16
C_STEM = C_AGENT + C_RNET         # stacked stem conv rows (agent + rnet) = 32
NUM_BLOCKS, NUM_CLASSES = 4, 10

_TAPS = [(dy, dx) for dy in (-1, 0, 1) for dx in (-1, 0, 1)]
N_TAPS = len(_TAPS)               # 9
PATCH_ROWS = N_TAPS * C_RNET      # 144; CIN_PAD == C_RNET so one scratch fits all convs


# ----------------------------- fused kernel body -----------------------------

def _policy_net_kernel(x_ref, mask_ref, stem_w_ref, stem_b_ref,
                       afc_w_ref, afc_b_ref,
                       w1_ref, b1_ref, w2_ref, b2_ref,
                       rfc_w_ref, rfc_b_ref,
                       preds_ref, probs_ref,
                       patch_ref):                       # VMEM (144,256) bf16 scratch
    C = C_RNET
    inv_hw = 1.0 / HW

    def build_patches(act):
        # act: (16, 256) f32 lane-dense activation.  Stream the 9 shifted/masked
        # taps into the persistent bf16 patch scratch (one slab live at a time).
        for t, (dy, dx) in enumerate(_TAPS):
            off = dy * W + dx
            if off == 0:
                slab = act                                            # center tap: mask == 1
            else:
                shifted = pltpu.roll(act, shift=(-off) % HW, axis=1)  # [p] <- act[p+off]
                slab = shifted * mask_ref[t * C:(t + 1) * C, :]       # pre-broadcast 0/1 mask
            patch_ref[t * C:(t + 1) * C, :] = slab.astype(jnp.bfloat16)

    def conv(w_t, b, relu):
        out = jnp.dot(w_t, patch_ref[...], preferred_element_type=jnp.float32) + b
        return jnp.maximum(out, 0.0) if relu else out

    # --- shared stem: one patch build, one stacked (32,144)x(144,256) matmul ---
    build_patches(x_ref[...])
    stem = conv(stem_w_ref[...], stem_b_ref[...], relu=True)          # (32, 256) f32
    feat_a = stem[:C_AGENT, :]                                        # agent features
    h = stem[C_AGENT:, :]                                             # rnet stem features

    # --- agent head: GAP folded into FC (lane-dense matmul + lane sum), sigmoid ---
    gates = []
    for k in range(NUM_BLOCKS):
        al_k = jnp.dot(afc_w_ref[k], feat_a,
                       preferred_element_type=jnp.float32)            # (1, 256)
        logit_k = (jnp.sum(al_k, axis=1, keepdims=True) * inv_hw
                   + afc_b_ref[k])                                     # (1, 1)
        prob_k = jax.nn.sigmoid(logit_k)                               # (1, 1)
        probs_ref[k] = prob_k
        # Exact {0,1} gate; consistent with the wrapper-side thresholding.
        gates.append(jnp.where(prob_k >= 0.5, 1.0, 0.0))

    # --- gated residual blocks (gate-multiply is exact: gate in {0,1}, h >= 0) ---
    for k in range(NUM_BLOCKS):
        build_patches(h)
        f1 = conv(w1_ref[k], b1_ref[k], relu=True)
        build_patches(f1)
        f2 = conv(w2_ref[k], b2_ref[k], relu=False)
        h = jnp.maximum(h + gates[k] * f2, 0.0)

    # --- rnet head: GAP folded into FC ---
    rl = jnp.dot(rfc_w_ref[...], h, preferred_element_type=jnp.float32)  # (NC, 256)
    preds_ref[...] = (jnp.sum(rl, axis=1, keepdims=True) * inv_hw
                      + rfc_b_ref[...])                                  # (NC, 1)


# ------------------------------- kernel wrapper -------------------------------

def _full_spec(shape):
    zeros = (0,) * len(shape)
    return pl.BlockSpec(shape, lambda i, zeros=zeros: zeros)


def policy_net_fused(x_pad, p):
    return pl.pallas_call(
        _policy_net_kernel,
        out_shape=(jax.ShapeDtypeStruct((NUM_CLASSES, 1), jnp.float32),      # preds
                   jax.ShapeDtypeStruct((NUM_BLOCKS, 1, 1), jnp.float32)),   # probs
        grid=(1,),
        in_specs=[_full_spec((CIN_PAD, HW)),
                  _full_spec((PATCH_ROWS, HW)),
                  _full_spec((C_STEM, N_TAPS * CIN_PAD)),
                  _full_spec((C_STEM, 1)),
                  _full_spec((NUM_BLOCKS, 1, C_AGENT)),
                  _full_spec((NUM_BLOCKS, 1, 1)),
                  _full_spec((NUM_BLOCKS, C_RNET, N_TAPS * C_RNET)),
                  _full_spec((NUM_BLOCKS, C_RNET, 1)),
                  _full_spec((NUM_BLOCKS, C_RNET, N_TAPS * C_RNET)),
                  _full_spec((NUM_BLOCKS, C_RNET, 1)),
                  _full_spec((NUM_CLASSES, C_RNET)),
                  _full_spec((NUM_CLASSES, 1))],
        out_specs=(_full_spec((NUM_CLASSES, 1)),
                   _full_spec((NUM_BLOCKS, 1, 1))),
        scratch_shapes=[pltpu.VMEM((PATCH_ROWS, HW), jnp.bfloat16)],
        compiler_params=pltpu.CompilerParams(dimension_semantics=("arbitrary",)),
    )(x_pad, p['tap_mask'], p['stem_wt'], p['stem_b'],
      p['agent_fc_wt'], p['agent_fc_b'],
      p['blk_w1t'], p['blk_b1'], p['blk_w2t'], p['blk_b2'],
      p['rnet_fc_wt'], p['rnet_fc_b'])


# --------------------------------- parameters ---------------------------------

def fold_norm_into_conv(w_hwio, bias, mean, std):
    """Replicates modify_net on the first conv of a sub-net:
       w[:, i, :, :] /= std[i];  bias[o] -= sum_j mean[j] * w[o, j, :, :].sum()"""
    w = w_hwio / std[None, None, :, None]                      # (3,3,Cin,Cout)
    bias = bias - jnp.einsum('hwio,i->o', w, mean)
    return w, bias


def conv_w_to_lane_dense(w_hwio, cin_pad=None):
    """(3,3,Cin,Cout) HWIO -> (Cout, 9*Cin_pad), row order = tap-major, Cin-minor."""
    kh, kw, cin, cout = w_hwio.shape
    if cin_pad is not None and cin_pad > cin:
        w_hwio = jnp.pad(w_hwio, ((0, 0), (0, 0), (0, cin_pad - cin), (0, 0)))
        cin = cin_pad
    return jnp.transpose(w_hwio.reshape(kh * kw * cin, cout))


def make_tap_masks(c):
    """(9*c, HW) f32 0/1 masks, pre-broadcast to c rows per tap (constant-folded)."""
    pos = jnp.arange(HW, dtype=jnp.int32)
    yy, xx = pos // W, pos % W
    rows = []
    for dy, dx in _TAPS:
        m = ((yy + dy >= 0) & (yy + dy < H) &
             (xx + dx >= 0) & (xx + dx < W)).astype(jnp.float32)
        rows.append(jnp.broadcast_to(m[None, :], (c, HW)))
    return jnp.concatenate(rows, axis=0)


def init_params(key):
    ks = jax.random.split(key, 16)
    mean = jnp.array([0.4914, 0.4822, 0.4465], jnp.float32)
    std = jnp.array([0.2023, 0.1994, 0.2010], jnp.float32)

    def conv_init(k, cin, cout):
        return 0.1 * jax.random.normal(k, (3, 3, cin, cout), jnp.float32)

    p = {}
    # agent first conv (normalization folded in, as in modify_net)
    aw = conv_init(ks[0], C_IN, C_AGENT)
    ab = 0.1 * jax.random.normal(ks[1], (C_AGENT,), jnp.float32)
    aw, ab = fold_norm_into_conv(aw, ab, mean, std)
    aw_t = conv_w_to_lane_dense(aw, CIN_PAD)                        # (16, 144)

    # rnet first conv (normalization folded in)
    rw = conv_init(ks[4], C_IN, C_RNET)
    rb = 0.1 * jax.random.normal(ks[5], (C_RNET,), jnp.float32)
    rw, rb = fold_norm_into_conv(rw, rb, mean, std)
    rw_t = conv_w_to_lane_dense(rw, CIN_PAD)                        # (16, 144)

    # stacked stem (agent rows then rnet rows): one shared patch-matrix matmul
    p['stem_wt'] = jnp.concatenate([aw_t, rw_t], axis=0).astype(jnp.bfloat16)  # (32,144)
    p['stem_b'] = jnp.concatenate([ab, rb], axis=0).reshape(C_STEM, 1)

    # agent FC head, stored per-block so the kernel uses leading-index loads
    p['agent_fc_wt'] = jnp.transpose(
        0.1 * jax.random.normal(ks[2], (C_AGENT, NUM_BLOCKS), jnp.float32)
    ).reshape(NUM_BLOCKS, 1, C_AGENT)
    p['agent_fc_b'] = (0.1 * jax.random.normal(ks[3], (NUM_BLOCKS,), jnp.float32)
                       ).reshape(NUM_BLOCKS, 1, 1)

    # rnet residual blocks (stacked so the kernel takes few arguments)
    w1s, b1s, w2s, b2s = [], [], [], []
    for k in range(NUM_BLOCKS):
        k1, k2, k3, k4 = jax.random.split(ks[6 + k], 4)
        w1s.append(conv_w_to_lane_dense(conv_init(k1, C_RNET, C_RNET)))
        b1s.append((0.1 * jax.random.normal(k2, (C_RNET,), jnp.float32)).reshape(C_RNET, 1))
        w2s.append(conv_w_to_lane_dense(conv_init(k3, C_RNET, C_RNET)))
        b2s.append((0.1 * jax.random.normal(k4, (C_RNET,), jnp.float32)).reshape(C_RNET, 1))
    p['blk_w1t'] = jnp.stack(w1s).astype(jnp.bfloat16)   # (NB, Cr, 144)
    p['blk_b1'] = jnp.stack(b1s)                          # (NB, Cr, 1)
    p['blk_w2t'] = jnp.stack(w2s).astype(jnp.bfloat16)
    p['blk_b2'] = jnp.stack(b2s)

    p['rnet_fc_wt'] = jnp.transpose(
        0.1 * jax.random.normal(ks[10], (C_RNET, NUM_CLASSES), jnp.float32))
    p['rnet_fc_b'] = (0.1 * jax.random.normal(ks[11], (NUM_CLASSES,), jnp.float32)
                      ).reshape(NUM_CLASSES, 1)

    # pre-broadcast boundary masks (constant-folded by XLA under jit)
    p['tap_mask'] = make_tap_masks(C_RNET)                # (144, 256) f32
    return p


# ----------------------------------- forward ----------------------------------

def policy_net_forward(x_nchw, params):
    """Equivalent of PolicyNet.forward(x, device) -> (preds, policy, probs)."""
    # batch = 1 (squeeze(0) semantics).  NCHW is already lane-dense (C, HW):
    x = x_nchw[0].astype(jnp.float32).reshape(C_IN, HW)
    x = jnp.pad(x, ((0, CIN_PAD - C_IN), (0, 0)))                  # (16, 256)

    preds_c, probs_c = policy_net_fused(x, params)                 # one fused kernel

    preds = preds_c.reshape(1, NUM_CLASSES)
    probs = probs_c.reshape(1, NUM_BLOCKS)
    policy = jnp.where(probs[0] >= 0.5, 1.0, 0.0)                  # squeeze(0) semantics
    return preds, policy, probs


# ------------------------------------ main -------------------------------------

if __name__ == "__main__":
    key = jax.random.PRNGKey(0)
    k_params, k_x = jax.random.split(key)
    params = init_params(k_params)
    x = jax.random.normal(k_x, (1, C_IN, H, W), jnp.float32)       # NCHW, batch=1

    preds, policy, probs = jax.jit(policy_net_forward)(x, params)
    jax.block_until_ready((preds, policy, probs))

    assert preds.shape == (1, NUM_CLASSES)
    assert policy.shape == (NUM_BLOCKS,)
    assert probs.shape == (1, NUM_BLOCKS)
    # policy must be the hard threshold of probs
    assert bool(jnp.all(policy == jnp.where(probs[0] >= 0.5, 1.0, 0.0)))
    print("KERNEL_OK")
</pallas_src>

<mosaic_0001>
module attributes {stable_mosaic.version = 11 : i64} {
  func.func @_policy_net_kernel(%arg0: i32, %arg1: memref<16x256xf32, #tpu.memory_space<vmem>>, %arg2: memref<144x256xf32, #tpu.memory_space<vmem>>, %arg3: memref<32x144xbf16, #tpu.memory_space<vmem>>, %arg4: memref<32x1xf32, #tpu.memory_space<vmem>>, %arg5: memref<4x1x16xf32, #tpu.memory_space<vmem>>, %arg6: memref<4x1x1xf32, #tpu.memory_space<vmem>>, %arg7: memref<4x16x144xbf16, #tpu.memory_space<vmem>>, %arg8: memref<4x16x1xf32, #tpu.memory_space<vmem>>, %arg9: memref<4x16x144xbf16, #tpu.memory_space<vmem>>, %arg10: memref<4x16x1xf32, #tpu.memory_space<vmem>>, %arg11: memref<10x16xf32, #tpu.memory_space<vmem>>, %arg12: memref<10x1xf32, #tpu.memory_space<vmem>>, %arg13: memref<10x1xf32, #tpu.memory_space<vmem>>, %arg14: memref<4x1x1xf32, #tpu.memory_space<vmem>>, %arg15: memref<144x256xbf16, #tpu.memory_space<vmem>>) attributes {dimension_semantics = [#tpu.dimension_semantics<arbitrary>], iteration_bounds = array<i64: 1>, scalar_prefetch = 0 : i64, scratch_operands = 1 : i64, tpu.core_type = #tpu.core_type<tc>, window_params = [{pipeline_mode = #tpu.pipeline_mode<synchronous>, transform_indices = @transform_0, window_bounds = array<i64: 16, 256>}, {pipeline_mode = #tpu.pipeline_mode<synchronous>, transform_indices = @transform_1, window_bounds = array<i64: 144, 256>}, {pipeline_mode = #tpu.pipeline_mode<synchronous>, transform_indices = @transform_2, window_bounds = array<i64: 32, 144>}, {pipeline_mode = #tpu.pipeline_mode<synchronous>, transform_indices = @transform_3, window_bounds = array<i64: 32, 1>}, {pipeline_mode = #tpu.pipeline_mode<synchronous>, transform_indices = @transform_4, window_bounds = array<i64: 4, 1, 16>}, {pipeline_mode = #tpu.pipeline_mode<synchronous>, transform_indices = @transform_5, window_bounds = array<i64: 4, 1, 1>}, {pipeline_mode = #tpu.pipeline_mode<synchronous>, transform_indices = @transform_6, window_bounds = array<i64: 4, 16, 144>}, {pipeline_mode = #tpu.pipeline_mode<synchronous>, transform_indices = @transform_7, window_bounds = array<i64: 4, 16, 1>}, {pipeline_mode = #tpu.pipeline_mode<synchronous>, transform_indices = @transform_8, window_bounds = array<i64: 4, 16, 144>}, {pipeline_mode = #tpu.pipeline_mode<synchronous>, transform_indices = @transform_9, window_bounds = array<i64: 4, 16, 1>}, {pipeline_mode = #tpu.pipeline_mode<synchronous>, transform_indices = @transform_10, window_bounds = array<i64: 10, 16>}, {pipeline_mode = #tpu.pipeline_mode<synchronous>, transform_indices = @transform_11, window_bounds = array<i64: 10, 1>}, {pipeline_mode = #tpu.pipeline_mode<synchronous>, transform_indices = @transform_12, window_bounds = array<i64: 10, 1>}, {pipeline_mode = #tpu.pipeline_mode<synchronous>, transform_indices = @transform_13, window_bounds = array<i64: 4, 1, 1>}]} {
    %c0 = arith.constant 0 : index
    %c0_0 = arith.constant 0 : index
    %0 = vector.load %arg1[%c0, %c0_0] : memref<16x256xf32, #tpu.memory_space<vmem>>, vector<16x256xf32>
    %c17_i32 = arith.constant 17 : i32
    %1 = tpu.dynamic_rotate %0 by %c17_i32 dim 1 : vector<16x256xf32>, i32 -> vector<16x256xf32>
    %c0_1 = arith.constant 0 : index
    %c0_2 = arith.constant 0 : index
    %2 = vector.load %arg2[%c0_1, %c0_2] : memref<144x256xf32, #tpu.memory_space<vmem>>, vector<16x256xf32>
    %3 = arith.mulf %1, %2 : vector<16x256xf32>
    %4 = arith.truncf %3 : vector<16x256xf32> to vector<16x256xbf16>
    %c0_3 = arith.constant 0 : index
    %c0_4 = arith.constant 0 : index
    %5 = vector.load %arg15[%c0_3, %c0_4] : memref<144x256xbf16, #tpu.memory_space<vmem>>, vector<16x256xbf16>
    tpu.vector_store %arg15[%c0_3, %c0_4], %4 {strides = array<i32>} : memref<144x256xbf16, #tpu.memory_space<vmem>>, vector<16x256xbf16>,
    %c16_i32 = arith.constant 16 : i32
    %6 = tpu.dynamic_rotate %0 by %c16_i32 dim 1 : vector<16x256xf32>, i32 -> vector<16x256xf32>
    %c16 = arith.constant 16 : index
    %c0_5 = arith.constant 0 : index
    %7 = vector.load %arg2[%c16, %c0_5] : memref<144x256xf32, #tpu.memory_space<vmem>>, vector<16x256xf32>
    %8 = arith.mulf %6, %7 : vector<16x256xf32>
    %9 = arith.truncf %8 : vector<16x256xf32> to vector<16x256xbf16>
    %c16_6 = arith.constant 16 : index
    %c0_7 = arith.constant 0 : index
    %10 = vector.load %arg15[%c16_6, %c0_7] : memref<144x256xbf16, #tpu.memory_space<vmem>>, vector<16x256xbf16>
    tpu.vector_store %arg15[%c16_6, %c0_7], %9 {strides = array<i32>} : memref<144x256xbf16, #tpu.memory_space<vmem>>, vector<16x256xbf16>,
    %c15_i32 = arith.constant 15 : i32
    %11 = tpu.dynamic_rotate %0 by %c15_i32 dim 1 : vector<16x256xf32>, i32 -> vector<16x256xf32>
    %c32 = arith.constant 32 : index
    %c0_8 = arith.constant 0 : index
    %12 = vector.load %arg2[%c32, %c0_8] : memref<144x256xf32, #tpu.memory_space<vmem>>, vector<16x256xf32>
    %13 = arith.mulf %11, %12 : vector<16x256xf32>
    %14 = arith.truncf %13 : vector<16x256xf32> to vector<16x256xbf16>
    %c32_9 = arith.constant 32 : index
    %c0_10 = arith.constant 0 : index
    %15 = vector.load %arg15[%c32_9, %c0_10] : memref<144x256xbf16, #tpu.memory_space<vmem>>, vector<16x256xbf16>
    tpu.vector_store %arg15[%c32_9, %c0_10], %14 {strides = array<i32>} : memref<144x256xbf16, #tpu.memory_space<vmem>>, vector<16x256xbf16>,
    %c1_i32 = arith.constant 1 : i32
    %16 = tpu.dynamic_rotate %0 by %c1_i32 dim 1 : vector<16x256xf32>, i32 -> vector<16x256xf32>
    %c48 = arith.constant 48 : index
    %c0_11 = arith.constant 0 : index
    %17 = vector.load %arg2[%c48, %c0_11] : memref<144x256xf32, #tpu.memory_space<vmem>>, vector<16x256xf32>
    %18 = arith.mulf %16, %17 : vector<16x256xf32>
    %19 = arith.truncf %18 : vector<16x256xf32> to vector<16x256xbf16>
    %c48_12 = arith.constant 48 : index
    %c0_13 = arith.constant 0 : index
    %20 = vector.load %arg15[%c48_12, %c0_13] : memref<144x256xbf16, #tpu.memory_space<vmem>>, vector<16x256xbf16>
    tpu.vector_store %arg15[%c48_12, %c0_13], %19 {strides = array<i32>} : memref<144x256xbf16, #tpu.memory_space<vmem>>, vector<16x256xbf16>,
    %21 = arith.truncf %0 : vector<16x256xf32> to vector<16x256xbf16>
    %c64 = arith.constant 64 : index
    %c0_14 = arith.constant 0 : index
    %22 = vector.load %arg15[%c64, %c0_14] : memref<144x256xbf16, #tpu.memory_space<vmem>>, vector<16x256xbf16>
    tpu.vector_store %arg15[%c64, %c0_14], %21 {strides = array<i32>} : memref<144x256xbf16, #tpu.memory_space<vmem>>, vector<16x256xbf16>,
    %c255_i32 = arith.constant 255 : i32
    %23 = tpu.dynamic_rotate %0 by %c255_i32 dim 1 : vector<16x256xf32>, i32 -> vector<16x256xf32>
    %c80 = arith.constant 80 : index
    %c0_15 = arith.constant 0 : index
    %24 = vector.load %arg2[%c80, %c0_15] : memref<144x256xf32, #tpu.memory_space<vmem>>, vector<16x256xf32>
    %25 = arith.mulf %23, %24 : vector<16x256xf32>
    %26 = arith.truncf %25 : vector<16x256xf32> to vector<16x256xbf16>
    %c80_16 = arith.constant 80 : index
    %c0_17 = arith.constant 0 : index
    %27 = vector.load %arg15[%c80_16, %c0_17] : memref<144x256xbf16, #tpu.memory_space<vmem>>, vector<16x256xbf16>
    tpu.vector_store %arg15[%c80_16, %c0_17], %26 {strides = array<i32>} : memref<144x256xbf16, #tpu.memory_space<vmem>>, vector<16x256xbf16>,
    %c241_i32 = arith.constant 241 : i32
    %28 = tpu.dynamic_rotate %0 by %c241_i32 dim 1 : vector<16x256xf32>, i32 -> vector<16x256xf32>
    %c96 = arith.constant 96 : index
    %c0_18 = arith.constant 0 : index
    %29 = vector.load %arg2[%c96, %c0_18] : memref<144x256xf32, #tpu.memory_space<vmem>>, vector<16x256xf32>
    %30 = arith.mulf %28, %29 : vector<16x256xf32>
    %31 = arith.truncf %30 : vector<16x256xf32> to vector<16x256xbf16>
    %c96_19 = arith.constant 96 : index
    %c0_20 = arith.constant 0 : index
    %32 = vector.load %arg15[%c96_19, %c0_20] : memref<144x256xbf16, #tpu.memory_space<vmem>>, vector<16x256xbf16>
    tpu.vector_store %arg15[%c96_19, %c0_20], %31 {strides = array<i32>} : memref<144x256xbf16, #tpu.memory_space<vmem>>, vector<16x256xbf16>,
    %c240_i32 = arith.constant 240 : i32
    %33 = tpu.dynamic_rotate %0 by %c240_i32 dim 1 : vector<16x256xf32>, i32 -> vector<16x256xf32>
    %c112 = arith.constant 112 : index
    %c0_21 = arith.constant 0 : index
    %34 = vector.load %arg2[%c112, %c0_21] : memref<144x256xf32, #tpu.memory_space<vmem>>, vector<16x256xf32>
    %35 = arith.mulf %33, %34 : vector<16x256xf32>
    %36 = arith.truncf %35 : vector<16x256xf32> to vector<16x256xbf16>
    %c112_22 = arith.constant 112 : index
    %c0_23 = arith.constant 0 : index
    %37 = vector.load %arg15[%c112_22, %c0_23] : memref<144x256xbf16, #tpu.memory_space<vmem>>, vector<16x256xbf16>
    tpu.vector_store %arg15[%c112_22, %c0_23], %36 {strides = array<i32>} : memref<144x256xbf16, #tpu.memory_space<vmem>>, vector<16x256xbf16>,
    %c239_i32 = arith.constant 239 : i32
    %38 = tpu.dynamic_rotate %0 by %c239_i32 dim 1 : vector<16x256xf32>, i32 -> vector<16x256xf32>
    %c128 = arith.constant 128 : index
    %c0_24 = arith.constant 0 : index
    %39 = vector.load %arg2[%c128, %c0_24] : memref<144x256xf32, #tpu.memory_space<vmem>>, vector<16x256xf32>
    %40 = arith.mulf %38, %39 : vector<16x256xf32>
    %41 = arith.truncf %40 : vector<16x256xf32> to vector<16x256xbf16>
    %c128_25 = arith.constant 128 : index
    %c0_26 = arith.constant 0 : index
    %42 = vector.load %arg15[%c128_25, %c0_26] : memref<144x256xbf16, #tpu.memory_space<vmem>>, vector<16x256xbf16>
    tpu.vector_store %arg15[%c128_25, %c0_26], %41 {strides = array<i32>} : memref<144x256xbf16, #tpu.memory_space<vmem>>, vector<16x256xbf16>,
    %c0_27 = arith.constant 0 : index
    %c0_28 = arith.constant 0 : index
    %43 = vector.load %arg3[%c0_27, %c0_28] : memref<32x144xbf16, #tpu.memory_space<vmem>>, vector<32x144xbf16>
    %c0_29 = arith.constant 0 : index
    %c0_30 = arith.constant 0 : index
    %44 = vector.load %arg4[%c0_29, %c0_30] : memref<32x1xf32, #tpu.memory_space<vmem>>, vector<32x1xf32>
    %c0_31 = arith.constant 0 : index
    %c0_32 = arith.constant 0 : index
    %45 = vector.load %arg15[%c0_31, %c0_32] : memref<144x256xbf16, #tpu.memory_space<vmem>>, vector<144x256xbf16>
    %cst = arith.constant dense<0.000000e+00> : vector<32x256xf32>
    %46 = tpu.matmul %43, %45, %cst {dimension_numbers = #tpu.dot_dimension_numbers<[1], [0], [0], [1], [0, 0, 1, 1], [], []>} : vector<32x144xbf16>, vector<144x256xbf16>, vector<32x256xf32> -> vector<32x256xf32>
    %47 = vector.broadcast %44 : vector<32x1xf32> to vector<32x256xf32>
    %48 = arith.addf %46, %47 : vector<32x256xf32>
    %cst_33 = arith.constant 0.000000e+00 : f32
    %49 = vector.broadcast %cst_33 : f32 to vector<32x256xf32>
    %50 = arith.maximumf %48, %49 : vector<32x256xf32>
    %51 = vector.extract_strided_slice %50 {offsets = [0, 0], sizes = [16, 256], strides = [1, 1]} : vector<32x256xf32> to vector<16x256xf32>
    %52 = vector.extract_strided_slice %50 {offsets = [16, 0], sizes = [16, 256], strides = [1, 1]} : vector<32x256xf32> to vector<16x256xf32>
    %c0_34 = arith.constant 0 : index
    %c0_35 = arith.constant 0 : index
    %c0_36 = arith.constant 0 : index
    %53 = vector.load %arg5[%c0_34, %c0_35, %c0_36] : memref<4x1x16xf32, #tpu.memory_space<vmem>>, vector<1x1x16xf32>
    %54 = vector.shape_cast %53 : vector<1x1x16xf32> to vector<1x16xf32>
    %cst_37 = arith.constant dense<0.000000e+00> : vector<1x256xf32>
    %55 = tpu.matmul %54, %51, %cst_37 {dimension_numbers = #tpu.dot_dimension_numbers<[1], [0], [0], [1], [0, 0, 1, 1], [], []>} : vector<1x16xf32>, vector<16x256xf32>, vector<1x256xf32> -> vector<1x256xf32>
    %cst_38 = arith.constant dense<0.000000e+00> : vector<1xf32>
    %56 = vector.multi_reduction <add>, %55, %cst_38 [1] : vector<1x256xf32> to vector<1xf32>
    %57 = vector.shape_cast %56 : vector<1xf32> to vector<1x1xf32>
    %cst_39 = arith.constant 3.906250e-03 : f32
    %58 = vector.broadcast %cst_39 : f32 to vector<1x1xf32>
    %59 = arith.mulf %57, %58 : vector<1x1xf32>
    %c0_40 = arith.constant 0 : index
    %c0_41 = arith.constant 0 : index
    %c0_42 = arith.constant 0 : index
    %60 = vector.load %arg6[%c0_40, %c0_41, %c0_42] : memref<4x1x1xf32, #tpu.memory_space<vmem>>, vector<1x1x1xf32>
    %61 = vector.shape_cast %60 : vector<1x1x1xf32> to vector<1x1xf32>
    %62 = arith.addf %59, %61 : vector<1x1xf32>
    %63 = arith.negf %62 : vector<1x1xf32>
    %64 = math.exp %63 : vector<1x1xf32>
    %cst_43 = arith.constant 1.000000e+00 : f32
    %65 = vector.broadcast %cst_43 : f32 to vector<1x1xf32>
    %66 = arith.addf %65, %64 : vector<1x1xf32>
    %67 = arith.divf %65, %66 : vector<1x1xf32>
    %c0_44 = arith.constant 0 : index
    %c0_45 = arith.constant 0 : index
    %c0_46 = arith.constant 0 : index
    %68 = vector.load %arg14[%c0_44, %c0_45, %c0_46] : memref<4x1x1xf32, #tpu.memory_space<vmem>>, vector<1x1x1xf32>
    %69 = vector.shape_cast %68 : vector<1x1x1xf32> to vector<1x1xf32>
    %70 = vector.shape_cast %67 : vector<1x1xf32> to vector<1x1x1xf32>
    tpu.vector_store %arg14[%c0_44, %c0_45, %c0_46], %70 {strides = array<i32>} : memref<4x1x1xf32, #tpu.memory_space<vmem>>, vector<1x1x1xf32>,
    %cst_47 = arith.constant 5.000000e-01 : f32
    %71 = vector.broadcast %cst_47 : f32 to vector<1x1xf32>
    %72 = arith.cmpf oge, %67, %71 : vector<1x1xf32>
    %cst_48 = arith.constant 1.000000e+00 : f32
    %cst_49 = arith.constant 0.000000e+00 : f32
    %73 = vector.broadcast %cst_48 : f32 to vector<1x1xf32>
    %74 = vector.broadcast %cst_49 : f32 to vector<1x1xf32>
    %75 = arith.select %72, %73, %74 : vector<1x1xi1>, vector<1x1xf32>
    %c1 = arith.constant 1 : index
    %c0_50 = arith.constant 0 : index
    %c0_51 = arith.constant 0 : index
    %76 = vector.load %arg5[%c1, %c0_50, %c0_51] : memref<4x1x16xf32, #tpu.memory_space<vmem>>, vector<1x1x16xf32>
    %77 = vector.shape_cast %76 : vector<1x1x16xf32> to vector<1x16xf32>
    %cst_52 = arith.constant dense<0.000000e+00> : vector<1x256xf32>
    %78 = tpu.matmul %77, %51, %cst_52 {dimension_numbers = #tpu.dot_dimension_numbers<[1], [0], [0], [1], [0, 0, 1, 1], [], []>} : vector<1x16xf32>, vector<16x256xf32>, vector<1x256xf32> -> vector<1x256xf32>
    %cst_53 = arith.constant dense<0.000000e+00> : vector<1xf32>
    %79 = vector.multi_reduction <add>, %78, %cst_53 [1] : vector<1x256xf32> to vector<1xf32>
    %80 = vector.shape_cast %79 : vector<1xf32> to vector<1x1xf32>
    %cst_54 = arith.constant 3.906250e-03 : f32
    %81 = vector.broadcast %cst_54 : f32 to vector<1x1xf32>
    %82 = arith.mulf %80, %81 : vector<1x1xf32>
    %c1_55 = arith.constant 1 : index
    %c0_56 = arith.constant 0 : index
    %c0_57 = arith.constant 0 : index
    %83 = vector.load %arg6[%c1_55, %c0_56, %c0_57] : memref<4x1x1xf32, #tpu.memory_space<vmem>>, vector<1x1x1xf32>
    %84 = vector.shape_cast %83 : vector<1x1x1xf32> to vector<1x1xf32>
    %85 = arith.addf %82, %84 : vector<1x1xf32>
    %86 = arith.negf %85 : vector<1x1xf32>
    %87 = math.exp %86 : vector<1x1xf32>
    %cst_58 = arith.constant 1.000000e+00 : f32
    %88 = vector.broadcast %cst_58 : f32 to vector<1x1xf32>
    %89 = arith.addf %88, %87 : vector<1x1xf32>
    %90 = arith.divf %88, %89 : vector<1x1xf32>
    %c1_59 = arith.constant 1 : index
    %c0_60 = arith.constant 0 : index
    %c0_61 = arith.constant 0 : index
    %91 = vector.load %arg14[%c1_59, %c0_60, %c0_61] : memref<4x1x1xf32, #tpu.memory_space<vmem>>, vector<1x1x1xf32>
    %92 = vector.shape_cast %91 : vector<1x1x1xf32> to vector<1x1xf32>
    %93 = vector.shape_cast %90 : vector<1x1xf32> to vector<1x1x1xf32>
    tpu.vector_store %arg14[%c1_59, %c0_60, %c0_61], %93 {strides = array<i32>} : memref<4x1x1xf32, #tpu.memory_space<vmem>>, vector<1x1x1xf32>,
    %cst_62 = arith.constant 5.000000e-01 : f32
    %94 = vector.broadcast %cst_62 : f32 to vector<1x1xf32>
    %95 = arith.cmpf oge, %90, %94 : vector<1x1xf32>
    %cst_63 = arith.constant 1.000000e+00 : f32
    %cst_64 = arith.constant 0.000000e+00 : f32
    %96 = vector.broadcast %cst_63 : f32 to vector<1x1xf32>
    %97 = vector.broadcast %cst_64 : f32 to vector<1x1xf32>
    %98 = arith.select %95, %96, %97 : vector<1x1xi1>, vector<1x1xf32>
    %c2 = arith.constant 2 : index
    %c0_65 = arith.constant 0 : index
    %c0_66 = arith.constant 0 : index
    %99 = vector.load %arg5[%c2, %c0_65, %c0_66] : memref<4x1x16xf32, #tpu.memory_space<vmem>>, vector<1x1x16xf32>
    %100 = vector.shape_cast %99 : vector<1x1x16xf32> to vector<1x16xf32>
    %cst_67 = arith.constant dense<0.000000e+00> : vector<1x256xf32>
    %101 = tpu.matmul %100, %51, %cst_67 {dimension_numbers = #tpu.dot_dimension_numbers<[1], [0], [0], [1], [0, 0, 1, 1], [], []>} : vector<1x16xf32>, vector<16x256xf32>, vector<1x256xf32> -> vector<1x256xf32>
    %cst_68 = arith.constant dense<0.000000e+00> : vector<1xf32>
    %102 = vector.multi_reduction <add>, %101, %cst_68 [1] : vector<1x256xf32> to vector<1xf32>
    %103 = vector.shape_cast %102 : vector<1xf32> to vector<1x1xf32>
    %cst_69 = arith.constant 3.906250e-03 : f32
    %104 = vector.broadcast %cst_69 : f32 to vector<1x1xf32>
    %105 = arith.mulf %103, %104 : vector<1x1xf32>
    %c2_70 = arith.constant 2 : index
    %c0_71 = arith.constant 0 : index
    %c0_72 = arith.constant 0 : index
    %106 = vector.load %arg6[%c2_70, %c0_71, %c0_72] : memref<4x1x1xf32, #tpu.memory_space<vmem>>, vector<1x1x1xf32>
    %107 = vector.shape_cast %106 : vector<1x1x1xf32> to vector<1x1xf32>
    %108 = arith.addf %105, %107 : vector<1x1xf32>
    %109 = arith.negf %108 : vector<1x1xf32>
    %110 = math.exp %109 : vector<1x1xf32>
    %cst_73 = arith.constant 1.000000e+00 : f32
    %111 = vector.broadcast %cst_73 : f32 to vector<1x1xf32>
    %112 = arith.addf %111, %110 : vector<1x1xf32>
    %113 = arith.divf %111, %112 : vector<1x1xf32>
    %c2_74 = arith.constant 2 : index
    %c0_75 = arith.constant 0 : index
    %c0_76 = arith.constant 0 : index
    %114 = vector.load %arg14[%c2_74, %c0_75, %c0_76] : memref<4x1x1xf32, #tpu.memory_space<vmem>>, vector<1x1x1xf32>
    %115 = vector.shape_cast %114 : vector<1x1x1xf32> to vector<1x1xf32>
    %116 = vector.shape_cast %113 : vector<1x1xf32> to vector<1x1x1xf32>
    tpu.vector_store %arg14[%c2_74, %c0_75, %c0_76], %116 {strides = array<i32>} : memref<4x1x1xf32, #tpu.memory_space<vmem>>, vector<1x1x1xf32>,
    %cst_77 = arith.constant 5.000000e-01 : f32
    %117 = vector.broadcast %cst_77 : f32 to vector<1x1xf32>
    %118 = arith.cmpf oge, %113, %117 : vector<1x1xf32>
    %cst_78 = arith.constant 1.000000e+00 : f32
    %cst_79 = arith.constant 0.000000e+00 : f32
    %119 = vector.broadcast %cst_78 : f32 to vector<1x1xf32>
    %120 = vector.broadcast %cst_79 : f32 to vector<1x1xf32>
    %121 = arith.select %118, %119, %120 : vector<1x1xi1>, vector<1x1xf32>
    %c3 = arith.constant 3 : index
    %c0_80 = arith.constant 0 : index
    %c0_81 = arith.constant 0 : index
    %122 = vector.load %arg5[%c3, %c0_80, %c0_81] : memref<4x1x16xf32, #tpu.memory_space<vmem>>, vector<1x1x16xf32>
    %123 = vector.shape_cast %122 : vector<1x1x16xf32> to vector<1x16xf32>
    %cst_82 = arith.constant dense<0.000000e+00> : vector<1x256xf32>
    %124 = tpu.matmul %123, %51, %cst_82 {dimension_numbers = #tpu.dot_dimension_numbers<[1], [0], [0], [1], [0, 0, 1, 1], [], []>} : vector<1x16xf32>, vector<16x256xf32>, vector<1x256xf32> -> vector<1x256xf32>
    %cst_83 = arith.constant dense<0.000000e+00> : vector<1xf32>
    %125 = vector.multi_reduction <add>, %124, %cst_83 [1] : vector<1x256xf32> to vector<1xf32>
    %126 = vector.shape_cast %125 : vector<1xf32> to vector<1x1xf32>
    %cst_84 = arith.constant 3.906250e-03 : f32
    %127 = vector.broadcast %cst_84 : f32 to vector<1x1xf32>
    %128 = arith.mulf %126, %127 : vector<1x1xf32>
    %c3_85 = arith.constant 3 : index
    %c0_86 = arith.constant 0 : index
    %c0_87 = arith.constant 0 : index
    %129 = vector.load %arg6[%c3_85, %c0_86, %c0_87] : memref<4x1x1xf32, #tpu.memory_space<vmem>>, vector<1x1x1xf32>
    %130 = vector.shape_cast %129 : vector<1x1x1xf32> to vector<1x1xf32>
    %131 = arith.addf %128, %130 : vector<1x1xf32>
    %132 = arith.negf %131 : vector<1x1xf32>
    %133 = math.exp %132 : vector<1x1xf32>
    %cst_88 = arith.constant 1.000000e+00 : f32
    %134 = vector.broadcast %cst_88 : f32 to vector<1x1xf32>
    %135 = arith.addf %134, %133 : vector<1x1xf32>
    %136 = arith.divf %134, %135 : vector<1x1xf32>
    %c3_89 = arith.constant 3 : index
    %c0_90 = arith.constant 0 : index
    %c0_91 = arith.constant 0 : index
    %137 = vector.load %arg14[%c3_89, %c0_90, %c0_91] : memref<4x1x1xf32, #tpu.memory_space<vmem>>, vector<1x1x1xf32>
    %138 = vector.shape_cast %137 : vector<1x1x1xf32> to vector<1x1xf32>
    %139 = vector.shape_cast %136 : vector<1x1xf32> to vector<1x1x1xf32>
    tpu.vector_store %arg14[%c3_89, %c0_90, %c0_91], %139 {strides = array<i32>} : memref<4x1x1xf32, #tpu.memory_space<vmem>>, vector<1x1x1xf32>,
    %cst_92 = arith.constant 5.000000e-01 : f32
    %140 = vector.broadcast %cst_92 : f32 to vector<1x1xf32>
    %141 = arith.cmpf oge, %136, %140 : vector<1x1xf32>
    %cst_93 = arith.constant 1.000000e+00 : f32
    %cst_94 = arith.constant 0.000000e+00 : f32
    %142 = vector.broadcast %cst_93 : f32 to vector<1x1xf32>
    %143 = vector.broadcast %cst_94 : f32 to vector<1x1xf32>
    %144 = arith.select %141, %142, %143 : vector<1x1xi1>, vector<1x1xf32>
    %c17_i32_95 = arith.constant 17 : i32
    %145 = tpu.dynamic_rotate %52 by %c17_i32_95 dim 1 : vector<16x256xf32>, i32 -> vector<16x256xf32>
    %c0_96 = arith.constant 0 : index
    %c0_97 = arith.constant 0 : index
    %146 = vector.load %arg2[%c0_96, %c0_97] : memref<144x256xf32, #tpu.memory_space<vmem>>, vector<16x256xf32>
    %147 = arith.mulf %145, %146 : vector<16x256xf32>
    %148 = arith.truncf %147 : vector<16x256xf32> to vector<16x256xbf16>
    %c0_98 = arith.constant 0 : index
    %c0_99 = arith.constant 0 : index
    %149 = vector.load %arg15[%c0_98, %c0_99] : memref<144x256xbf16, #tpu.memory_space<vmem>>, vector<16x256xbf16>
    tpu.vector_store %arg15[%c0_98, %c0_99], %148 {strides = array<i32>} : memref<144x256xbf16, #tpu.memory_space<vmem>>, vector<16x256xbf16>,
    %c16_i32_100 = arith.constant 16 : i32
    %150 = tpu.dynamic_rotate %52 by %c16_i32_100 dim 1 : vector<16x256xf32>, i32 -> vector<16x256xf32>
    %c16_101 = arith.constant 16 : index
    %c0_102 = arith.constant 0 : index
    %151 = vector.load %arg2[%c16_101, %c0_102] : memref<144x256xf32, #tpu.memory_space<vmem>>, vector<16x256xf32>
    %152 = arith.mulf %150, %151 : vector<16x256xf32>
    %153 = arith.truncf %152 : vector<16x256xf32> to vector<16x256xbf16>
    %c16_103 = arith.constant 16 : index
    %c0_104 = arith.constant 0 : index
    %154 = vector.load %arg15[%c16_103, %c0_104] : memref<144x256xbf16, #tpu.memory_space<vmem>>, vector<16x256xbf16>
    tpu.vector_store %arg15[%c16_103, %c0_104], %153 {strides = array<i32>} : memref<144x256xbf16, #tpu.memory_space<vmem>>, vector<16x256xbf16>,
    %c15_i32_105 = arith.constant 15 : i32
    %155 = tpu.dynamic_rotate %52 by %c15_i32_105 dim 1 : vector<16x256xf32>, i32 -> vector<16x256xf32>
    %c32_106 = arith.constant 32 : index
    %c0_107 = arith.constant 0 : index
    %156 = vector.load %arg2[%c32_106, %c0_107] : memref<144x256xf32, #tpu.memory_space<vmem>>, vector<16x256xf32>
    %157 = arith.mulf %155, %156 : vector<16x256xf32>
    %158 = arith.truncf %157 : vector<16x256xf32> to vector<16x256xbf16>
    %c32_108 = arith.constant 32 : index
    %c0_109 = arith.constant 0 : index
    %159 = vector.load %arg15[%c32_108, %c0_109] : memref<144x256xbf16, #tpu.memory_space<vmem>>, vector<16x256xbf16>
    tpu.vector_store %arg15[%c32_108, %c0_109], %158 {strides = array<i32>} : memref<144x256xbf16, #tpu.memory_space<vmem>>, vector<16x256xbf16>,
    %c1_i32_110 = arith.constant 1 : i32
    %160 = tpu.dynamic_rotate %52 by %c1_i32_110 dim 1 : vector<16x256xf32>, i32 -> vector<16x256xf32>
    %c48_111 = arith.constant 48 : index
    %c0_112 = arith.constant 0 : index
    %161 = vector.load %arg2[%c48_111, %c0_112] : memref<144x256xf32, #tpu.memory_space<vmem>>, vector<16x256xf32>
    %162 = arith.mulf %160, %161 : vector<16x256xf32>
    %163 = arith.truncf %162 : vector<16x256xf32> to vector<16x256xbf16>
    %c48_113 = arith.constant 48 : index
    %c0_114 = arith.constant 0 : index
    %164 = vector.load %arg15[%c48_113, %c0_114] : memref<144x256xbf16, #tpu.memory_space<vmem>>, vector<16x256xbf16>
    tpu.vector_store %arg15[%c48_113, %c0_114], %163 {strides = array<i32>} : memref<144x256xbf16, #tpu.memory_space<vmem>>, vector<16x256xbf16>,
    %165 = arith.truncf %52 : vector<16x256xf32> to vector<16x256xbf16>
    %c64_115 = arith.constant 64 : index
    %c0_116 = arith.constant 0 : index
    %166 = vector.load %arg15[%c64_115, %c0_116] : memref<144x256xbf16, #tpu.memory_space<vmem>>, vector<16x256xbf16>
    tpu.vector_store %arg15[%c64_115, %c0_116], %165 {strides = array<i32>} : memref<144x256xbf16, #tpu.memory_space<vmem>>, vector<16x256xbf16>,
    %c255_i32_117 = arith.constant 255 : i32
    %167 = tpu.dynamic_rotate %52 by %c255_i32_117 dim 1 : vector<16x256xf32>, i32 -> vector<16x256xf32>
    %c80_118 = arith.constant 80 : index
    %c0_119 = arith.constant 0 : index
    %168 = vector.load %arg2[%c80_118, %c0_119] : memref<144x256xf32, #tpu.memory_space<vmem>>, vector<16x256xf32>
    %169 = arith.mulf %167, %168 : vector<16x256xf32>
    %170 = arith.truncf %169 : vector<16x256xf32> to vector<16x256xbf16>
    %c80_120 = arith.constant 80 : index
    %c0_121 = arith.constant 0 : index
    %171 = vector.load %arg15[%c80_120, %c0_121] : memref<144x256xbf16, #tpu.memory_space<vmem>>, vector<16x256xbf16>
    tpu.vector_store %arg15[%c80_120, %c0_121], %170 {strides = array<i32>} : memref<144x256xbf16, #tpu.memory_space<vmem>>, vector<16x256xbf16>,
    %c241_i32_122 = arith.constant 241 : i32
    %172 = tpu.dynamic_rotate %52 by %c241_i32_122 dim 1 : vector<16x256xf32>, i32 -> vector<16x256xf32>
    %c96_123 = arith.constant 96 : index
    %c0_124 = arith.constant 0 : index
    %173 = vector.load %arg2[%c96_123, %c0_124] : memref<144x256xf32, #tpu.memory_space<vmem>>, vector<16x256xf32>
    %174 = arith.mulf %172, %173 : vector<16x256xf32>
    %175 = arith.truncf %174 : vector<16x256xf32> to vector<16x256xbf16>
    %c96_125 = arith.constant 96 : index
    %c0_126 = arith.constant 0 : index
    %176 = vector.load %arg15[%c96_125, %c0_126] : memref<144x256xbf16, #tpu.memory_space<vmem>>, vector<16x256xbf16>
    tpu.vector_store %arg15[%c96_125, %c0_126], %175 {strides = array<i32>} : memref<144x256xbf16, #tpu.memory_space<vmem>>, vector<16x256xbf16>,
    %c240_i32_127 = arith.constant 240 : i32
    %177 = tpu.dynamic_rotate %52 by %c240_i32_127 dim 1 : vector<16x256xf32>, i32 -> vector<16x256xf32>
    %c112_128 = arith.constant 112 : index
    %c0_129 = arith.constant 0 : index
    %178 = vector.load %arg2[%c112_128, %c0_129] : memref<144x256xf32, #tpu.memory_space<vmem>>, vector<16x256xf32>
    %179 = arith.mulf %177, %178 : vector<16x256xf32>
    %180 = arith.truncf %179 : vector<16x256xf32> to vector<16x256xbf16>
    %c112_130 = arith.constant 112 : index
    %c0_131 = arith.constant 0 : index
    %181 = vector.load %arg15[%c112_130, %c0_131] : memref<144x256xbf16, #tpu.memory_space<vmem>>, vector<16x256xbf16>
    tpu.vector_store %arg15[%c112_130, %c0_131], %180 {strides = array<i32>} : memref<144x256xbf16, #tpu.memory_space<vmem>>, vector<16x256xbf16>,
    %c239_i32_132 = arith.constant 239 : i32
    %182 = tpu.dynamic_rotate %52 by %c239_i32_132 dim 1 : vector<16x256xf32>, i32 -> vector<16x256xf32>
    %c128_133 = arith.constant 128 : index
    %c0_134 = arith.constant 0 : index
    %183 = vector.load %arg2[%c128_133, %c0_134] : memref<144x256xf32, #tpu.memory_space<vmem>>, vector<16x256xf32>
    %184 = arith.mulf %182, %183 : vector<16x256xf32>
    %185 = arith.truncf %184 : vector<16x256xf32> to vector<16x256xbf16>
    %c128_135 = arith.constant 128 : index
    %c0_136 = arith.constant 0 : index
    %186 = vector.load %arg15[%c128_135, %c0_136] : memref<144x256xbf16, #tpu.memory_space<vmem>>, vector<16x256xbf16>
    tpu.vector_store %arg15[%c128_135, %c0_136], %185 {strides = array<i32>} : memref<144x256xbf16, #tpu.memory_space<vmem>>, vector<16x256xbf16>,
    %c0_137 = arith.constant 0 : index
    %c0_138 = arith.constant 0 : index
    %c0_139 = arith.constant 0 : index
    %187 = vector.load %arg7[%c0_137, %c0_138, %c0_139] : memref<4x16x144xbf16, #tpu.memory_space<vmem>>, vector<1x16x144xbf16>
    %188 = vector.shape_cast %187 : vector<1x16x144xbf16> to vector<16x144xbf16>
    %c0_140 = arith.constant 0 : index
    %c0_141 = arith.constant 0 : index
    %c0_142 = arith.constant 0 : index
    %189 = vector.load %arg8[%c0_140, %c0_141, %c0_142] : memref<4x16x1xf32, #tpu.memory_space<vmem>>, vector<1x16x1xf32>
    %190 = vector.shape_cast %189 : vector<1x16x1xf32> to vector<16x1xf32>
    %c0_143 = arith.constant 0 : index
    %c0_144 = arith.constant 0 : index
    %191 = vector.load %arg15[%c0_143, %c0_144] : memref<144x256xbf16, #tpu.memory_space<vmem>>, vector<144x256xbf16>
    %cst_145 = arith.constant dense<0.000000e+00> : vector<16x256xf32>
    %192 = tpu.matmul %188, %191, %cst_145 {dimension_numbers = #tpu.dot_dimension_numbers<[1], [0], [0], [1], [0, 0, 1, 1], [], []>} : vector<16x144xbf16>, vector<144x256xbf16>, vector<16x256xf32> -> vector<16x256xf32>
    %193 = vector.broadcast %190 : vector<16x1xf32> to vector<16x256xf32>
    %194 = arith.addf %192, %193 : vector<16x256xf32>
    %cst_146 = arith.constant 0.000000e+00 : f32
    %195 = vector.broadcast %cst_146 : f32 to vector<16x256xf32>
    %196 = arith.maximumf %194, %195 : vector<16x256xf32>
    %c17_i32_147 = arith.constant 17 : i32
    %197 = tpu.dynamic_rotate %196 by %c17_i32_147 dim 1 : vector<16x256xf32>, i32 -> vector<16x256xf32>
    %c0_148 = arith.constant 0 : index
    %c0_149 = arith.constant 0 : index
    %198 = vector.load %arg2[%c0_148, %c0_149] : memref<144x256xf32, #tpu.memory_space<vmem>>, vector<16x256xf32>
    %199 = arith.mulf %197, %198 : vector<16x256xf32>
    %200 = arith.truncf %199 : vector<16x256xf32> to vector<16x256xbf16>
    %c0_150 = arith.constant 0 : index
    %c0_151 = arith.constant 0 : index
    %201 = vector.load %arg15[%c0_150, %c0_151] : memref<144x256xbf16, #tpu.memory_space<vmem>>, vector<16x256xbf16>
    tpu.vector_store %arg15[%c0_150, %c0_151], %200 {strides = array<i32>} : memref<144x256xbf16, #tpu.memory_space<vmem>>, vector<16x256xbf16>,
    %c16_i32_152 = arith.constant 16 : i32
    %202 = tpu.dynamic_rotate %196 by %c16_i32_152 dim 1 : vector<16x256xf32>, i32 -> vector<16x256xf32>
    %c16_153 = arith.constant 16 : index
    %c0_154 = arith.constant 0 : index
    %203 = vector.load %arg2[%c16_153, %c0_154] : memref<144x256xf32, #tpu.memory_space<vmem>>, vector<16x256xf32>
    %204 = arith.mulf %202, %203 : vector<16x256xf32>
    %205 = arith.truncf %204 : vector<16x256xf32> to vector<16x256xbf16>
    %c16_155 = arith.constant 16 : index
    %c0_156 = arith.constant 0 : index
    %206 = vector.load %arg15[%c16_155, %c0_156] : memref<144x256xbf16, #tpu.memory_space<vmem>>, vector<16x256xbf16>
    tpu.vector_store %arg15[%c16_155, %c0_156], %205 {strides = array<i32>} : memref<144x256xbf16, #tpu.memory_space<vmem>>, vector<16x256xbf16>,
    %c15_i32_157 = arith.constant 15 : i32
    %207 = tpu.dynamic_rotate %196 by %c15_i32_157 dim 1 : vector<16x256xf32>, i32 -> vector<16x256xf32>
    %c32_158 = arith.constant 32 : index
    %c0_159 = arith.constant 0 : index
    %208 = vector.load %arg2[%c32_158, %c0_159] : memref<144x256xf32, #tpu.memory_space<vmem>>, vector<16x256xf32>
    %209 = arith.mulf %207, %208 : vector<16x256xf32>
    %210 = arith.truncf %209 : vector<16x256xf32> to vector<16x256xbf16>
    %c32_160 = arith.constant 32 : index
    %c0_161 = arith.constant 0 : index
    %211 = vector.load %arg15[%c32_160, %c0_161] : memref<144x256xbf16, #tpu.memory_space<vmem>>, vector<16x256xbf16>
    tpu.vector_store %arg15[%c32_160, %c0_161], %210 {strides = array<i32>} : memref<144x256xbf16, #tpu.memory_space<vmem>>, vector<16x256xbf16>,
    %c1_i32_162 = arith.constant 1 : i32
    %212 = tpu.dynamic_rotate %196 by %c1_i32_162 dim 1 : vector<16x256xf32>, i32 -> vector<16x256xf32>
    %c48_163 = arith.constant 48 : index
    %c0_164 = arith.constant 0 : index
    %213 = vector.load %arg2[%c48_163, %c0_164] : memref<144x256xf32, #tpu.memory_space<vmem>>, vector<16x256xf32>
    %214 = arith.mulf %212, %213 : vector<16x256xf32>
    %215 = arith.truncf %214 : vector<16x256xf32> to vector<16x256xbf16>
    %c48_165 = arith.constant 48 : index
    %c0_166 = arith.constant 0 : index
    %216 = vector.load %arg15[%c48_165, %c0_166] : memref<144x256xbf16, #tpu.memory_space<vmem>>, vector<16x256xbf16>
    tpu.vector_store %arg15[%c48_165, %c0_166], %215 {strides = array<i32>} : memref<144x256xbf16, #tpu.memory_space<vmem>>, vector<16x256xbf16>,
    %217 = arith.truncf %196 : vector<16x256xf32> to vector<16x256xbf16>
    %c64_167 = arith.constant 64 : index
    %c0_168 = arith.constant 0 : index
    %218 = vector.load %arg15[%c64_167, %c0_168] : memref<144x256xbf16, #tpu.memory_space<vmem>>, vector<16x256xbf16>
    tpu.vector_store %arg15[%c64_167, %c0_168], %217 {strides = array<i32>} : memref<144x256xbf16, #tpu.memory_space<vmem>>, vector<16x256xbf16>,
    %c255_i32_169 = arith.constant 255 : i32
    %219 = tpu.dynamic_rotate %196 by %c255_i32_169 dim 1 : vector<16x256xf32>, i32 -> vector<16x256xf32>
    %c80_170 = arith.constant 80 : index
    %c0_171 = arith.constant 0 : index
    %220 = vector.load %arg2[%c80_170, %c0_171] : memref<144x256xf32, #tpu.memory_space<vmem>>, vector<16x256xf32>
    %221 = arith.mulf %219, %220 : vector<16x256xf32>
    %222 = arith.truncf %221 : vector<16x256xf32> to vector<16x256xbf16>
    %c80_172 = arith.constant 80 : index
    %c0_173 = arith.constant 0 : index
    %223 = vector.load %arg15[%c80_172, %c0_173] : memref<144x256xbf16, #tpu.memory_space<vmem>>, vector<16x256xbf16>
    tpu.vector_store %arg15[%c80_172, %c0_173], %222 {strides = array<i32>} : memref<144x256xbf16, #tpu.memory_space<vmem>>, vector<16x256xbf16>,
    %c241_i32_174 = arith.constant 241 : i32
    %224 = tpu.dynamic_rotate %196 by %c241_i32_174 dim 1 : vector<16x256xf32>, i32 -> vector<16x256xf32>
    %c96_175 = arith.constant 96 : index
    %c0_176 = arith.constant 0 : index
    %225 = vector.load %arg2[%c96_175, %c0_176] : memref<144x256xf32, #tpu.memory_space<vmem>>, vector<16x256xf32>
    %226 = arith.mulf %224, %225 : vector<16x256xf32>
    %227 = arith.truncf %226 : vector<16x256xf32> to vector<16x256xbf16>
    %c96_177 = arith.constant 96 : index
    %c0_178 = arith.constant 0 : index
    %228 = vector.load %arg15[%c96_177, %c0_178] : memref<144x256xbf16, #tpu.memory_space<vmem>>, vector<16x256xbf16>
    tpu.vector_store %arg15[%c96_177, %c0_178], %227 {strides = array<i32>} : memref<144x256xbf16, #tpu.memory_space<vmem>>, vector<16x256xbf16>,
    %c240_i32_179 = arith.constant 240 : i32
    %229 = tpu.dynamic_rotate %196 by %c240_i32_179 dim 1 : vector<16x256xf32>, i32 -> vector<16x256xf32>
    %c112_180 = arith.constant 112 : index
    %c0_181 = arith.constant 0 : index
    %230 = vector.load %arg2[%c112_180, %c0_181] : memref<144x256xf32, #tpu.memory_space<vmem>>, vector<16x256xf32>
    %231 = arith.mulf %229, %230 : vector<16x256xf32>
    %232 = arith.truncf %231 : vector<16x256xf32> to vector<16x256xbf16>
    %c112_182 = arith.constant 112 : index
    %c0_183 = arith.constant 0 : index
    %233 = vector.load %arg15[%c112_182, %c0_183] : memref<144x256xbf16, #tpu.memory_space<vmem>>, vector<16x256xbf16>
    tpu.vector_store %arg15[%c112_182, %c0_183], %232 {strides = array<i32>} : memref<144x256xbf16, #tpu.memory_space<vmem>>, vector<16x256xbf16>,
    %c239_i32_184 = arith.constant 239 : i32
    %234 = tpu.dynamic_rotate %196 by %c239_i32_184 dim 1 : vector<16x256xf32>, i32 -> vector<16x256xf32>
    %c128_185 = arith.constant 128 : index
    %c0_186 = arith.constant 0 : index
    %235 = vector.load %arg2[%c128_185, %c0_186] : memref<144x256xf32, #tpu.memory_space<vmem>>, vector<16x256xf32>
    %236 = arith.mulf %234, %235 : vector<16x256xf32>
    %237 = arith.truncf %236 : vector<16x256xf32> to vector<16x256xbf16>
    %c128_187 = arith.constant 128 : index
    %c0_188 = arith.constant 0 : index
    %238 = vector.load %arg15[%c128_187, %c0_188] : memref<144x256xbf16, #tpu.memory_space<vmem>>, vector<16x256xbf16>
    tpu.vector_store %arg15[%c128_187, %c0_188], %237 {strides = array<i32>} : memref<144x256xbf16, #tpu.memory_space<vmem>>, vector<16x256xbf16>,
    %c0_189 = arith.constant 0 : index
    %c0_190 = arith.constant 0 : index
    %c0_191 = arith.constant 0 : index
    %239 = vector.load %arg9[%c0_189, %c0_190, %c0_191] : memref<4x16x144xbf16, #tpu.memory_space<vmem>>, vector<1x16x144xbf16>
    %240 = vector.shape_cast %239 : vector<1x16x144xbf16> to vector<16x144xbf16>
    %c0_192 = arith.constant 0 : index
    %c0_193 = arith.constant 0 : index
    %c0_194 = arith.constant 0 : index
    %241 = vector.load %arg10[%c0_192, %c0_193, %c0_194] : memref<4x16x1xf32, #tpu.memory_space<vmem>>, vector<1x16x1xf32>
    %242 = vector.shape_cast %241 : vector<1x16x1xf32> to vector<16x1xf32>
    %c0_195 = arith.constant 0 : index
    %c0_196 = arith.constant 0 : index
    %243 = vector.load %arg15[%c0_195, %c0_196] : memref<144x256xbf16, #tpu.memory_space<vmem>>, vector<144x256xbf16>
    %cst_197 = arith.constant dense<0.000000e+00> : vector<16x256xf32>
    %244 = tpu.matmul %240, %243, %cst_197 {dimension_numbers = #tpu.dot_dimension_numbers<[1], [0], [0], [1], [0, 0, 1, 1], [], []>} : vector<16x144xbf16>, vector<144x256xbf16>, vector<16x256xf32> -> vector<16x256xf32>
    %245 = vector.broadcast %242 : vector<16x1xf32> to vector<16x256xf32>
    %246 = arith.addf %244, %245 : vector<16x256xf32>
    %247 = vector.broadcast %75 : vector<1x1xf32> to vector<16x256xf32>
    %248 = arith.mulf %247, %246 : vector<16x256xf32>
    %249 = arith.addf %52, %248 : vector<16x256xf32>
    %cst_198 = arith.constant 0.000000e+00 : f32
    %250 = vector.broadcast %cst_198 : f32 to vector<16x256xf32>
    %251 = arith.maximumf %249, %250 : vector<16x256xf32>
    %c17_i32_199 = arith.constant 17 : i32
    %252 = tpu.dynamic_rotate %251 by %c17_i32_199 dim 1 : vector<16x256xf32>, i32 -> vector<16x256xf32>
    %c0_200 = arith.constant 0 : index
    %c0_201 = arith.constant 0 : index
    %253 = vector.load %arg2[%c0_200, %c0_201] : memref<144x256xf32, #tpu.memory_space<vmem>>, vector<16x256xf32>
    %254 = arith.mulf %252, %253 : vector<16x256xf32>
    %255 = arith.truncf %254 : vector<16x256xf32> to vector<16x256xbf16>
    %c0_202 = arith.constant 0 : index
    %c0_203 = arith.constant 0 : index
    %256 = vector.load %arg15[%c0_202, %c0_203] : memref<144x256xbf16, #tpu.memory_space<vmem>>, vector<16x256xbf16>
    tpu.vector_store %arg15[%c0_202, %c0_203], %255 {strides = array<i32>} : memref<144x256xbf16, #tpu.memory_space<vmem>>, vector<16x256xbf16>,
    %c16_i32_204 = arith.constant 16 : i32
    %257 = tpu.dynamic_rotate %251 by %c16_i32_204 dim 1 : vector<16x256xf32>, i32 -> vector<16x256xf32>
    %c16_205 = arith.constant 16 : index
    %c0_206 = arith.constant 0 : index
    %258 = vector.load %arg2[%c16_205, %c0_206] : memref<144x256xf32, #tpu.memory_space<vmem>>, vector<16x256xf32>
    %259 = arith.mulf %257, %258 : vector<16x256xf32>
    %260 = arith.truncf %259 : vector<16x256xf32> to vector<16x256xbf16>
    %c16_207 = arith.constant 16 : index
    %c0_208 = arith.constant 0 : index
    %261 = vector.load %arg15[%c16_207, %c0_208] : memref<144x256xbf16, #tpu.memory_space<vmem>>, vector<16x256xbf16>
    tpu.vector_store %arg15[%c16_207, %c0_208], %260 {strides = array<i32>} : memref<144x256xbf16, #tpu.memory_space<vmem>>, vector<16x256xbf16>,
    %c15_i32_209 = arith.constant 15 : i32
    %262 = tpu.dynamic_rotate %251 by %c15_i32_209 dim 1 : vector<16x256xf32>, i32 -> vector<16x256xf32>
    %c32_210 = arith.constant 32 : index
    %c0_211 = arith.constant 0 : index
    %263 = vector.load %arg2[%c32_210, %c0_211] : memref<144x256xf32, #tpu.memory_space<vmem>>, vector<16x256xf32>
    %264 = arith.mulf %262, %263 : vector<16x256xf32>
    %265 = arith.truncf %264 : vector<16x256xf32> to vector<16x256xbf16>
    %c32_212 = arith.constant 32 : index
    %c0_213 = arith.constant 0 : index
    %266 = vector.load %arg15[%c32_212, %c0_213] : memref<144x256xbf16, #tpu.memory_space<vmem>>, vector<16x256xbf16>
    tpu.vector_store %arg15[%c32_212, %c0_213], %265 {strides = array<i32>} : memref<144x256xbf16, #tpu.memory_space<vmem>>, vector<16x256xbf16>,
    %c1_i32_214 = arith.constant 1 : i32
    %267 = tpu.dynamic_rotate %251 by %c1_i32_214 dim 1 : vector<16x256xf32>, i32 -> vector<16x256xf32>
    %c48_215 = arith.constant 48 : index
    %c0_216 = arith.constant 0 : index
    %268 = vector.load %arg2[%c48_215, %c0_216] : memref<144x256xf32, #tpu.memory_space<vmem>>, vector<16x256xf32>
    %269 = arith.mulf %267, %268 : vector<16x256xf32>
    %270 = arith.truncf %269 : vector<16x256xf32> to vector<16x256xbf16>
    %c48_217 = arith.constant 48 : index
    %c0_218 = arith.constant 0 : index
    %271 = vector.load %arg15[%c48_217, %c0_218] : memref<144x256xbf16, #tpu.memory_space<vmem>>, vector<16x256xbf16>
    tpu.vector_store %arg15[%c48_217, %c0_218], %270 {strides = array<i32>} : memref<144x256xbf16, #tpu.memory_space<vmem>>, vector<16x256xbf16>,
    %272 = arith.truncf %251 : vector<16x256xf32> to vector<16x256xbf16>
    %c64_219 = arith.constant 64 : index
    %c0_220 = arith.constant 0 : index
    %273 = vector.load %arg15[%c64_219, %c0_220] : memref<144x256xbf16, #tpu.memory_space<vmem>>, vector<16x256xbf16>
    tpu.vector_store %arg15[%c64_219, %c0_220], %272 {strides = array<i32>} : memref<144x256xbf16, #tpu.memory_space<vmem>>, vector<16x256xbf16>,
    %c255_i32_221 = arith.constant 255 : i32
    %274 = tpu.dynamic_rotate %251 by %c255_i32_221 dim 1 : vector<16x256xf32>, i32 -> vector<16x256xf32>
    %c80_222 = arith.constant 80 : index
    %c0_223 = arith.constant 0 : index
    %275 = vector.load %arg2[%c80_222, %c0_223] : memref<144x256xf32, #tpu.memory_space<vmem>>, vector<16x256xf32>
    %276 = arith.mulf %274, %275 : vector<16x256xf32>
    %277 = arith.truncf %276 : vector<16x256xf32> to vector<16x256xbf16>
    %c80_224 = arith.constant 80 : index
    %c0_225 = arith.constant 0 : index
    %278 = vector.load %arg15[%c80_224, %c0_225] : memref<144x256xbf16, #tpu.memory_space<vmem>>, vector<16x256xbf16>
    tpu.vector_store %arg15[%c80_224, %c0_225], %277 {strides = array<i32>} : memref<144x256xbf16, #tpu.memory_space<vmem>>, vector<16x256xbf16>,
    %c241_i32_226 = arith.constant 241 : i32
    %279 = tpu.dynamic_rotate %251 by %c241_i32_226 dim 1 : vector<16x256xf32>, i32 -> vector<16x256xf32>
    %c96_227 = arith.constant 96 : index
    %c0_228 = arith.constant 0 : index
    %280 = vector.load %arg2[%c96_227, %c0_228] : memref<144x256xf32, #tpu.memory_space<vmem>>, vector<16x256xf32>
    %281 = arith.mulf %279, %280 : vector<16x256xf32>
    %282 = arith.truncf %281 : vector<16x256xf32> to vector<16x256xbf16>
    %c96_229 = arith.constant 96 : index
    %c0_230 = arith.constant 0 : index
    %283 = vector.load %arg15[%c96_229, %c0_230] : memref<144x256xbf16, #tpu.memory_space<vmem>>, vector<16x256xbf16>
    tpu.vector_store %arg15[%c96_229, %c0_230], %282 {strides = array<i32>} : memref<144x256xbf16, #tpu.memory_space<vmem>>, vector<16x256xbf16>,
    %c240_i32_231 = arith.constant 240 : i32
    %284 = tpu.dynamic_rotate %251 by %c240_i32_231 dim 1 : vector<16x256xf32>, i32 -> vector<16x256xf32>
    %c112_232 = arith.constant 112 : index
    %c0_233 = arith.constant 0 : index
    %285 = vector.load %arg2[%c112_232, %c0_233] : memref<144x256xf32, #tpu.memory_space<vmem>>, vector<16x256xf32>
    %286 = arith.mulf %284, %285 : vector<16x256xf32>
    %287 = arith.truncf %286 : vector<16x256xf32> to vector<16x256xbf16>
    %c112_234 = arith.constant 112 : index
    %c0_235 = arith.constant 0 : index
    %288 = vector.load %arg15[%c112_234, %c0_235] : memref<144x256xbf16, #tpu.memory_space<vmem>>, vector<16x256xbf16>
    tpu.vector_store %arg15[%c112_234, %c0_235], %287 {strides = array<i32>} : memref<144x256xbf16, #tpu.memory_space<vmem>>, vector<16x256xbf16>,
    %c239_i32_236 = arith.constant 239 : i32
    %289 = tpu.dynamic_rotate %251 by %c239_i32_236 dim 1 : vector<16x256xf32>, i32 -> vector<16x256xf32>
    %c128_237 = arith.constant 128 : index
    %c0_238 = arith.constant 0 : index
    %290 = vector.load %arg2[%c128_237, %c0_238] : memref<144x256xf32, #tpu.memory_space<vmem>>, vector<16x256xf32>
    %291 = arith.mulf %289, %290 : vector<16x256xf32>
    %292 = arith.truncf %291 : vector<16x256xf32> to vector<16x256xbf16>
    %c128_239 = arith.constant 128 : index
    %c0_240 = arith.constant 0 : index
    %293 = vector.load %arg15[%c128_239, %c0_240] : memref<144x256xbf16, #tpu.memory_space<vmem>>, vector<16x256xbf16>
    tpu.vector_store %arg15[%c128_239, %c0_240], %292 {strides = array<i32>} : memref<144x256xbf16, #tpu.memory_space<vmem>>, vector<16x256xbf16>,
    %c1_241 = arith.constant 1 : index
    %c0_242 = arith.constant 0 : index
    %c0_243 = arith.constant 0 : index
    %294 = vector.load %arg7[%c1_241, %c0_242, %c0_243] : memref<4x16x144xbf16, #tpu.memory_space<vmem>>, vector<1x16x144xbf16>
    %295 = vector.shape_cast %294 : vector<1x16x144xbf16> to vector<16x144xbf16>
    %c1_244 = arith.constant 1 : index
    %c0_245 = arith.constant 0 : index
    %c0_246 = arith.constant 0 : index
    %296 = vector.load %arg8[%c1_244, %c0_245, %c0_246] : memref<4x16x1xf32, #tpu.memory_space<vmem>>, vector<1x16x1xf32>
    %297 = vector.shape_cast %296 : vector<1x16x1xf32> to vector<16x1xf32>
    %c0_247 = arith.constant 0 : index
    %c0_248 = arith.constant 0 : index
    %298 = vector.load %arg15[%c0_247, %c0_248] : memref<144x256xbf16, #tpu.memory_space<vmem>>, vector<144x256xbf16>
    %cst_249 = arith.constant dense<0.000000e+00> : vector<16x256xf32>
    %299 = tpu.matmul %295, %298, %cst_249 {dimension_numbers = #tpu.dot_dimension_numbers<[1], [0], [0], [1], [0, 0, 1, 1], [], []>} : vector<16x144xbf16>, vector<144x256xbf16>, vector<16x256xf32> -> vector<16x256xf32>
    %300 = vector.broadcast %297 : vector<16x1xf32> to vector<16x256xf32>
    %301 = arith.addf %299, %300 : vector<16x256xf32>
    %cst_250 = arith.constant 0.000000e+00 : f32
    %302 = vector.broadcast %cst_250 : f32 to vector<16x256xf32>
    %303 = arith.maximumf %301, %302 : vector<16x256xf32>
    %c17_i32_251 = arith.constant 17 : i32
    %304 = tpu.dynamic_rotate %303 by %c17_i32_251 dim 1 : vector<16x256xf32>, i32 -> vector<16x256xf32>
    %c0_252 = arith.constant 0 : index
    %c0_253 = arith.constant 0 : index
    %305 = vector.load %arg2[%c0_252, %c0_253] : memref<144x256xf32, #tpu.memory_space<vmem>>, vector<16x256xf32>
    %306 = arith.mulf %304, %305 : vector<16x256xf32>
    %307 = arith.truncf %306 : vector<16x256xf32> to vector<16x256xbf16>
    %c0_254 = arith.constant 0 : index
    %c0_255 = arith.constant 0 : index
    %308 = vector.load %arg15[%c0_254, %c0_255] : memref<144x256xbf16, #tpu.memory_space<vmem>>, vector<16x256xbf16>
    tpu.vector_store %arg15[%c0_254, %c0_255], %307 {strides = array<i32>} : memref<144x256xbf16, #tpu.memory_space<vmem>>, vector<16x256xbf16>,
    %c16_i32_256 = arith.constant 16 : i32
    %309 = tpu.dynamic_rotate %303 by %c16_i32_256 dim 1 : vector<16x256xf32>, i32 -> vector<16x256xf32>
    %c16_257 = arith.constant 16 : index
    %c0_258 = arith.constant 0 : index
    %310 = vector.load %arg2[%c16_257, %c0_258] : memref<144x256xf32, #tpu.memory_space<vmem>>, vector<16x256xf32>
    %311 = arith.mulf %309, %310 : vector<16x256xf32>
    %312 = arith.truncf %311 : vector<16x256xf32> to vector<16x256xbf16>
    %c16_259 = arith.constant 16 : index
    %c0_260 = arith.constant 0 : index
    %313 = vector.load %arg15[%c16_259, %c0_260] : memref<144x256xbf16, #tpu.memory_space<vmem>>, vector<16x256xbf16>
    tpu.vector_store %arg15[%c16_259, %c0_260], %312 {strides = array<i32>} : memref<144x256xbf16, #tpu.memory_space<vmem>>, vector<16x256xbf16>,
    %c15_i32_261 = arith.constant 15 : i32
    %314 = tpu.dynamic_rotate %303 by %c15_i32_261 dim 1 : vector<16x256xf32>, i32 -> vector<16x256xf32>
    %c32_262 = arith.constant 32 : index
    %c0_263 = arith.constant 0 : index
    %315 = vector.load %arg2[%c32_262, %c0_263] : memref<144x256xf32, #tpu.memory_space<vmem>>, vector<16x256xf32>
    %316 = arith.mulf %314, %315 : vector<16x256xf32>
    %317 = arith.truncf %316 : vector<16x256xf32> to vector<16x256xbf16>
    %c32_264 = arith.constant 32 : index
    %c0_265 = arith.constant 0 : index
    %318 = vector.load %arg15[%c32_264, %c0_265] : memref<144x256xbf16, #tpu.memory_space<vmem>>, vector<16x256xbf16>
    tpu.vector_store %arg15[%c32_264, %c0_265], %317 {strides = array<i32>} : memref<144x256xbf16, #tpu.memory_space<vmem>>, vector<16x256xbf16>,
    %c1_i32_266 = arith.constant 1 : i32
    %319 = tpu.dynamic_rotate %303 by %c1_i32_266 dim 1 : vector<16x256xf32>, i32 -> vector<16x256xf32>
    %c48_267 = arith.constant 48 : index
    %c0_268 = arith.constant 0 : index
    %320 = vector.load %arg2[%c48_267, %c0_268] : memref<144x256xf32, #tpu.memory_space<vmem>>, vector<16x256xf32>
    %321 = arith.mulf %319, %320 : vector<16x256xf32>
    %322 = arith.truncf %321 : vector<16x256xf32> to vector<16x256xbf16>
    %c48_269 = arith.constant 48 : index
    %c0_270 = arith.constant 0 : index
    %323 = vector.load %arg15[%c48_269, %c0_270] : memref<144x256xbf16, #tpu.memory_space<vmem>>, vector<16x256xbf16>
    tpu.vector_store %arg15[%c48_269, %c0_270], %322 {strides = array<i32>} : memref<144x256xbf16, #tpu.memory_space<vmem>>, vector<16x256xbf16>,
    %324 = arith.truncf %303 : vector<16x256xf32> to vector<16x256xbf16>
    %c64_271 = arith.constant 64 : index
    %c0_272 = arith.constant 0 : index
    %325 = vector.load %arg15[%c64_271, %c0_272] : memref<144x256xbf16, #tpu.memory_space<vmem>>, vector<16x256xbf16>
    tpu.vector_store %arg15[%c64_271, %c0_272], %324 {strides = array<i32>} : memref<144x256xbf16, #tpu.memory_space<vmem>>, vector<16x256xbf16>,
    %c255_i32_273 = arith.constant 255 : i32
    %326 = tpu.dynamic_rotate %303 by %c255_i32_273 dim 1 : vector<16x256xf32>, i32 -> vector<16x256xf32>
    %c80_274 = arith.constant 80 : index
    %c0_275 = arith.constant 0 : index
    %327 = vector.load %arg2[%c80_274, %c0_275] : memref<144x256xf32, #tpu.memory_space<vmem>>, vector<16x256xf32>
    %328 = arith.mulf %326, %327 : vector<16x256xf32>
    %329 = arith.truncf %328 : vector<16x256xf32> to vector<16x256xbf16>
    %c80_276 = arith.constant 80 : index
    %c0_277 = arith.constant 0 : index
    %330 = vector.load %arg15[%c80_276, %c0_277] : memref<144x256xbf16, #tpu.memory_space<vmem>>, vector<16x256xbf16>
    tpu.vector_store %arg15[%c80_276, %c0_277], %329 {strides = array<i32>} : memref<144x256xbf16, #tpu.memory_space<vmem>>, vector<16x256xbf16>,
    %c241_i32_278 = arith.constant 241 : i32
    %331 = tpu.dynamic_rotate %303 by %c241_i32_278 dim 1 : vector<16x256xf32>, i32 -> vector<16x256xf32>
    %c96_279 = arith.constant 96 : index
    %c0_280 = arith.constant 0 : index
    %332 = vector.load %arg2[%c96_279, %c0_280] : memref<144x256xf32, #tpu.memory_space<vmem>>, vector<16x256xf32>
    %333 = arith.mulf %331, %332 : vector<16x256xf32>
    %334 = arith.truncf %333 : vector<16x256xf32> to vector<16x256xbf16>
    %c96_281 = arith.constant 96 : index
    %c0_282 = arith.constant 0 : index
    %335 = vector.load %arg15[%c96_281, %c0_282] : memref<144x256xbf16, #tpu.memory_space<vmem>>, vector<16x256xbf16>
    tpu.vector_store %arg15[%c96_281, %c0_282], %334 {strides = array<i32>} : memref<144x256xbf16, #tpu.memory_space<vmem>>, vector<16x256xbf16>,
    %c240_i32_283 = arith.constant 240 : i32
    %336 = tpu.dynamic_rotate %303 by %c240_i32_283 dim 1 : vector<16x256xf32>, i32 -> vector<16x256xf32>
    %c112_284 = arith.constant 112 : index
    %c0_285 = arith.constant 0 : index
    %337 = vector.load %arg2[%c112_284, %c0_285] : memref<144x256xf32, #tpu.memory_space<vmem>>, vector<16x256xf32>
    %338 = arith.mulf %336, %337 : vector<16x256xf32>
    %339 = arith.truncf %338 : vector<16x256xf32> to vector<16x256xbf16>
    %c112_286 = arith.constant 112 : index
    %c0_287 = arith.constant 0 : index
    %340 = vector.load %arg15[%c112_286, %c0_287] : memref<144x256xbf16, #tpu.memory_space<vmem>>, vector<16x256xbf16>
    tpu.vector_store %arg15[%c112_286, %c0_287], %339 {strides = array<i32>} : memref<144x256xbf16, #tpu.memory_space<vmem>>, vector<16x256xbf16>,
    %c239_i32_288 = arith.constant 239 : i32
    %341 = tpu.dynamic_rotate %303 by %c239_i32_288 dim 1 : vector<16x256xf32>, i32 -> vector<16x256xf32>
    %c128_289 = arith.constant 128 : index
    %c0_290 = arith.constant 0 : index
    %342 = vector.load %arg2[%c128_289, %c0_290] : memref<144x256xf32, #tpu.memory_space<vmem>>, vector<16x256xf32>
    %343 = arith.mulf %341, %342 : vector<16x256xf32>
    %344 = arith.truncf %343 : vector<16x256xf32> to vector<16x256xbf16>
    %c128_291 = arith.constant 128 : index
    %c0_292 = arith.constant 0 : index
    %345 = vector.load %arg15[%c128_291, %c0_292] : memref<144x256xbf16, #tpu.memory_space<vmem>>, vector<16x256xbf16>
    tpu.vector_store %arg15[%c128_291, %c0_292], %344 {strides = array<i32>} : memref<144x256xbf16, #tpu.memory_space<vmem>>, vector<16x256xbf16>,
    %c1_293 = arith.constant 1 : index
    %c0_294 = arith.constant 0 : index
    %c0_295 = arith.constant 0 : index
    %346 = vector.load %arg9[%c1_293, %c0_294, %c0_295] : memref<4x16x144xbf16, #tpu.memory_space<vmem>>, vector<1x16x144xbf16>
    %347 = vector.shape_cast %346 : vector<1x16x144xbf16> to vector<16x144xbf16>
    %c1_296 = arith.constant 1 : index
    %c0_297 = arith.constant 0 : index
    %c0_298 = arith.constant 0 : index
    %348 = vector.load %arg10[%c1_296, %c0_297, %c0_298] : memref<4x16x1xf32, #tpu.memory_space<vmem>>, vector<1x16x1xf32>
    %349 = vector.shape_cast %348 : vector<1x16x1xf32> to vector<16x1xf32>
    %c0_299 = arith.constant 0 : index
    %c0_300 = arith.constant 0 : index
    %350 = vector.load %arg15[%c0_299, %c0_300] : memref<144x256xbf16, #tpu.memory_space<vmem>>, vector<144x256xbf16>
    %cst_301 = arith.constant dense<0.000000e+00> : vector<16x256xf32>
    %351 = tpu.matmul %347, %350, %cst_301 {dimension_numbers = #tpu.dot_dimension_numbers<[1], [0], [0], [1], [0, 0, 1, 1], [], []>} : vector<16x144xbf16>, vector<144x256xbf16>, vector<16x256xf32> -> vector<16x256xf32>
    %352 = vector.broadcast %349 : vector<16x1xf32> to vector<16x256xf32>
    %353 = arith.addf %351, %352 : vector<16x256xf32>
    %354 = vector.broadcast %98 : vector<1x1xf32> to vector<16x256xf32>
    %355 = arith.mulf %354, %353 : vector<16x256xf32>
    %356 = arith.addf %251, %355 : vector<16x256xf32>
    %cst_302 = arith.constant 0.000000e+00 : f32
    %357 = vector.broadcast %cst_302 : f32 to vector<16x256xf32>
    %358 = arith.maximumf %356, %357 : vector<16x256xf32>
    %c17_i32_303 = arith.constant 17 : i32
    %359 = tpu.dynamic_rotate %358 by %c17_i32_303 dim 1 : vector<16x256xf32>, i32 -> vector<16x256xf32>
    %c0_304 = arith.constant 0 : index
    %c0_305 = arith.constant 0 : index
    %360 = vector.load %arg2[%c0_304, %c0_305] : memref<144x256xf32, #tpu.memory_space<vmem>>, vector<16x256xf32>
    %361 = arith.mulf %359, %360 : vector<16x256xf32>
    %362 = arith.truncf %361 : vector<16x256xf32> to vector<16x256xbf16>
    %c0_306 = arith.constant 0 : index
    %c0_307 = arith.constant 0 : index
    %363 = vector.load %arg15[%c0_306, %c0_307] : memref<144x256xbf16, #tpu.memory_space<vmem>>, vector<16x256xbf16>
    tpu.vector_store %arg15[%c0_306, %c0_307], %362 {strides = array<i32>} : memref<144x256xbf16, #tpu.memory_space<vmem>>, vector<16x256xbf16>,
    %c16_i32_308 = arith.constant 16 : i32
    %364 = tpu.dynamic_rotate %358 by %c16_i32_308 dim 1 : vector<16x256xf32>, i32 -> vector<16x256xf32>
    %c16_309 = arith.constant 16 : index
    %c0_310 = arith.constant 0 : index
    %365 = vector.load %arg2[%c16_309, %c0_310] : memref<144x256xf32, #tpu.memory_space<vmem>>, vector<16x256xf32>
    %366 = arith.mulf %364, %365 : vector<16x256xf32>
    %367 = arith.truncf %366 : vector<16x256xf32> to vector<16x256xbf16>
    %c16_311 = arith.constant 16 : index
    %c0_312 = arith.constant 0 : index
    %368 = vector.load %arg15[%c16_311, %c0_312] : memref<144x256xbf16, #tpu.memory_space<vmem>>, vector<16x256xbf16>
    tpu.vector_store %arg15[%c16_311, %c0_312], %367 {strides = array<i32>} : memref<144x256xbf16, #tpu.memory_space<vmem>>, vector<16x256xbf16>,
    %c15_i32_313 = arith.constant 15 : i32
    %369 = tpu.dynamic_rotate %358 by %c15_i32_313 dim 1 : vector<16x256xf32>, i32 -> vector<16x256xf32>
    %c32_314 = arith.constant 32 : index
    %c0_315 = arith.constant 0 : index
    %370 = vector.load %arg2[%c32_314, %c0_315] : memref<144x256xf32, #tpu.memory_space<vmem>>, vector<16x256xf32>
    %371 = arith.mulf %369, %370 : vector<16x256xf32>
    %372 = arith.truncf %371 : vector<16x256xf32> to vector<16x256xbf16>
    %c32_316 = arith.constant 32 : index
    %c0_317 = arith.constant 0 : index
    %373 = vector.load %arg15[%c32_316, %c0_317] : memref<144x256xbf16, #tpu.memory_space<vmem>>, vector<16x256xbf16>
    tpu.vector_store %arg15[%c32_316, %c0_317], %372 {strides = array<i32>} : memref<144x256xbf16, #tpu.memory_space<vmem>>, vector<16x256xbf16>,
    %c1_i32_318 = arith.constant 1 : i32
    %374 = tpu.dynamic_rotate %358 by %c1_i32_318 dim 1 : vector<16x256xf32>, i32 -> vector<16x256xf32>
    %c48_319 = arith.constant 48 : index
    %c0_320 = arith.constant 0 : index
    %375 = vector.load %arg2[%c48_319, %c0_320] : memref<144x256xf32, #tpu.memory_space<vmem>>, vector<16x256xf32>
    %376 = arith.mulf %374, %375 : vector<16x256xf32>
    %377 = arith.truncf %376 : vector<16x256xf32> to vector<16x256xbf16>
    %c48_321 = arith.constant 48 : index
    %c0_322 = arith.constant 0 : index
    %378 = vector.load %arg15[%c48_321, %c0_322] : memref<144x256xbf16, #tpu.memory_space<vmem>>, vector<16x256xbf16>
    tpu.vector_store %arg15[%c48_321, %c0_322], %377 {strides = array<i32>} : memref<144x256xbf16, #tpu.memory_space<vmem>>, vector<16x256xbf16>,
    %379 = arith.truncf %358 : vector<16x256xf32> to vector<16x256xbf16>
    %c64_323 = arith.constant 64 : index
    %c0_324 = arith.constant 0 : index
    %380 = vector.load %arg15[%c64_323, %c0_324] : memref<144x256xbf16, #tpu.memory_space<vmem>>, vector<16x256xbf16>
    tpu.vector_store %arg15[%c64_323, %c0_324], %379 {strides = array<i32>} : memref<144x256xbf16, #tpu.memory_space<vmem>>, vector<16x256xbf16>,
    %c255_i32_325 = arith.constant 255 : i32
    %381 = tpu.dynamic_rotate %358 by %c255_i32_325 dim 1 : vector<16x256xf32>, i32 -> vector<16x256xf32>
    %c80_326 = arith.constant 80 : index
    %c0_327 = arith.constant 0 : index
    %382 = vector.load %arg2[%c80_326, %c0_327] : memref<144x256xf32, #tpu.memory_space<vmem>>, vector<16x256xf32>
    %383 = arith.mulf %381, %382 : vector<16x256xf32>
    %384 = arith.truncf %383 : vector<16x256xf32> to vector<16x256xbf16>
    %c80_328 = arith.constant 80 : index
    %c0_329 = arith.constant 0 : index
    %385 = vector.load %arg15[%c80_328, %c0_329] : memref<144x256xbf16, #tpu.memory_space<vmem>>, vector<16x256xbf16>
    tpu.vector_store %arg15[%c80_328, %c0_329], %384 {strides = array<i32>} : memref<144x256xbf16, #tpu.memory_space<vmem>>, vector<16x256xbf16>,
    %c241_i32_330 = arith.constant 241 : i32
    %386 = tpu.dynamic_rotate %358 by %c241_i32_330 dim 1 : vector<16x256xf32>, i32 -> vector<16x256xf32>
    %c96_331 = arith.constant 96 : index
    %c0_332 = arith.constant 0 : index
    %387 = vector.load %arg2[%c96_331, %c0_332] : memref<144x256xf32, #tpu.memory_space<vmem>>, vector<16x256xf32>
    %388 = arith.mulf %386, %387 : vector<16x256xf32>
    %389 = arith.truncf %388 : vector<16x256xf32> to vector<16x256xbf16>
    %c96_333 = arith.constant 96 : index
    %c0_334 = arith.constant 0 : index
    %390 = vector.load %arg15[%c96_333, %c0_334] : memref<144x256xbf16, #tpu.memory_space<vmem>>, vector<16x256xbf16>
    tpu.vector_store %arg15[%c96_333, %c0_334], %389 {strides = array<i32>} : memref<144x256xbf16, #tpu.memory_space<vmem>>, vector<16x256xbf16>,
    %c240_i32_335 = arith.constant 240 : i32
    %391 = tpu.dynamic_rotate %358 by %c240_i32_335 dim 1 : vector<16x256xf32>, i32 -> vector<16x256xf32>
    %c112_336 = arith.constant 112 : index
    %c0_337 = arith.constant 0 : index
    %392 = vector.load %arg2[%c112_336, %c0_337] : memref<144x256xf32, #tpu.memory_space<vmem>>, vector<16x256xf32>
    %393 = arith.mulf %391, %392 : vector<16x256xf32>
    %394 = arith.truncf %393 : vector<16x256xf32> to vector<16x256xbf16>
    %c112_338 = arith.constant 112 : index
    %c0_339 = arith.constant 0 : index
    %395 = vector.load %arg15[%c112_338, %c0_339] : memref<144x256xbf16, #tpu.memory_space<vmem>>, vector<16x256xbf16>
    tpu.vector_store %arg15[%c112_338, %c0_339], %394 {strides = array<i32>} : memref<144x256xbf16, #tpu.memory_space<vmem>>, vector<16x256xbf16>,
    %c239_i32_340 = arith.constant 239 : i32
    %396 = tpu.dynamic_rotate %358 by %c239_i32_340 dim 1 : vector<16x256xf32>, i32 -> vector<16x256xf32>
    %c128_341 = arith.constant 128 : index
    %c0_342 = arith.constant 0 : index
    %397 = vector.load %arg2[%c128_341, %c0_342] : memref<144x256xf32, #tpu.memory_space<vmem>>, vector<16x256xf32>
    %398 = arith.mulf %396, %397 : vector<16x256xf32>
    %399 = arith.truncf %398 : vector<16x256xf32> to vector<16x256xbf16>
    %c128_343 = arith.constant 128 : index
    %c0_344 = arith.constant 0 : index
    %400 = vector.load %arg15[%c128_343, %c0_344] : memref<144x256xbf16, #tpu.memory_space<vmem>>, vector<16x256xbf16>
    tpu.vector_store %arg15[%c128_343, %c0_344], %399 {strides = array<i32>} : memref<144x256xbf16, #tpu.memory_space<vmem>>, vector<16x256xbf16>,
    %c2_345 = arith.constant 2 : index
    %c0_346 = arith.constant 0 : index
    %c0_347 = arith.constant 0 : index
    %401 = vector.load %arg7[%c2_345, %c0_346, %c0_347] : memref<4x16x144xbf16, #tpu.memory_space<vmem>>, vector<1x16x144xbf16>
    %402 = vector.shape_cast %401 : vector<1x16x144xbf16> to vector<16x144xbf16>
    %c2_348 = arith.constant 2 : index
    %c0_349 = arith.constant 0 : index
    %c0_350 = arith.constant 0 : index
    %403 = vector.load %arg8[%c2_348, %c0_349, %c0_350] : memref<4x16x1xf32, #tpu.memory_space<vmem>>, vector<1x16x1xf32>
    %404 = vector.shape_cast %403 : vector<1x16x1xf32> to vector<16x1xf32>
    %c0_351 = arith.constant 0 : index
    %c0_352 = arith.constant 0 : index
    %405 = vector.load %arg15[%c0_351, %c0_352] : memref<144x256xbf16, #tpu.memory_space<vmem>>, vector<144x256xbf16>
    %cst_353 = arith.constant dense<0.000000e+00> : vector<16x256xf32>
    %406 = tpu.matmul %402, %405, %cst_353 {dimension_numbers = #tpu.dot_dimension_numbers<[1], [0], [0], [1], [0, 0, 1, 1], [], []>} : vector<16x144xbf16>, vector<144x256xbf16>, vector<16x256xf32> -> vector<16x256xf32>
    %407 = vector.broadcast %404 : vector<16x1xf32> to vector<16x256xf32>
    %408 = arith.addf %406, %407 : vector<16x256xf32>
    %cst_354 = arith.constant 0.000000e+00 : f32
    %409 = vector.broadcast %cst_354 : f32 to vector<16x256xf32>
    %410 = arith.maximumf %408, %409 : vector<16x256xf32>
    %c17_i32_355 = arith.constant 17 : i32
    %411 = tpu.dynamic_rotate %410 by %c17_i32_355 dim 1 : vector<16x256xf32>, i32 -> vector<16x256xf32>
    %c0_356 = arith.constant 0 : index
    %c0_357 = arith.constant 0 : index
    %412 = vector.load %arg2[%c0_356, %c0_357] : memref<144x256xf32, #tpu.memory_space<vmem>>, vector<16x256xf32>
    %413 = arith.mulf %411, %412 : vector<16x256xf32>
    %414 = arith.truncf %413 : vector<16x256xf32> to vector<16x256xbf16>
    %c0_358 = arith.constant 0 : index
    %c0_359 = arith.constant 0 : index
    %415 = vector.load %arg15[%c0_358, %c0_359] : memref<144x256xbf16, #tpu.memory_space<vmem>>, vector<16x256xbf16>
    tpu.vector_store %arg15[%c0_358, %c0_359], %414 {strides = array<i32>} : memref<144x256xbf16, #tpu.memory_space<vmem>>, vector<16x256xbf16>,
    %c16_i32_360 = arith.constant 16 : i32
    %416 = tpu.dynamic_rotate %410 by %c16_i32_360 dim 1 : vector<16x256xf32>, i32 -> vector<16x256xf32>
    %c16_361 = arith.constant 16 : index
    %c0_362 = arith.constant 0 : index
    %417 = vector.load %arg2[%c16_361, %c0_362] : memref<144x256xf32, #tpu.memory_space<vmem>>, vector<16x256xf32>
    %418 = arith.mulf %416, %417 : vector<16x256xf32>
    %419 = arith.truncf %418 : vector<16x256xf32> to vector<16x256xbf16>
    %c16_363 = arith.constant 16 : index
    %c0_364 = arith.constant 0 : index
    %420 = vector.load %arg15[%c16_363, %c0_364] : memref<144x256xbf16, #tpu.memory_space<vmem>>, vector<16x256xbf16>
    tpu.vector_store %arg15[%c16_363, %c0_364], %419 {strides = array<i32>} : memref<144x256xbf16, #tpu.memory_space<vmem>>, vector<16x256xbf16>,
    %c15_i32_365 = arith.constant 15 : i32
    %421 = tpu.dynamic_rotate %410 by %c15_i32_365 dim 1 : vector<16x256xf32>, i32 -> vector<16x256xf32>
    %c32_366 = arith.constant 32 : index
    %c0_367 = arith.constant 0 : index
    %422 = vector.load %arg2[%c32_366, %c0_367] : memref<144x256xf32, #tpu.memory_space<vmem>>, vector<16x256xf32>
    %423 = arith.mulf %421, %422 : vector<16x256xf32>
    %424 = arith.truncf %423 : vector<16x256xf32> to vector<16x256xbf16>
    %c32_368 = arith.constant 32 : index
    %c0_369 = arith.constant 0 : index
    %425 = vector.load %arg15[%c32_368, %c0_369] : memref<144x256xbf16, #tpu.memory_space<vmem>>, vector<16x256xbf16>
    tpu.vector_store %arg15[%c32_368, %c0_369], %424 {strides = array<i32>} : memref<144x256xbf16, #tpu.memory_space<vmem>>, vector<16x256xbf16>,
    %c1_i32_370 = arith.constant 1 : i32
    %426 = tpu.dynamic_rotate %410 by %c1_i32_370 dim 1 : vector<16x256xf32>, i32 -> vector<16x256xf32>
    %c48_371 = arith.constant 48 : index
    %c0_372 = arith.constant 0 : index
    %427 = vector.load %arg2[%c48_371, %c0_372] : memref<144x256xf32, #tpu.memory_space<vmem>>, vector<16x256xf32>
    %428 = arith.mulf %426, %427 : vector<16x256xf32>
    %429 = arith.truncf %428 : vector<16x256xf32> to vector<16x256xbf16>
    %c48_373 = arith.constant 48 : index
    %c0_374 = arith.constant 0 : index
    %430 = vector.load %arg15[%c48_373, %c0_374] : memref<144x256xbf16, #tpu.memory_space<vmem>>, vector<16x256xbf16>
    tpu.vector_store %arg15[%c48_373, %c0_374], %429 {strides = array<i32>} : memref<144x256xbf16, #tpu.memory_space<vmem>>, vector<16x256xbf16>,
    %431 = arith.truncf %410 : vector<16x256xf32> to vector<16x256xbf16>
    %c64_375 = arith.constant 64 : index
    %c0_376 = arith.constant 0 : index
    %432 = vector.load %arg15[%c64_375, %c0_376] : memref<144x256xbf16, #tpu.memory_space<vmem>>, vector<16x256xbf16>
    tpu.vector_store %arg15[%c64_375, %c0_376], %431 {strides = array<i32>} : memref<144x256xbf16, #tpu.memory_space<vmem>>, vector<16x256xbf16>,
    %c255_i32_377 = arith.constant 255 : i32
    %433 = tpu.dynamic_rotate %410 by %c255_i32_377 dim 1 : vector<16x256xf32>, i32 -> vector<16x256xf32>
    %c80_378 = arith.constant 80 : index
    %c0_379 = arith.constant 0 : index
    %434 = vector.load %arg2[%c80_378, %c0_379] : memref<144x256xf32, #tpu.memory_space<vmem>>, vector<16x256xf32>
    %435 = arith.mulf %433, %434 : vector<16x256xf32>
    %436 = arith.truncf %435 : vector<16x256xf32> to vector<16x256xbf16>
    %c80_380 = arith.constant 80 : index
    %c0_381 = arith.constant 0 : index
    %437 = vector.load %arg15[%c80_380, %c0_381] : memref<144x256xbf16, #tpu.memory_space<vmem>>, vector<16x256xbf16>
    tpu.vector_store %arg15[%c80_380, %c0_381], %436 {strides = array<i32>} : memref<144x256xbf16, #tpu.memory_space<vmem>>, vector<16x256xbf16>,
    %c241_i32_382 = arith.constant 241 : i32
    %438 = tpu.dynamic_rotate %410 by %c241_i32_382 dim 1 : vector<16x256xf32>, i32 -> vector<16x256xf32>
    %c96_383 = arith.constant 96 : index
    %c0_384 = arith.constant 0 : index
    %439 = vector.load %arg2[%c96_383, %c0_384] : memref<144x256xf32, #tpu.memory_space<vmem>>, vector<16x256xf32>
    %440 = arith.mulf %438, %439 : vector<16x256xf32>
    %441 = arith.truncf %440 : vector<16x256xf32> to vector<16x256xbf16>
    %c96_385 = arith.constant 96 : index
    %c0_386 = arith.constant 0 : index
    %442 = vector.load %arg15[%c96_385, %c0_386] : memref<144x256xbf16, #tpu.memory_space<vmem>>, vector<16x256xbf16>
    tpu.vector_store %arg15[%c96_385, %c0_386], %441 {strides = array<i32>} : memref<144x256xbf16, #tpu.memory_space<vmem>>, vector<16x256xbf16>,
    %c240_i32_387 = arith.constant 240 : i32
    %443 = tpu.dynamic_rotate %410 by %c240_i32_387 dim 1 : vector<16x256xf32>, i32 -> vector<16x256xf32>
    %c112_388 = arith.constant 112 : index
    %c0_389 = arith.constant 0 : index
    %444 = vector.load %arg2[%c112_388, %c0_389] : memref<144x256xf32, #tpu.memory_space<vmem>>, vector<16x256xf32>
    %445 = arith.mulf %443, %444 : vector<16x256xf32>
    %446 = arith.truncf %445 : vector<16x256xf32> to vector<16x256xbf16>
    %c112_390 = arith.constant 112 : index
    %c0_391 = arith.constant 0 : index
    %447 = vector.load %arg15[%c112_390, %c0_391] : memref<144x256xbf16, #tpu.memory_space<vmem>>, vector<16x256xbf16>
    tpu.vector_store %arg15[%c112_390, %c0_391], %446 {strides = array<i32>} : memref<144x256xbf16, #tpu.memory_space<vmem>>, vector<16x256xbf16>,
    %c239_i32_392 = arith.constant 239 : i32
    %448 = tpu.dynamic_rotate %410 by %c239_i32_392 dim 1 : vector<16x256xf32>, i32 -> vector<16x256xf32>
    %c128_393 = arith.constant 128 : index
    %c0_394 = arith.constant 0 : index
    %449 = vector.load %arg2[%c128_393, %c0_394] : memref<144x256xf32, #tpu.memory_space<vmem>>, vector<16x256xf32>
    %450 = arith.mulf %448, %449 : vector<16x256xf32>
    %451 = arith.truncf %450 : vector<16x256xf32> to vector<16x256xbf16>
    %c128_395 = arith.constant 128 : index
    %c0_396 = arith.constant 0 : index
    %452 = vector.load %arg15[%c128_395, %c0_396] : memref<144x256xbf16, #tpu.memory_space<vmem>>, vector<16x256xbf16>
    tpu.vector_store %arg15[%c128_395, %c0_396], %451 {strides = array<i32>} : memref<144x256xbf16, #tpu.memory_space<vmem>>, vector<16x256xbf16>,
    %c2_397 = arith.constant 2 : index
    %c0_398 = arith.constant 0 : index
    %c0_399 = arith.constant 0 : index
    %453 = vector.load %arg9[%c2_397, %c0_398, %c0_399] : memref<4x16x144xbf16, #tpu.memory_space<vmem>>, vector<1x16x144xbf16>
    %454 = vector.shape_cast %453 : vector<1x16x144xbf16> to vector<16x144xbf16>
    %c2_400 = arith.constant 2 : index
    %c0_401 = arith.constant 0 : index
    %c0_402 = arith.constant 0 : index
    %455 = vector.load %arg10[%c2_400, %c0_401, %c0_402] : memref<4x16x1xf32, #tpu.memory_space<vmem>>, vector<1x16x1xf32>
    %456 = vector.shape_cast %455 : vector<1x16x1xf32> to vector<16x1xf32>
    %c0_403 = arith.constant 0 : index
    %c0_404 = arith.constant 0 : index
    %457 = vector.load %arg15[%c0_403, %c0_404] : memref<144x256xbf16, #tpu.memory_space<vmem>>, vector<144x256xbf16>
    %cst_405 = arith.constant dense<0.000000e+00> : vector<16x256xf32>
    %458 = tpu.matmul %454, %457, %cst_405 {dimension_numbers = #tpu.dot_dimension_numbers<[1], [0], [0], [1], [0, 0, 1, 1], [], []>} : vector<16x144xbf16>, vector<144x256xbf16>, vector<16x256xf32> -> vector<16x256xf32>
    %459 = vector.broadcast %456 : vector<16x1xf32> to vector<16x256xf32>
    %460 = arith.addf %458, %459 : vector<16x256xf32>
    %461 = vector.broadcast %121 : vector<1x1xf32> to vector<16x256xf32>
    %462 = arith.mulf %461, %460 : vector<16x256xf32>
    %463 = arith.addf %358, %462 : vector<16x256xf32>
    %cst_406 = arith.constant 0.000000e+00 : f32
    %464 = vector.broadcast %cst_406 : f32 to vector<16x256xf32>
    %465 = arith.maximumf %463, %464 : vector<16x256xf32>
    %c17_i32_407 = arith.constant 17 : i32
    %466 = tpu.dynamic_rotate %465 by %c17_i32_407 dim 1 : vector<16x256xf32>, i32 -> vector<16x256xf32>
    %c0_408 = arith.constant 0 : index
    %c0_409 = arith.constant 0 : index
    %467 = vector.load %arg2[%c0_408, %c0_409] : memref<144x256xf32, #tpu.memory_space<vmem>>, vector<16x256xf32>
    %468 = arith.mulf %466, %467 : vector<16x256xf32>
    %469 = arith.truncf %468 : vector<16x256xf32> to vector<16x256xbf16>
    %c0_410 = arith.constant 0 : index
    %c0_411 = arith.constant 0 : index
    %470 = vector.load %arg15[%c0_410, %c0_411] : memref<144x256xbf16, #tpu.memory_space<vmem>>, vector<16x256xbf16>
    tpu.vector_store %arg15[%c0_410, %c0_411], %469 {strides = array<i32>} : memref<144x256xbf16, #tpu.memory_space<vmem>>, vector<16x256xbf16>,
    %c16_i32_412 = arith.constant 16 : i32
    %471 = tpu.dynamic_rotate %465 by %c16_i32_412 dim 1 : vector<16x256xf32>, i32 -> vector<16x256xf32>
    %c16_413 = arith.constant 16 : index
    %c0_414 = arith.constant 0 : index
    %472 = vector.load %arg2[%c16_413, %c0_414] : memref<144x256xf32, #tpu.memory_space<vmem>>, vector<16x256xf32>
    %473 = arith.mulf %471, %472 : vector<16x256xf32>
    %474 = arith.truncf %473 : vector<16x256xf32> to vector<16x256xbf16>
    %c16_415 = arith.constant 16 : index
    %c0_416 = arith.constant 0 : index
    %475 = vector.load %arg15[%c16_415, %c0_416] : memref<144x256xbf16, #tpu.memory_space<vmem>>, vector<16x256xbf16>
    tpu.vector_store %arg15[%c16_415, %c0_416], %474 {strides = array<i32>} : memref<144x256xbf16, #tpu.memory_space<vmem>>, vector<16x256xbf16>,
    %c15_i32_417 = arith.constant 15 : i32
    %476 = tpu.dynamic_rotate %465 by %c15_i32_417 dim 1 : vector<16x256xf32>, i32 -> vector<16x256xf32>
    %c32_418 = arith.constant 32 : index
    %c0_419 = arith.constant 0 : index
    %477 = vector.load %arg2[%c32_418, %c0_419] : memref<144x256xf32, #tpu.memory_space<vmem>>, vector<16x256xf32>
    %478 = arith.mulf %476, %477 : vector<16x256xf32>
    %479 = arith.truncf %478 : vector<16x256xf32> to vector<16x256xbf16>
    %c32_420 = arith.constant 32 : index
    %c0_421 = arith.constant 0 : index
    %480 = vector.load %arg15[%c32_420, %c0_421] : memref<144x256xbf16, #tpu.memory_space<vmem>>, vector<16x256xbf16>
    tpu.vector_store %arg15[%c32_420, %c0_421], %479 {strides = array<i32>} : memref<144x256xbf16, #tpu.memory_space<vmem>>, vector<16x256xbf16>,
    %c1_i32_422 = arith.constant 1 : i32
    %481 = tpu.dynamic_rotate %465 by %c1_i32_422 dim 1 : vector<16x256xf32>, i32 -> vector<16x256xf32>
    %c48_423 = arith.constant 48 : index
    %c0_424 = arith.constant 0 : index
    %482 = vector.load %arg2[%c48_423, %c0_424] : memref<144x256xf32, #tpu.memory_space<vmem>>, vector<16x256xf32>
    %483 = arith.mulf %481, %482 : vector<16x256xf32>
    %484 = arith.truncf %483 : vector<16x256xf32> to vector<16x256xbf16>
    %c48_425 = arith.constant 48 : index
    %c0_426 = arith.constant 0 : index
    %485 = vector.load %arg15[%c48_425, %c0_426] : memref<144x256xbf16, #tpu.memory_space<vmem>>, vector<16x256xbf16>
    tpu.vector_store %arg15[%c48_425, %c0_426], %484 {strides = array<i32>} : memref<144x256xbf16, #tpu.memory_space<vmem>>, vector<16x256xbf16>,
    %486 = arith.truncf %465 : vector<16x256xf32> to vector<16x256xbf16>
    %c64_427 = arith.constant 64 : index
    %c0_428 = arith.constant 0 : index
    %487 = vector.load %arg15[%c64_427, %c0_428] : memref<144x256xbf16, #tpu.memory_space<vmem>>, vector<16x256xbf16>
    tpu.vector_store %arg15[%c64_427, %c0_428], %486 {strides = array<i32>} : memref<144x256xbf16, #tpu.memory_space<vmem>>, vector<16x256xbf16>,
    %c255_i32_429 = arith.constant 255 : i32
    %488 = tpu.dynamic_rotate %465 by %c255_i32_429 dim 1 : vector<16x256xf32>, i32 -> vector<16x256xf32>
    %c80_430 = arith.constant 80 : index
    %c0_431 = arith.constant 0 : index
    %489 = vector.load %arg2[%c80_430, %c0_431] : memref<144x256xf32, #tpu.memory_space<vmem>>, vector<16x256xf32>
    %490 = arith.mulf %488, %489 : vector<16x256xf32>
    %491 = arith.truncf %490 : vector<16x256xf32> to vector<16x256xbf16>
    %c80_432 = arith.constant 80 : index
    %c0_433 = arith.constant 0 : index
    %492 = vector.load %arg15[%c80_432, %c0_433] : memref<144x256xbf16, #tpu.memory_space<vmem>>, vector<16x256xbf16>
    tpu.vector_store %arg15[%c80_432, %c0_433], %491 {strides = array<i32>} : memref<144x256xbf16, #tpu.memory_space<vmem>>, vector<16x256xbf16>,
    %c241_i32_434 = arith.constant 241 : i32
    %493 = tpu.dynamic_rotate %465 by %c241_i32_434 dim 1 : vector<16x256xf32>, i32 -> vector<16x256xf32>
    %c96_435 = arith.constant 96 : index
    %c0_436 = arith.constant 0 : index
    %494 = vector.load %arg2[%c96_435, %c0_436] : memref<144x256xf32, #tpu.memory_space<vmem>>, vector<16x256xf32>
    %495 = arith.mulf %493, %494 : vector<16x256xf32>
    %496 = arith.truncf %495 : vector<16x256xf32> to vector<16x256xbf16>
    %c96_437 = arith.constant 96 : index
    %c0_438 = arith.constant 0 : index
    %497 = vector.load %arg15[%c96_437, %c0_438] : memref<144x256xbf16, #tpu.memory_space<vmem>>, vector<16x256xbf16>
    tpu.vector_store %arg15[%c96_437, %c0_438], %496 {strides = array<i32>} : memref<144x256xbf16, #tpu.memory_space<vmem>>, vector<16x256xbf16>,
    %c240_i32_439 = arith.constant 240 : i32
    %498 = tpu.dynamic_rotate %465 by %c240_i32_439 dim 1 : vector<16x256xf32>, i32 -> vector<16x256xf32>
    %c112_440 = arith.constant 112 : index
    %c0_441 = arith.constant 0 : index
    %499 = vector.load %arg2[%c112_440, %c0_441] : memref<144x256xf32, #tpu.memory_space<vmem>>, vector<16x256xf32>
    %500 = arith.mulf %498, %499 : vector<16x256xf32>
    %501 = arith.truncf %500 : vector<16x256xf32> to vector<16x256xbf16>
    %c112_442 = arith.constant 112 : index
    %c0_443 = arith.constant 0 : index
    %502 = vector.load %arg15[%c112_442, %c0_443] : memref<144x256xbf16, #tpu.memory_space<vmem>>, vector<16x256xbf16>
    tpu.vector_store %arg15[%c112_442, %c0_443], %501 {strides = array<i32>} : memref<144x256xbf16, #tpu.memory_space<vmem>>, vector<16x256xbf16>,
    %c239_i32_444 = arith.constant 239 : i32
    %503 = tpu.dynamic_rotate %465 by %c239_i32_444 dim 1 : vector<16x256xf32>, i32 -> vector<16x256xf32>
    %c128_445 = arith.constant 128 : index
    %c0_446 = arith.constant 0 : index
    %504 = vector.load %arg2[%c128_445, %c0_446] : memref<144x256xf32, #tpu.memory_space<vmem>>, vector<16x256xf32>
    %505 = arith.mulf %503, %504 : vector<16x256xf32>
    %506 = arith.truncf %505 : vector<16x256xf32> to vector<16x256xbf16>
    %c128_447 = arith.constant 128 : index
    %c0_448 = arith.constant 0 : index
    %507 = vector.load %arg15[%c128_447, %c0_448] : memref<144x256xbf16, #tpu.memory_space<vmem>>, vector<16x256xbf16>
    tpu.vector_store %arg15[%c128_447, %c0_448], %506 {strides = array<i32>} : memref<144x256xbf16, #tpu.memory_space<vmem>>, vector<16x256xbf16>,
    %c3_449 = arith.constant 3 : index
    %c0_450 = arith.constant 0 : index
    %c0_451 = arith.constant 0 : index
    %508 = vector.load %arg7[%c3_449, %c0_450, %c0_451] : memref<4x16x144xbf16, #tpu.memory_space<vmem>>, vector<1x16x144xbf16>
    %509 = vector.shape_cast %508 : vector<1x16x144xbf16> to vector<16x144xbf16>
    %c3_452 = arith.constant 3 : index
    %c0_453 = arith.constant 0 : index
    %c0_454 = arith.constant 0 : index
    %510 = vector.load %arg8[%c3_452, %c0_453, %c0_454] : memref<4x16x1xf32, #tpu.memory_space<vmem>>, vector<1x16x1xf32>
    %511 = vector.shape_cast %510 : vector<1x16x1xf32> to vector<16x1xf32>
    %c0_455 = arith.constant 0 : index
    %c0_456 = arith.constant 0 : index
    %512 = vector.load %arg15[%c0_455, %c0_456] : memref<144x256xbf16, #tpu.memory_space<vmem>>, vector<144x256xbf16>
    %cst_457 = arith.constant dense<0.000000e+00> : vector<16x256xf32>
    %513 = tpu.matmul %509, %512, %cst_457 {dimension_numbers = #tpu.dot_dimension_numbers<[1], [0], [0], [1], [0, 0, 1, 1], [], []>} : vector<16x144xbf16>, vector<144x256xbf16>, vector<16x256xf32> -> vector<16x256xf32>
    %514 = vector.broadcast %511 : vector<16x1xf32> to vector<16x256xf32>
    %515 = arith.addf %513, %514 : vector<16x256xf32>
    %cst_458 = arith.constant 0.000000e+00 : f32
    %516 = vector.broadcast %cst_458 : f32 to vector<16x256xf32>
    %517 = arith.maximumf %515, %516 : vector<16x256xf32>
    %c17_i32_459 = arith.constant 17 : i32
    %518 = tpu.dynamic_rotate %517 by %c17_i32_459 dim 1 : vector<16x256xf32>, i32 -> vector<16x256xf32>
    %c0_460 = arith.constant 0 : index
    %c0_461 = arith.constant 0 : index
    %519 = vector.load %arg2[%c0_460, %c0_461] : memref<144x256xf32, #tpu.memory_space<vmem>>, vector<16x256xf32>
    %520 = arith.mulf %518, %519 : vector<16x256xf32>
    %521 = arith.truncf %520 : vector<16x256xf32> to vector<16x256xbf16>
    %c0_462 = arith.constant 0 : index
    %c0_463 = arith.constant 0 : index
    %522 = vector.load %arg15[%c0_462, %c0_463] : memref<144x256xbf16, #tpu.memory_space<vmem>>, vector<16x256xbf16>
    tpu.vector_store %arg15[%c0_462, %c0_463], %521 {strides = array<i32>} : memref<144x256xbf16, #tpu.memory_space<vmem>>, vector<16x256xbf16>,
    %c16_i32_464 = arith.constant 16 : i32
    %523 = tpu.dynamic_rotate %517 by %c16_i32_464 dim 1 : vector<16x256xf32>, i32 -> vector<16x256xf32>
    %c16_465 = arith.constant 16 : index
    %c0_466 = arith.constant 0 : index
    %524 = vector.load %arg2[%c16_465, %c0_466] : memref<144x256xf32, #tpu.memory_space<vmem>>, vector<16x256xf32>
    %525 = arith.mulf %523, %524 : vector<16x256xf32>
    %526 = arith.truncf %525 : vector<16x256xf32> to vector<16x256xbf16>
    %c16_467 = arith.constant 16 : index
    %c0_468 = arith.constant 0 : index
    %527 = vector.load %arg15[%c16_467, %c0_468] : memref<144x256xbf16, #tpu.memory_space<vmem>>, vector<16x256xbf16>
    tpu.vector_store %arg15[%c16_467, %c0_468], %526 {strides = array<i32>} : memref<144x256xbf16, #tpu.memory_space<vmem>>, vector<16x256xbf16>,
    %c15_i32_469 = arith.constant 15 : i32
    %528 = tpu.dynamic_rotate %517 by %c15_i32_469 dim 1 : vector<16x256xf32>, i32 -> vector<16x256xf32>
    %c32_470 = arith.constant 32 : index
    %c0_471 = arith.constant 0 : index
    %529 = vector.load %arg2[%c32_470, %c0_471] : memref<144x256xf32, #tpu.memory_space<vmem>>, vector<16x256xf32>
    %530 = arith.mulf %528, %529 : vector<16x256xf32>
    %531 = arith.truncf %530 : vector<16x256xf32> to vector<16x256xbf16>
    %c32_472 = arith.constant 32 : index
    %c0_473 = arith.constant 0 : index
    %532 = vector.load %arg15[%c32_472, %c0_473] : memref<144x256xbf16, #tpu.memory_space<vmem>>, vector<16x256xbf16>
    tpu.vector_store %arg15[%c32_472, %c0_473], %531 {strides = array<i32>} : memref<144x256xbf16, #tpu.memory_space<vmem>>, vector<16x256xbf16>,
    %c1_i32_474 = arith.constant 1 : i32
    %533 = tpu.dynamic_rotate %517 by %c1_i32_474 dim 1 : vector<16x256xf32>, i32 -> vector<16x256xf32>
    %c48_475 = arith.constant 48 : index
    %c0_476 = arith.constant 0 : index
    %534 = vector.load %arg2[%c48_475, %c0_476] : memref<144x256xf32, #tpu.memory_space<vmem>>, vector<16x256xf32>
    %535 = arith.mulf %533, %534 : vector<16x256xf32>
    %536 = arith.truncf %535 : vector<16x256xf32> to vector<16x256xbf16>
    %c48_477 = arith.constant 48 : index
    %c0_478 = arith.constant 0 : index
    %537 = vector.load %arg15[%c48_477, %c0_478] : memref<144x256xbf16, #tpu.memory_space<vmem>>, vector<16x256xbf16>
    tpu.vector_store %arg15[%c48_477, %c0_478], %536 {strides = array<i32>} : memref<144x256xbf16, #tpu.memory_space<vmem>>, vector<16x256xbf16>,
    %538 = arith.truncf %517 : vector<16x256xf32> to vector<16x256xbf16>
    %c64_479 = arith.constant 64 : index
    %c0_480 = arith.constant 0 : index
    %539 = vector.load %arg15[%c64_479, %c0_480] : memref<144x256xbf16, #tpu.memory_space<vmem>>, vector<16x256xbf16>
    tpu.vector_store %arg15[%c64_479, %c0_480], %538 {strides = array<i32>} : memref<144x256xbf16, #tpu.memory_space<vmem>>, vector<16x256xbf16>,
    %c255_i32_481 = arith.constant 255 : i32
    %540 = tpu.dynamic_rotate %517 by %c255_i32_481 dim 1 : vector<16x256xf32>, i32 -> vector<16x256xf32>
    %c80_482 = arith.constant 80 : index
    %c0_483 = arith.constant 0 : index
    %541 = vector.load %arg2[%c80_482, %c0_483] : memref<144x256xf32, #tpu.memory_space<vmem>>, vector<16x256xf32>
    %542 = arith.mulf %540, %541 : vector<16x256xf32>
    %543 = arith.truncf %542 : vector<16x256xf32> to vector<16x256xbf16>
    %c80_484 = arith.constant 80 : index
    %c0_485 = arith.constant 0 : index
    %544 = vector.load %arg15[%c80_484, %c0_485] : memref<144x256xbf16, #tpu.memory_space<vmem>>, vector<16x256xbf16>
    tpu.vector_store %arg15[%c80_484, %c0_485], %543 {strides = array<i32>} : memref<144x256xbf16, #tpu.memory_space<vmem>>, vector<16x256xbf16>,
    %c241_i32_486 = arith.constant 241 : i32
    %545 = tpu.dynamic_rotate %517 by %c241_i32_486 dim 1 : vector<16x256xf32>, i32 -> vector<16x256xf32>
    %c96_487 = arith.constant 96 : index
    %c0_488 = arith.constant 0 : index
    %546 = vector.load %arg2[%c96_487, %c0_488] : memref<144x256xf32, #tpu.memory_space<vmem>>, vector<16x256xf32>
    %547 = arith.mulf %545, %546 : vector<16x256xf32>
    %548 = arith.truncf %547 : vector<16x256xf32> to vector<16x256xbf16>
    %c96_489 = arith.constant 96 : index
    %c0_490 = arith.constant 0 : index
    %549 = vector.load %arg15[%c96_489, %c0_490] : memref<144x256xbf16, #tpu.memory_space<vmem>>, vector<16x256xbf16>
    tpu.vector_store %arg15[%c96_489, %c0_490], %548 {strides = array<i32>} : memref<144x256xbf16, #tpu.memory_space<vmem>>, vector<16x256xbf16>,
    %c240_i32_491 = arith.constant 240 : i32
    %550 = tpu.dynamic_rotate %517 by %c240_i32_491 dim 1 : vector<16x256xf32>, i32 -> vector<16x256xf32>
    %c112_492 = arith.constant 112 : index
    %c0_493 = arith.constant 0 : index
    %551 = vector.load %arg2[%c112_492, %c0_493] : memref<144x256xf32, #tpu.memory_space<vmem>>, vector<16x256xf32>
    %552 = arith.mulf %550, %551 : vector<16x256xf32>
    %553 = arith.truncf %552 : vector<16x256xf32> to vector<16x256xbf16>
    %c112_494 = arith.constant 112 : index
    %c0_495 = arith.constant 0 : index
    %554 = vector.load %arg15[%c112_494, %c0_495] : memref<144x256xbf16, #tpu.memory_space<vmem>>, vector<16x256xbf16>
    tpu.vector_store %arg15[%c112_494, %c0_495], %553 {strides = array<i32>} : memref<144x256xbf16, #tpu.memory_space<vmem>>, vector<16x256xbf16>,
    %c239_i32_496 = arith.constant 239 : i32
    %555 = tpu.dynamic_rotate %517 by %c239_i32_496 dim 1 : vector<16x256xf32>, i32 -> vector<16x256xf32>
    %c128_497 = arith.constant 128 : index
    %c0_498 = arith.constant 0 : index
    %556 = vector.load %arg2[%c128_497, %c0_498] : memref<144x256xf32, #tpu.memory_space<vmem>>, vector<16x256xf32>
    %557 = arith.mulf %555, %556 : vector<16x256xf32>
    %558 = arith.truncf %557 : vector<16x256xf32> to vector<16x256xbf16>
    %c128_499 = arith.constant 128 : index
    %c0_500 = arith.constant 0 : index
    %559 = vector.load %arg15[%c128_499, %c0_500] : memref<144x256xbf16, #tpu.memory_space<vmem>>, vector<16x256xbf16>
    tpu.vector_store %arg15[%c128_499, %c0_500], %558 {strides = array<i32>} : memref<144x256xbf16, #tpu.memory_space<vmem>>, vector<16x256xbf16>,
    %c3_501 = arith.constant 3 : index
    %c0_502 = arith.constant 0 : index
    %c0_503 = arith.constant 0 : index
    %560 = vector.load %arg9[%c3_501, %c0_502, %c0_503] : memref<4x16x144xbf16, #tpu.memory_space<vmem>>, vector<1x16x144xbf16>
    %561 = vector.shape_cast %560 : vector<1x16x144xbf16> to vector<16x144xbf16>
    %c3_504 = arith.constant 3 : index
    %c0_505 = arith.constant 0 : index
    %c0_506 = arith.constant 0 : index
    %562 = vector.load %arg10[%c3_504, %c0_505, %c0_506] : memref<4x16x1xf32, #tpu.memory_space<vmem>>, vector<1x16x1xf32>
    %563 = vector.shape_cast %562 : vector<1x16x1xf32> to vector<16x1xf32>
    %c0_507 = arith.constant 0 : index
    %c0_508 = arith.constant 0 : index
    %564 = vector.load %arg15[%c0_507, %c0_508] : memref<144x256xbf16, #tpu.memory_space<vmem>>, vector<144x256xbf16>
    %cst_509 = arith.constant dense<0.000000e+00> : vector<16x256xf32>
    %565 = tpu.matmul %561, %564, %cst_509 {dimension_numbers = #tpu.dot_dimension_numbers<[1], [0], [0], [1], [0, 0, 1, 1], [], []>} : vector<16x144xbf16>, vector<144x256xbf16>, vector<16x256xf32> -> vector<16x256xf32>
    %566 = vector.broadcast %563 : vector<16x1xf32> to vector<16x256xf32>
    %567 = arith.addf %565, %566 : vector<16x256xf32>
    %568 = vector.broadcast %144 : vector<1x1xf32> to vector<16x256xf32>
    %569 = arith.mulf %568, %567 : vector<16x256xf32>
    %570 = arith.addf %465, %569 : vector<16x256xf32>
    %cst_510 = arith.constant 0.000000e+00 : f32
    %571 = vector.broadcast %cst_510 : f32 to vector<16x256xf32>
    %572 = arith.maximumf %570, %571 : vector<16x256xf32>
    %c0_511 = arith.constant 0 : index
    %c0_512 = arith.constant 0 : index
    %573 = vector.load %arg11[%c0_511, %c0_512] : memref<10x16xf32, #tpu.memory_space<vmem>>, vector<10x16xf32>
    %cst_513 = arith.constant dense<0.000000e+00> : vector<10x256xf32>
    %574 = tpu.matmul %573, %572, %cst_513 {dimension_numbers = #tpu.dot_dimension_numbers<[1], [0], [0], [1], [0, 0, 1, 1], [], []>} : vector<10x16xf32>, vector<16x256xf32>, vector<10x256xf32> -> vector<10x256xf32>
    %cst_514 = arith.constant dense<0.000000e+00> : vector<10xf32>
    %575 = vector.multi_reduction <add>, %574, %cst_514 [1] : vector<10x256xf32> to vector<10xf32>
    %576 = vector.shape_cast %575 : vector<10xf32> to vector<10x1xf32>
    %cst_515 = arith.constant 3.906250e-03 : f32
    %577 = vector.broadcast %cst_515 : f32 to vector<10x1xf32>
    %578 = arith.mulf %576, %577 : vector<10x1xf32>
    %c0_516 = arith.constant 0 : index
    %c0_517 = arith.constant 0 : index
    %579 = vector.load %arg12[%c0_516, %c0_517] : memref<10x1xf32, #tpu.memory_space<vmem>>, vector<10x1xf32>
    %580 = arith.addf %578, %579 : vector<10x1xf32>
    %c0_518 = arith.constant 0 : index
    %c0_519 = arith.constant 0 : index
    %581 = vector.load %arg13[%c0_518, %c0_519] : memref<10x1xf32, #tpu.memory_space<vmem>>, vector<10x1xf32>
    tpu.vector_store %arg13[%c0_518, %c0_519], %580 {strides = array<i32>} : memref<10x1xf32, #tpu.memory_space<vmem>>, vector<10x1xf32>,
    return
  }
  func.func @transform_0(%arg0: i32) -> (i32, i32) {
    %c0_i32 = arith.constant 0 : i32
    %c0_i32_0 = arith.constant 0 : i32
    %c0_i32_1 = arith.constant 0 : i32
    return %c0_i32, %c0_i32_0 : i32, i32
  }
  func.func @transform_1(%arg0: i32) -> (i32, i32) {
    %c0_i32 = arith.constant 0 : i32
    %c0_i32_0 = arith.constant 0 : i32
    %c0_i32_1 = arith.constant 0 : i32
    return %c0_i32, %c0_i32_0 : i32, i32
  }
  func.func @transform_2(%arg0: i32) -> (i32, i32) {
    %c0_i32 = arith.constant 0 : i32
    %c0_i32_0 = arith.constant 0 : i32
    %c0_i32_1 = arith.constant 0 : i32
    return %c0_i32, %c0_i32_0 : i32, i32
  }
  func.func @transform_3(%arg0: i32) -> (i32, i32) {
    %c0_i32 = arith.constant 0 : i32
    %c0_i32_0 = arith.constant 0 : i32
    %c0_i32_1 = arith.constant 0 : i32
    return %c0_i32, %c0_i32_0 : i32, i32
  }
  func.func @transform_4(%arg0: i32) -> (i32, i32, i32) {
    %c0_i32 = arith.constant 0 : i32
    %c0_i32_0 = arith.constant 0 : i32
    %c0_i32_1 = arith.constant 0 : i32
    %c0_i32_2 = arith.constant 0 : i32
    return %c0_i32, %c0_i32_0, %c0_i32_1 : i32, i32, i32
  }
  func.func @transform_5(%arg0: i32) -> (i32, i32, i32) {
    %c0_i32 = arith.constant 0 : i32
    %c0_i32_0 = arith.constant 0 : i32
    %c0_i32_1 = arith.constant 0 : i32
    %c0_i32_2 = arith.constant 0 : i32
    return %c0_i32, %c0_i32_0, %c0_i32_1 : i32, i32, i32
  }
  func.func @transform_6(%arg0: i32) -> (i32, i32, i32) {
    %c0_i32 = arith.constant 0 : i32
    %c0_i32_0 = arith.constant 0 : i32
    %c0_i32_1 = arith.constant 0 : i32
    %c0_i32_2 = arith.constant 0 : i32
    return %c0_i32, %c0_i32_0, %c0_i32_1 : i32, i32, i32
  }
  func.func @transform_7(%arg0: i32) -> (i32, i32, i32) {
    %c0_i32 = arith.constant 0 : i32
    %c0_i32_0 = arith.constant 0 : i32
    %c0_i32_1 = arith.constant 0 : i32
    %c0_i32_2 = arith.constant 0 : i32
    return %c0_i32, %c0_i32_0, %c0_i32_1 : i32, i32, i32
  }
  func.func @transform_8(%arg0: i32) -> (i32, i32, i32) {
    %c0_i32 = arith.constant 0 : i32
    %c0_i32_0 = arith.constant 0 : i32
    %c0_i32_1 = arith.constant 0 : i32
    %c0_i32_2 = arith.constant 0 : i32
    return %c0_i32, %c0_i32_0, %c0_i32_1 : i32, i32, i32
  }
  func.func @transform_9(%arg0: i32) -> (i32, i32, i32) {
    %c0_i32 = arith.constant 0 : i32
    %c0_i32_0 = arith.constant 0 : i32
    %c0_i32_1 = arith.constant 0 : i32
    %c0_i32_2 = arith.constant 0 : i32
    return %c0_i32, %c0_i32_0, %c0_i32_1 : i32, i32, i32
  }
  func.func @transform_10(%arg0: i32) -> (i32, i32) {
    %c0_i32 = arith.constant 0 : i32
    %c0_i32_0 = arith.constant 0 : i32
    %c0_i32_1 = arith.constant 0 : i32
    return %c0_i32, %c0_i32_0 : i32, i32
  }
  func.func @transform_11(%arg0: i32) -> (i32, i32) {
    %c0_i32 = arith.constant 0 : i32
    %c0_i32_0 = arith.constant 0 : i32
    %c0_i32_1 = arith.constant 0 : i32
    return %c0_i32, %c0_i32_0 : i32, i32
  }
  func.func @transform_12(%arg0: i32) -> (i32, i32) {
    %c0_i32 = arith.constant 0 : i32
    %c0_i32_0 = arith.constant 0 : i32
    %c0_i32_1 = arith.constant 0 : i32
    return %c0_i32, %c0_i32_0 : i32, i32
  }
  func.func @transform_13(%arg0: i32) -> (i32, i32, i32) {
    %c0_i32 = arith.constant 0 : i32
    %c0_i32_0 = arith.constant 0 : i32
    %c0_i32_1 = arith.constant 0 : i32
    %c0_i32_2 = arith.constant 0 : i32
    return %c0_i32, %c0_i32_0, %c0_i32_1 : i32, i32, i32
  }
}

</mosaic_0001>

<llo_original>
// kernel: squeeze.1
$region0: #{squeeze.1}
  %s0 = inlined_call_operand.hbm [shape: f32[1,3,16,16], index: 0, kind: input, shape index: {}]
  %s1 = inlined_call_operand.vmem [shape: f32[3,256], index: 1, kind: output, shape index: {}]
  $region1: #{squeeze.1} parent=0
    #allocation0 [shape = 'u8[24576]{0}', space=vmem, size = 0x6000, scoped, tag = 'operand span for operand 0']
    #allocation1 [shape = 's32[1]{0}', space=sflag, size = 0x4, scoped, tag = 'scoped memory for squeeze.1']
    #allocation2 [shape = 'u8[8192]{0}', space=vmem, size = 0x2000, scoped, tag = 'scoped mem for output reshape']
    %2 = vsyncpa [#allocation1], 0
    %s4 = ssub.s32 768, 768
    %5 = vsyncadd [#allocation1], %s4
    %s7 = sshll.u32 [#allocation0], 4
    %s8 = int_to_ptr.vmem [resolvable:$true] %s7
    %10 = dma.hbm_to_vmem [thread:$0]  %s0, 768, %s8, [#allocation1]
    %11 = dma.done [#allocation1], 768
    %v12 = vld [vmem:[#allocation0] ss:$8 sm:$0xf]
    %s13 = smov 48
    %v14 = vld [vmem:[#allocation0] ss:$8 sm:%s13]
    %vm15 = vcmask 1045508
    %v16 = vsel %vm15, %v14, %v12
    %vm17 = vcmask 130048
    %18 = vst.msk [vmem:[#allocation2] ss:$8 sm:$0x3] %vm17, %v16
    %s19 = scalar_lea.vmem [#allocation2], 4294967281
    %20 = vst.msk [vmem:[%s19] ss:$8 sm:$0xc] %vm17, %v16
    %s21 = scalar_lea.vmem [#allocation2], 4294967266
    %22 = vst.msk [vmem:[%s21] ss:$8 sm:$0x30] %vm17, %v16
    %s23 = scalar_lea.vmem [#allocation0], 7
    %s24 = smov 3
    %v25 = vld [vmem:[%s23] ss:$16 sm:%s24]
    %s26 = scalar_lea.vmem [#allocation0], 87
    %s27 = smov 12
    %v28 = vld [vmem:[%s26] ss:$-24 sm:%s27]
    %vm29 = vcmask 1043458
    %v30 = vsel %vm29, %v28, %v25
    %s31 = scalar_lea.vmem [#allocation0], 4294967263
    %s32 = smov 48
    %v33 = vld [vmem:[%s31] ss:$16 sm:%s32]
    %vm34 = vcmask 1045508
    %v35 = vsel %vm34, %v33, %v30
    %36 = vrot.lane.b32.xlu0 %v35, 112
    %v37 = vpop.permute.xlu0 %36
    %vm38 = vcmask 1048448
    %39 = vst.msk [vmem:[#allocation2] sm:$0x7] %vm38, %v37
    %s40 = scalar_lea.vmem [#allocation2], 5
    %41 = vst.msk [vmem:[%s40] sm:$0x38] %vm38, %v37
    %s42 = scalar_lea.vmem [#allocation0], 6
    %s43 = smov 3
    %v44 = vld [vmem:[%s42] ss:$16 sm:%s43]
    %s45 = scalar_lea.vmem [#allocation0], 86
    %s46 = smov 12
    %v47 = vld [vmem:[%s45] ss:$-24 sm:%s46]
    %vm48 = vcmask 1043458
    %v49 = vsel %vm48, %v47, %v44
    %s50 = scalar_lea.vmem [#allocation0], 4294967262
    %s51 = smov 48
    %v52 = vld [vmem:[%s50] ss:$16 sm:%s51]
    %vm53 = vcmask 1045508
    %v54 = vsel %vm53, %v52, %v49
    %55 = vrot.lane.b32.xlu0 %v54, 96
    %v56 = vpop.permute.xlu0 %55
    %vm57 = vcmask 917248
    %58 = vst.msk [vmem:[#allocation2] sm:$0x7] %vm57, %v56
    %s59 = scalar_lea.vmem [#allocation2], 5
    %60 = vst.msk [vmem:[%s59] sm:$0x38] %vm57, %v56
    %s61 = scalar_lea.vmem [#allocation0], 5
    %s62 = smov 3
    %v63 = vld [vmem:[%s61] ss:$16 sm:%s62]
    %s64 = scalar_lea.vmem [#allocation0], 85
    %s65 = smov 12
    %v66 = vld [vmem:[%s64] ss:$-24 sm:%s65]
    %vm67 = vcmask 1043458
    %v68 = vsel %vm67, %v66, %v63
    %s69 = scalar_lea.vmem [#allocation0], 4294967261
    %s70 = smov 48
    %v71 = vld [vmem:[%s69] ss:$16 sm:%s70]
    %vm72 = vcmask 1045508
    %v73 = vsel %vm72, %v71, %v68
    %74 = vrot.lane.b32.xlu0 %v73, 80
    %v75 = vpop.permute.xlu0 %74
    %vm76 = vcmask 786048
    %77 = vst.msk [vmem:[#allocation2] sm:$0x7] %vm76, %v75
    %s78 = scalar_lea.vmem [#allocation2], 5
    %79 = vst.msk [vmem:[%s78] sm:$0x38] %vm76, %v75
    %s80 = scalar_lea.vmem [#allocation0], 4
    %s81 = smov 3
    %v82 = vld [vmem:[%s80] ss:$16 sm:%s81]
    %s83 = scalar_lea.vmem [#allocation0], 84
    %s84 = smov 12
    %v85 = vld [vmem:[%s83] ss:$-24 sm:%s84]
    %vm86 = vcmask 1043458
    %v87 = vsel %vm86, %v85, %v82
    %s88 = scalar_lea.vmem [#allocation0], 4294967260
    %s89 = smov 48
    %v90 = vld [vmem:[%s88] ss:$16 sm:%s89]
    %vm91 = vcmask 1045508
    %v92 = vsel %vm91, %v90, %v87
    %93 = vrot.lane.b32.xlu0 %v92, 64
    %v94 = vpop.permute.xlu0 %93
    %vm95 = vcmask 654848
    %96 = vst.msk [vmem:[#allocation2] sm:$0x7] %vm95, %v94
    %s97 = scalar_lea.vmem [#allocation2], 5
    %98 = vst.msk [vmem:[%s97] sm:$0x38] %vm95, %v94
    %s99 = scalar_lea.vmem [#allocation0], 3
    %s100 = smov 3
    %v101 = vld [vmem:[%s99] ss:$16 sm:%s100]
    %s102 = scalar_lea.vmem [#allocation0], 83
    %s103 = smov 12
    %v104 = vld [vmem:[%s102] ss:$-24 sm:%s103]
    %vm105 = vcmask 1043458
    %v106 = vsel %vm105, %v104, %v101
    %s107 = scalar_lea.vmem [#allocation0], 4294967259
    %s108 = smov 48
    %v109 = vld [vmem:[%s107] ss:$16 sm:%s108]
    %vm110 = vcmask 1045508
    %v111 = vsel %vm110, %v109, %v106
    %112 = vrot.lane.b32.xlu0 %v111, 48
    %v113 = vpop.permute.xlu0 %112
    %vm114 = vcmask 523648
    %115 = vst.msk [vmem:[#allocation2] sm:$0x7] %vm114, %v113
    %s116 = scalar_lea.vmem [#allocation2], 5
    %117 = vst.msk [vmem:[%s116] sm:$0x38] %vm114, %v113
    %s118 = scalar_lea.vmem [#allocation0], 2
    %s119 = smov 3
    %v120 = vld [vmem:[%s118] ss:$16 sm:%s119]
    %s121 = scalar_lea.vmem [#allocation0], 82
    %s122 = smov 12
    %v123 = vld [vmem:[%s121] ss:$-24 sm:%s122]
    %vm124 = vcmask 1043458
    %v125 = vsel %vm124, %v123, %v120
    %s126 = scalar_lea.vmem [#allocation0], 4294967258
    %s127 = smov 48
    %v128 = vld [vmem:[%s126] ss:$16 sm:%s127]
    %vm129 = vcmask 1045508
    %v130 = vsel %vm129, %v128, %v125
    %131 = vrot.lane.b32.xlu0 %v130, 32
    %v132 = vpop.permute.xlu0 %131
    %vm133 = vcmask 392448
    %134 = vst.msk [vmem:[#allocation2] sm:$0x7] %vm133, %v132
    %s135 = scalar_lea.vmem [#allocation2], 5
    %136 = vst.msk [vmem:[%s135] sm:$0x38] %vm133, %v132
    %s137 = scalar_lea.vmem [#allocation0], 1
    %s138 = smov 3
    %v139 = vld [vmem:[%s137] ss:$16 sm:%s138]
    %s140 = scalar_lea.vmem [#allocation0], 81
    %s141 = smov 12
    %v142 = vld [vmem:[%s140] ss:$-24 sm:%s141]
    %vm143 = vcmask 1043458
    %v144 = vsel %vm143, %v142, %v139
    %s145 = scalar_lea.vmem [#allocation0], 4294967257
    %s146 = smov 48
    %v147 = vld [vmem:[%s145] ss:$16 sm:%s146]
    %vm148 = vcmask 1045508
    %v149 = vsel %vm148, %v147, %v144
    %150 = vrot.lane.b32.xlu0 %v149, 16
    %v151 = vpop.permute.xlu0 %150
    %vm152 = vcmask 261248
    %153 = vst.msk [vmem:[#allocation2] sm:$0x7] %vm152, %v151
    %s154 = scalar_lea.vmem [#allocation2], 5
    %155 = vst.msk [vmem:[%s154] sm:$0x38] %vm152, %v151
    %s157 = sshllo.u32 0, 4
    %v159 = vld [vmem:[#allocation2] sm:%s157]
    %s160 = sshllo.u32 0, 4
    %161 = vst [vmem:[%s1] sm:%s160] %v159
    %s162 = scalar_lea.vmem [#allocation2], 8
    %v163 = vld [vmem:[%s162] sm:%s157]
    %s164 = sshllo.u32 0, 4
    %s165 = scalar_lea.vmem %s1, 4
    %166 = vst [vmem:[%s165] sm:%s164] %v163
    %167 = vsyncpa [#allocation1], 1

// kernel: policy_net_forward.1
$region0: #{policy_net_forward.1}
  #allocation0 [shape = 'u32[]', space=smem, size = 0x4, offset = 0x4, fixed_abs, tag = 'smem constant byte address 0x4 - core index']
  #allocation1 [shape = 'u32[144,128]{1,0:T(1,128)}', space=vmem, size = 0x12000, scoped, tag = 'internal scratch']
  #allocation2 [shape = 'bf16[144,256]{1,0:T(16,128)(2,1)}', space=vmem, size = 0x12000, scoped, tag = 'scratch operand']
  %s0 = inlined_call_operand.vmem [shape: f32[16,256], index: 0, kind: input, shape index: {}]
  %s1 = inlined_call_operand.vmem [shape: f32[144,256], index: 1, kind: input, shape index: {}]
  %s2 = inlined_call_operand.vmem [shape: bf16[32,144], index: 2, kind: input, shape index: {}]
  %s3 = inlined_call_operand.vmem [shape: f32[32,1], index: 3, kind: input, shape index: {}]
  %s4 = inlined_call_operand.vmem [shape: f32[4,1,16], index: 4, kind: input, shape index: {}]
  %s5 = inlined_call_operand.vmem [shape: f32[4,1,1], index: 5, kind: input, shape index: {}]
  %s6 = inlined_call_operand.hbm [shape: bf16[4,16,144], index: 6, kind: input, shape index: {}]
  %s7 = inlined_call_operand.vmem [shape: f32[4,16,1], index: 7, kind: input, shape index: {}]
  %s8 = inlined_call_operand.hbm [shape: bf16[4,16,144], index: 8, kind: input, shape index: {}]
  %s9 = inlined_call_operand.vmem [shape: f32[4,16,1], index: 9, kind: input, shape index: {}]
  %s10 = inlined_call_operand.hbm [shape: f32[10,16], index: 10, kind: input, shape index: {}]
  %s11 = inlined_call_operand.vmem [shape: f32[10,1], index: 11, kind: input, shape index: {}]
  %s12 = inlined_call_operand.vmem [shape: f32[10,1], index: 12, kind: output, shape index: {0}]
  %s13 = inlined_call_operand.vmem [shape: f32[4,1,1], index: 13, kind: output, shape index: {1}]
  %14 = xla_tuple %s12, %s13
  %s15 = sld [smem:[#allocation0]]
  $region78: #{policy_net_forward.1} parent=0
    _
  %s17 = ssub.s32 1, %s15
  %s18 = scalar_select 0, %s17, %s15
  $region1: #{policy_net_forward.1} parent=0
    #allocation3 [shape = 'u8[32768]{0}', space=vmem, size = 0x8000, scoped, tag = 'input window, operand 6, single buffered']
    #allocation4 [shape = 's32[1]{0}', space=sflag, size = 0x4, scoped, tag = 'scoped memory for policy_net_forward.1']
    #allocation5 [shape = 'u8[32768]{0}', space=vmem, size = 0x8000, scoped, tag = 'input window, operand 8, single buffered']
    #allocation6 [shape = 's32[1]{0}', space=sflag, size = 0x4, scoped, tag = 'scoped memory for policy_net_forward.1']
    #allocation7 [shape = 'u8[8192]{0}', space=vmem, size = 0x2000, scoped, tag = 'input window, operand 10, single buffered']
    %19 = vsyncpa [#allocation4], 0
    %20 = vsyncpa [#allocation6], 0
    // Predicated region
    $region2: #{policy_net_forward.1} parent=1 // pred_check
      _
    $region3: #{policy_net_forward.1} parent=1 // pred_check_branch
      %22 = sbr.rel (0) target = $region5
    $region4: #{policy_net_forward.1} parent=1 // pred_region
      _
    $region5: #{policy_net_forward.1} parent=1 // pred_fallthru
      _
    // Predicated region
    $region6: #{policy_net_forward.1} parent=1 // pred_check
      _
    $region7: #{policy_net_forward.1} parent=1 // pred_check_branch
      %24 = sbr.rel (0) target = $region9
    $region8: #{policy_net_forward.1} parent=1 // pred_region
      _
    $region9: #{policy_net_forward.1} parent=1 // pred_fallthru
      _
    // Predicated region
    $region10: #{policy_net_forward.1} parent=1 // pred_check
      _
    $region11: #{policy_net_forward.1} parent=1 // pred_check_branch
      %26 = sbr.rel (0) target = $region13
    $region12: #{policy_net_forward.1} parent=1 // pred_region
      _
    $region13: #{policy_net_forward.1} parent=1 // pred_fallthru
      _
    // Predicated region
    $region14: #{policy_net_forward.1} parent=1 // pred_check
      _
    $region15: #{policy_net_forward.1} parent=1 // pred_check_branch
      %28 = sbr.rel (0) target = $region17
    $region16: #{policy_net_forward.1} parent=1 // pred_region
      _
    $region17: #{policy_net_forward.1} parent=1 // pred_fallthru
      _
    // Predicated region
    $region18: #{policy_net_forward.1} parent=1 // pred_check
      _
    $region19: #{policy_net_forward.1} parent=1 // pred_check_branch
      %30 = sbr.rel (0) target = $region21
    $region20: #{policy_net_forward.1} parent=1 // pred_region
      _
    $region21: #{policy_net_forward.1} parent=1 // pred_fallthru
      _
    // Predicated region
    $region22: #{policy_net_forward.1} parent=1 // pred_check
      _
    $region23: #{policy_net_forward.1} parent=1 // pred_check_branch
      %32 = sbr.rel (0) target = $region25
    $region24: #{policy_net_forward.1} parent=1 // pred_region
      _
    $region25: #{policy_net_forward.1} parent=1 // pred_fallthru
      _
    // Predicated region
    $region26: #{policy_net_forward.1} parent=1 // pred_check
      _
    $region27: #{policy_net_forward.1} parent=1 // pred_check_branch
      %34 = sbr.rel (0) target = $region29
    $region28: #{policy_net_forward.1} parent=1 // pred_region
      %s36 = ssub.s32 1024, 1024
      %37 = vsyncadd [#allocation4], %s36
      %s38 = sshll.u32 [#allocation3], 4
      %s39 = int_to_ptr.vmem [resolvable:$true] %s38
      %44 = dma.hbm_to_vmem [thread:$0]  %s6, 1024, %s39, [#allocation4], 128, 128, 8
    $region29: #{policy_net_forward.1} parent=1 // pred_fallthru
      _
    // Predicated region
    $region30: #{policy_net_forward.1} parent=1 // pred_check
      _
    $region31: #{policy_net_forward.1} parent=1 // pred_check_branch
      %46 = sbr.rel (0) target = $region33
    $region32: #{policy_net_forward.1} parent=1 // pred_region
      _
    $region33: #{policy_net_forward.1} parent=1 // pred_fallthru
      _
    // Predicated region
    $region34: #{policy_net_forward.1} parent=1 // pred_check
      _
    $region35: #{policy_net_forward.1} parent=1 // pred_check_branch
      %48 = sbr.rel (0) target = $region37
    $region36: #{policy_net_forward.1} parent=1 // pred_region
      %s50 = ssub.s32 1024, 1024
      %51 = vsyncadd [#allocation6], %s50
      %s52 = sshll.u32 [#allocation5], 4
      %s53 = int_to_ptr.vmem [resolvable:$true] %s52
      %58 = dma.hbm_to_vmem [thread:$0]  %s8, 1024, %s53, [#allocation6], 128, 128, 8
    $region37: #{policy_net_forward.1} parent=1 // pred_fallthru
      _
    // Predicated region
    $region38: #{policy_net_forward.1} parent=1 // pred_check
      _
    $region39: #{policy_net_forward.1} parent=1 // pred_check_branch
      %60 = sbr.rel (0) target = $region41
    $region40: #{policy_net_forward.1} parent=1 // pred_region
      _
    $region41: #{policy_net_forward.1} parent=1 // pred_fallthru
      _
    // Predicated region
    $region42: #{policy_net_forward.1} parent=1 // pred_check
      _
    $region43: #{policy_net_forward.1} parent=1 // pred_check_branch
      %62 = sbr.rel (0) target = $region45
    $region44: #{policy_net_forward.1} parent=1 // pred_region
      %s64 = ssub.s32 256, 256
      %65 = vsyncadd [#allocation6], %s64
      %s66 = sshll.u32 [#allocation7], 4
      %s67 = int_to_ptr.vmem [resolvable:$true] %s66
      %72 = dma.hbm_to_vmem [thread:$0]  %s10, 256, %s67, [#allocation6], 128, 128, 8
    $region45: #{policy_net_forward.1} parent=1 // pred_fallthru
      _
    // Predicated region
    $region46: #{policy_net_forward.1} parent=1 // pred_check
      _
    $region47: #{policy_net_forward.1} parent=1 // pred_check_branch
      %74 = sbr.rel (0) target = $region49
    $region48: #{policy_net_forward.1} parent=1 // pred_region
      _
    $region49: #{policy_net_forward.1} parent=1 // pred_fallthru
      _
    // Predicated region
    $region50: #{policy_net_forward.1} parent=1 // pred_check
      _
    $region51: #{policy_net_forward.1} parent=1 // pred_check_branch
      %76 = sbr.rel (0) target = $region53
    $region52: #{policy_net_forward.1} parent=1 // pred_region
      %77 = dma.done [#allocation4], 1024
    $region53: #{policy_net_forward.1} parent=1 // pred_fallthru
      _
    // Predicated region
    $region54: #{policy_net_forward.1} parent=1 // pred_check
      _
    $region55: #{policy_net_forward.1} parent=1 // pred_check_branch
      %79 = sbr.rel (0) target = $region57
    $region56: #{policy_net_forward.1} parent=1 // pred_region
      %80 = dma.done [#allocation6], 1024
    $region57: #{policy_net_forward.1} parent=1 // pred_fallthru
      _
    // Predicated region
    $region58: #{policy_net_forward.1} parent=1 // pred_check
      _
    $region59: #{policy_net_forward.1} parent=1 // pred_check_branch
      %82 = sbr.rel (0) target = $region61
    $region60: #{policy_net_forward.1} parent=1 // pred_region
      %83 = dma.done [#allocation6], 256
    $region61: #{policy_net_forward.1} parent=1 // pred_fallthru
      _
    %v85 = vld [vmem:[%s0] sm:$0xff]
    %v86 = vld [vmem:[%s0 + $0x8] sm:$0xff]
    %v87 = vld [vmem:[%s0 + $0x10] sm:$0xff]
    %v88 = vld [vmem:[%s0 + $0x18] sm:$0xff]
    %89 = vrot.lane.b32.xlu0 %v85, 17
    %v90 = vpop.permute.xlu0 %89
    %91 = vrot.lane.b32.xlu0 %v87, 17
    %v92 = vpop.permute.xlu0 %91
    %93 = vrot.lane.b32.xlu0 %v86, 17
    %v94 = vpop.permute.xlu0 %93
    %95 = vrot.lane.b32.xlu0 %v88, 17
    %v96 = vpop.permute.xlu0 %95
    %v97 = vlaneseq
    %v98 = vand.u32 %v97, 127
    %vm99 = vcmp.lt.s32.totalorder %v98, 17
    %v100 = vsel %vm99, %v90, %v94
    %v101 = vsel %vm99, %v92, %v96
    %v102 = vsel %vm99, %v94, %v90
    %v103 = vsel %vm99, %v96, %v92
    %v104 = vld [vmem:[%s1] sm:$0xff]
    %v105 = vld [vmem:[%s1 + $0x8] sm:$0xff]
    %v106 = vld [vmem:[%s1 + $0x10] sm:$0xff]
    %v107 = vld [vmem:[%s1 + $0x18] sm:$0xff]
    %v108 = vmul.f32 %v102, %v104
    %v109 = vmul.f32 %v100, %v105
    %v110 = vmul.f32 %v103, %v106
    %v111 = vmul.f32 %v101, %v107
    %v112 = vpack.c.bf16 %v110, %v108
    %v113 = vpack.c.bf16 %v111, %v109
    %114 = vst [vmem:[#allocation2] sm:$0xff] %v112
    %115 = vst [vmem:[#allocation2 + $0x8] sm:$0xff] %v113
    %116 = vrot.lane.b32.xlu0 %v85, 16
    %v117 = vpop.permute.xlu0 %116
    %118 = vrot.lane.b32.xlu0 %v87, 16
    %v119 = vpop.permute.xlu0 %118
    %120 = vrot.lane.b32.xlu0 %v86, 16
    %v121 = vpop.permute.xlu0 %120
    %122 = vrot.lane.b32.xlu0 %v88, 16
    %v123 = vpop.permute.xlu0 %122
    %vm124 = vcmp.lt.s32.totalorder %v98, 16
    %v125 = vsel %vm124, %v117, %v121
    %v126 = vsel %vm124, %v119, %v123
    %v127 = vsel %vm124, %v121, %v117
    %v128 = vsel %vm124, %v123, %v119
    %v129 = vld [vmem:[%s1 + $0x20] sm:$0xff]
    %v130 = vld [vmem:[%s1 + $0x28] sm:$0xff]
    %v131 = vld [vmem:[%s1 + $0x30] sm:$0xff]
    %v132 = vld [vmem:[%s1 + $0x38] sm:$0xff]
    %v133 = vmul.f32 %v127, %v129
    %v134 = vmul.f32 %v125, %v130
    %v135 = vmul.f32 %v128, %v131
    %v136 = vmul.f32 %v126, %v132
    %v137 = vpack.c.bf16 %v135, %v133
    %v138 = vpack.c.bf16 %v136, %v134
    %139 = vst [vmem:[#allocation2 + $0x10] sm:$0xff] %v137
    %140 = vst [vmem:[#allocation2 + $0x18] sm:$0xff] %v138
    %141 = vrot.lane.b32.xlu0 %v85, 15
    %v142 = vpop.permute.xlu0 %141
    %143 = vrot.lane.b32.xlu0 %v87, 15
    %v144 = vpop.permute.xlu0 %143
    %145 = vrot.lane.b32.xlu0 %v86, 15
    %v146 = vpop.permute.xlu0 %145
    %147 = vrot.lane.b32.xlu0 %v88, 15
    %v148 = vpop.permute.xlu0 %147
    %vm149 = vcmp.lt.s32.totalorder %v98, 15
    %v150 = vsel %vm149, %v142, %v146
    %v151 = vsel %vm149, %v144, %v148
    %v152 = vsel %vm149, %v146, %v142
    %v153 = vsel %vm149, %v148, %v144
    %v154 = vld [vmem:[%s1 + $0x40] sm:$0xff]
    %v155 = vld [vmem:[%s1 + $0x48] sm:$0xff]
    %v156 = vld [vmem:[%s1 + $0x50] sm:$0xff]
    %v157 = vld [vmem:[%s1 + $0x58] sm:$0xff]
    %v158 = vmul.f32 %v152, %v154
    %v159 = vmul.f32 %v150, %v155
    %v160 = vmul.f32 %v153, %v156
    %v161 = vmul.f32 %v151, %v157
    %v162 = vpack.c.bf16 %v160, %v158
    %v163 = vpack.c.bf16 %v161, %v159
    %164 = vst [vmem:[#allocation2 + $0x20] sm:$0xff] %v162
    %165 = vst [vmem:[#allocation2 + $0x28] sm:$0xff] %v163
    %166 = vrot.lane.b32.xlu0 %v85, 1
    %v167 = vpop.permute.xlu0 %166
    %168 = vrot.lane.b32.xlu0 %v87, 1
    %v169 = vpop.permute.xlu0 %168
    %170 = vrot.lane.b32.xlu0 %v86, 1
    %v171 = vpop.permute.xlu0 %170
    %172 = vrot.lane.b32.xlu0 %v88, 1
    %v173 = vpop.permute.xlu0 %172
    %vm174 = vcmp.lt.s32.totalorder %v98, 1
    %v175 = vsel %vm174, %v167, %v171
    %v176 = vsel %vm174, %v169, %v173
    %v177 = vsel %vm174, %v171, %v167
    %v178 = vsel %vm174, %v173, %v169
    %v179 = vld [vmem:[%s1 + $0x60] sm:$0xff]
    %v180 = vld [vmem:[%s1 + $0x68] sm:$0xff]
    %v181 = vld [vmem:[%s1 + $0x70] sm:$0xff]
    %v182 = vld [vmem:[%s1 + $0x78] sm:$0xff]
    %v183 = vmul.f32 %v177, %v179
    %v184 = vmul.f32 %v175, %v180
    %v185 = vmul.f32 %v178, %v181
    %v186 = vmul.f32 %v176, %v182
    %v187 = vpack.c.bf16 %v185, %v183
    %v188 = vpack.c.bf16 %v186, %v184
    %189 = vst [vmem:[#allocation2 + $0x30] sm:$0xff] %v187
    %190 = vst [vmem:[#allocation2 + $0x38] sm:$0xff] %v188
    %v191 = vpack.c.bf16 %v87, %v85
    %v192 = vpack.c.bf16 %v88, %v86
    %193 = vst [vmem:[#allocation2 + $0x40] sm:$0xff] %v191
    %194 = vst [vmem:[#allocation2 + $0x48] sm:$0xff] %v192
    %195 = vrot.lane.b32.xlu0 %v85, 127
    %v196 = vpop.permute.xlu0 %195
    %197 = vrot.lane.b32.xlu0 %v87, 127
    %v198 = vpop.permute.xlu0 %197
    %199 = vrot.lane.b32.xlu0 %v86, 127
    %v200 = vpop.permute.xlu0 %199
    %201 = vrot.lane.b32.xlu0 %v88, 127
    %v202 = vpop.permute.xlu0 %201
    %vm203 = vcmp.lt.s32.totalorder %v98, 127
    %v204 = vsel %vm203, %v196, %v200
    %v205 = vsel %vm203, %v198, %v202
    %v206 = vsel %vm203, %v200, %v196
    %v207 = vsel %vm203, %v202, %v198
    %v208 = vld [vmem:[%s1 + $0xa0] sm:$0xff]
    %v209 = vld [vmem:[%s1 + $0xa8] sm:$0xff]
    %v210 = vld [vmem:[%s1 + $0xb0] sm:$0xff]
    %v211 = vld [vmem:[%s1 + $0xb8] sm:$0xff]
    %v212 = vmul.f32 %v204, %v208
    %v213 = vmul.f32 %v206, %v209
    %v214 = vmul.f32 %v205, %v210
    %v215 = vmul.f32 %v207, %v211
    %v216 = vpack.c.bf16 %v214, %v212
    %v217 = vpack.c.bf16 %v215, %v213
    %218 = vst [vmem:[#allocation2 + $0x50] sm:$0xff] %v216
    %219 = vst [vmem:[#allocation2 + $0x58] sm:$0xff] %v217
    %220 = vrot.lane.b32.xlu0 %v85, 113
    %v221 = vpop.permute.xlu0 %220
    %222 = vrot.lane.b32.xlu0 %v87, 113
    %v223 = vpop.permute.xlu0 %222
    %224 = vrot.lane.b32.xlu0 %v86, 113
    %v225 = vpop.permute.xlu0 %224
    %226 = vrot.lane.b32.xlu0 %v88, 113
    %v227 = vpop.permute.xlu0 %226
    %vm228 = vcmp.lt.s32.totalorder %v98, 113
    %v229 = vsel %vm228, %v221, %v225
    %v230 = vsel %vm228, %v223, %v227
    %v231 = vsel %vm228, %v225, %v221
    %v232 = vsel %vm228, %v227, %v223
    %v233 = vld [vmem:[%s1 + $0xc0] sm:$0xff]
    %v234 = vld [vmem:[%s1 + $0xc8] sm:$0xff]
    %v235 = vld [vmem:[%s1 + $0xd0] sm:$0xff]
    %v236 = vld [vmem:[%s1 + $0xd8] sm:$0xff]
    %v237 = vmul.f32 %v229, %v233
    %v238 = vmul.f32 %v231, %v234
    %v239 = vmul.f32 %v230, %v235
    %v240 = vmul.f32 %v232, %v236
    %v241 = vpack.c.bf16 %v239, %v237
    %v242 = vpack.c.bf16 %v240, %v238
    %243 = vst [vmem:[#allocation2 + $0x60] sm:$0xff] %v241
    %244 = vst [vmem:[#allocation2 + $0x68] sm:$0xff] %v242
    %245 = vrot.lane.b32.xlu0 %v85, 112
    %v246 = vpop.permute.xlu0 %245
    %247 = vrot.lane.b32.xlu0 %v87, 112
    %v248 = vpop.permute.xlu0 %247
    %249 = vrot.lane.b32.xlu0 %v86, 112
    %v250 = vpop.permute.xlu0 %249
    %251 = vrot.lane.b32.xlu0 %v88, 112
    %v252 = vpop.permute.xlu0 %251
    %vm253 = vcmp.lt.s32.totalorder %v98, 112
    %v254 = vsel %vm253, %v246, %v250
    %v255 = vsel %vm253, %v248, %v252
    %v256 = vsel %vm253, %v250, %v246
    %v257 = vsel %vm253, %v252, %v248
    %v258 = vld [vmem:[%s1 + $0xe0] sm:$0xff]
    %v259 = vld [vmem:[%s1 + $0xe8] sm:$0xff]
    %v260 = vld [vmem:[%s1 + $0xf0] sm:$0xff]
    %v261 = vld [vmem:[%s1 + $0xf8] sm:$0xff]
    %v262 = vmul.f32 %v254, %v258
    %v263 = vmul.f32 %v256, %v259
    %v264 = vmul.f32 %v255, %v260
    %v265 = vmul.f32 %v257, %v261
    %v266 = vpack.c.bf16 %v264, %v262
    %v267 = vpack.c.bf16 %v265, %v263
    %268 = vst [vmem:[#allocation2 + $0x70] sm:$0xff] %v266
    %269 = vst [vmem:[#allocation2 + $0x78] sm:$0xff] %v267
    %270 = vrot.lane.b32.xlu0 %v85, 111
    %v271 = vpop.permute.xlu0 %270
    %272 = vrot.lane.b32.xlu0 %v87, 111
    %v273 = vpop.permute.xlu0 %272
    %274 = vrot.lane.b32.xlu0 %v86, 111
    %v275 = vpop.permute.xlu0 %274
    %276 = vrot.lane.b32.xlu0 %v88, 111
    %v277 = vpop.permute.xlu0 %276
    %vm278 = vcmp.lt.s32.totalorder %v98, 111
    %v279 = vsel %vm278, %v271, %v275
    %v280 = vsel %vm278, %v273, %v277
    %v281 = vsel %vm278, %v275, %v271
    %v282 = vsel %vm278, %v277, %v273
    %v283 = vld [vmem:[%s1 + $0x100] sm:$0xff]
    %v284 = vld [vmem:[%s1 + $0x108] sm:$0xff]
    %v285 = vld [vmem:[%s1 + $0x110] sm:$0xff]
    %v286 = vld [vmem:[%s1 + $0x118] sm:$0xff]
    %v287 = vmul.f32 %v279, %v283
    %v288 = vmul.f32 %v281, %v284
    %v289 = vmul.f32 %v280, %v285
    %v290 = vmul.f32 %v282, %v286
    %v291 = vpack.c.bf16 %v289, %v287
    %v292 = vpack.c.bf16 %v290, %v288
    %293 = vst [vmem:[#allocation2 + $0x80] sm:$0xff] %v291
    %294 = vst [vmem:[#allocation2 + $0x88] sm:$0xff] %v292
    %v295 = vld [vmem:[%s2] sm:$0xff]
    %v296 = vld [vmem:[%s2 + $0x8] sm:$0xff]
    %v297 = vld [vmem:[%s2 + $0x10] sm:$0xff]
    %v298 = vld [vmem:[%s2 + $0x18] sm:$0xff]
    %v299 = vld [vmem:[%s3] sm:$0xff]
    %v300 = vld [vmem:[%s3 + $0x8] sm:$0xff]
    %v301 = vld [vmem:[%s3 + $0x10] sm:$0xff]
    %v302 = vld [vmem:[%s3 + $0x18] sm:$0xff]
    %v303 = vld [vmem:[#allocation2] sm:$0xff]
    %v304 = vld [vmem:[#allocation2 + $0x8] sm:$0xff]
    %v305 = vld [vmem:[#allocation2 + $0x10] sm:$0xff]
    %v306 = vld [vmem:[#allocation2 + $0x18] sm:$0xff]
    %v307 = vld [vmem:[#allocation2 + $0x20] sm:$0xff]
    %v308 = vld [vmem:[#allocation2 + $0x28] sm:$0xff]
    %v309 = vld [vmem:[#allocation2 + $0x30] sm:$0xff]
    %v310 = vld [vmem:[#allocation2 + $0x38] sm:$0xff]
    %v311 = vld [vmem:[#allocation2 + $0x40] sm:$0xff]
    %v312 = vld [vmem:[#allocation2 + $0x48] sm:$0xff]
    %v313 = vld [vmem:[#allocation2 + $0x50] sm:$0xff]
    %v314 = vld [vmem:[#allocation2 + $0x58] sm:$0xff]
    %v315 = vld [vmem:[#allocation2 + $0x60] sm:$0xff]
    %v316 = vld [vmem:[#allocation2 + $0x68] sm:$0xff]
    %v317 = vld [vmem:[#allocation2 + $0x70] sm:$0xff]
    %v318 = vld [vmem:[#allocation2 + $0x78] sm:$0xff]
    %v319 = vld [vmem:[#allocation2 + $0x80] sm:$0xff]
    %v320 = vld [vmem:[#allocation2 + $0x88] sm:$0xff]
    %322 = vset.pattern.permute.xlu0 0
    %323 = vperm.xlu0 %322, %v299
    %v324 = vpop.permute.xlu0 %323
    %327 = vset.pattern.permute.xlu0 0
    %328 = vperm.xlu0 %327, %v300
    %v329 = vpop.permute.xlu0 %328
    %332 = vset.pattern.permute.xlu0 0
    %333 = vperm.xlu0 %332, %v301
    %v334 = vpop.permute.xlu0 %333
    %337 = vset.pattern.permute.xlu0 0
    %338 = vperm.xlu0 %337, %v302
    %v339 = vpop.permute.xlu0 %338
    %v345 = vunpack.c.l.b16 %v295
    %v346 = vunpack.c.h.b16 %v295
    %v347 = vunpack.c.l.b16 %v296
    %v348 = vunpack.c.h.b16 %v296
    %v349 = vunpack.c.l.b16 %v297
    %v350 = vunpack.c.h.b16 %v297
    %v351 = vunpack.c.l.b16 %v298
    %v352 = vunpack.c.h.b16 %v298
    %v353 = vpack.c.b16 %v347, %v345
    %v354 = vpack.c.b16 %v348, %v346
    %v355 = vpack.c.b16 %v351, %v349
    %v356 = vpack.c.b16 %v352, %v350
    %vm359 = vcmask 130048
    %v361 = vsel %vm359, %v354, 0
    %v364 = vsel %vm359, %v356, 0
    %366 = vmatprep.subr.bf16.mxu0 %v304
    %367 = vmatpush1.bf16.msra.mxu0 %v303
    %368 = vmatprep.subr.bf16.mxu0 %v306
    %369 = vmatpush1.bf16.msra.mxu0 %v305
    %370 = vmatprep.subr.bf16.mxu0 %v308
    %371 = vmatpush1.bf16.msra.mxu0 %v307
    %372 = vmatprep.subr.bf16.mxu0 %v310
    %373 = vmatpush1.bf16.msra.mxu0 %v309
    %374 = vmatprep.subr.bf16.mxu0 %v312
    %375 = vmatpush1.bf16.msra.mxu0 %v311
    %376 = vmatprep.subr.bf16.mxu0 %v314
    %377 = vmatpush1.bf16.msra.mxu0 %v313
    %378 = vmatprep.subr.bf16.mxu0 %v316
    %379 = vmatpush1.bf16.msra.mxu0 %v315
    %380 = vmatprep.subr.bf16.mxu0 %v318
    %381 = vmatpush1.bf16.msra.mxu0 %v317
    %382 = vmatprep.subr.bf16.mxu0 %v320
    %383 = vmatpush1.bf16.msra.mxu0 %v319
    %384 = vmatprep.subr.bf16.mxu0 0
    %385 = vmatpush1.bf16.msra.mxu0 0
    %386 = vmatprep.subr.bf16.mxu0 0
    %387 = vmatpush1.bf16.msra.mxu0 0
    %388 = vmatprep.subr.bf16.mxu0 0
    %389 = vmatpush1.bf16.msra.mxu0 0
    %390 = vmatprep.subr.bf16.mxu0 0
    %391 = vmatpush1.bf16.msra.mxu0 0
    %392 = vmatprep.subr.bf16.mxu0 0
    %393 = vmatpush1.bf16.msra.mxu0 0
    %394 = vmatprep.subr.bf16.mxu0 0
    %395 = vmatpush1.bf16.msra.mxu0 0
    %396 = vmatprep.subr.bf16.mxu0 0
    %397 = vmatpush1.bf16.msra.mxu0 0
    %398 = vmatprep.mubr.bf16.mxu0 %v361
    %399 = vmatmul.mubr.bf16.gmra.mrb[0].mxu0 %v353
    %v400 = vpop.f32.mrb[0].mxu0
    %v401 = vadd.f32 %v324, %v400
    %v402 = vpop.f32.mrb[0].mxu0
    %v403 = vadd.f32 %v324, %v402
    %v404 = vpop.f32.mrb[0].mxu0
    %v405 = vadd.f32 %v329, %v404
    %v406 = vpop.f32.mrb[0].mxu0
    %v407 = vadd.f32 %v329, %v406
    %408 = vmatprep.mubr.bf16.mxu0 %v364
    %409 = vmatmul.mubr.bf16.gmra.mrb[0].mxu0 %v355
    %v410 = vpop.f32.mrb[0].mxu0
    %v411 = vadd.f32 %v334, %v410
    %v412 = vpop.f32.mrb[0].mxu0
    %v413 = vadd.f32 %v334, %v412
    %v414 = vpop.f32.mrb[0].mxu0
    %v415 = vadd.f32 %v339, %v414
    %v416 = vpop.f32.mrb[0].mxu0
    %v417 = vadd.f32 %v339, %v416
    %418 = vdwg.mxu0
    %v419 = vmax.f32 %v401, 0.0
    %v420 = vmax.f32 %v403, 0.0
    %v421 = vmax.f32 %v405, 0.0
    %v422 = vmax.f32 %v407, 0.0
    %v423 = vmax.f32 %v411, 0.0
    %v424 = vmax.f32 %v413, 0.0
    %v425 = vmax.f32 %v415, 0.0
    %v426 = vmax.f32 %v417, 0.0
    %v427 = vld [vmem:[%s4] sm:$0x1]
    %v429 = vsel %vm359, %v427, 0
    %431 = vmatprep.subr.mxu0 %v420
    %432 = vmatpush1.msra.mxu0 %v419
    %433 = vmatprep.subr.mxu0 %v422
    %434 = vmatpush1.msra.mxu0 %v421
    %435 = vmatprep.subr.mxu0 0.0
    %436 = vmatpush1.msra.mxu0 0.0
    %437 = vmatprep.subr.mxu0 0.0
    %438 = vmatpush1.msra.mxu0 0.0
    %439 = vmatprep.subr.mxu0 0.0
    %440 = vmatpush1.msra.mxu0 0.0
    %441 = vmatprep.subr.mxu0 0.0
    %442 = vmatpush1.msra.mxu0 0.0
    %443 = vmatprep.subr.mxu0 0.0
    %444 = vmatpush1.msra.mxu0 0.0
    %445 = vmatprep.subr.mxu0 0.0
    %446 = vmatpush1.msra.mxu0 0.0
    %447 = vmatprep.subr.mxu0 0.0
    %448 = vmatpush1.msra.mxu0 0.0
    %449 = vmatprep.subr.mxu0 0.0
    %450 = vmatpush1.msra.mxu0 0.0
    %451 = vmatprep.subr.mxu0 0.0
    %452 = vmatpush1.msra.mxu0 0.0
    %453 = vmatprep.subr.mxu0 0.0
    %454 = vmatpush1.msra.mxu0 0.0
    %455 = vmatprep.subr.mxu0 0.0
    %456 = vmatpush1.msra.mxu0 0.0
    %457 = vmatprep.subr.mxu0 0.0
    %458 = vmatpush1.msra.mxu0 0.0
    %459 = vmatprep.subr.mxu0 0.0
    %460 = vmatpush1.msra.mxu0 0.0
    %461 = vmatprep.subr.mxu0 0.0
    %462 = vmatpush1.msra.mxu0 0.0
    %463 = vmatprep.subr.mxu0 0.0
    %464 = vmatpush1.msra.mxu0 0.0
    %465 = vmatprep.subr.mxu0 0.0
    %466 = vmatpush1.msra.mxu0 0.0
    %467 = vmatprep.subr.mxu0 0.0
    %468 = vmatpush1.msra.mxu0 0.0
    %469 = vmatprep.subr.mxu0 0.0
    %470 = vmatpush1.msra.mxu0 0.0
    %471 = vmatprep.subr.mxu0 0.0
    %472 = vmatpush1.msra.mxu0 0.0
    %473 = vmatprep.subr.mxu0 0.0
    %474 = vmatpush1.msra.mxu0 0.0
    %475 = vmatprep.subr.mxu0 0.0
    %476 = vmatpush1.msra.mxu0 0.0
    %477 = vmatprep.subr.mxu0 0.0
    %478 = vmatpush1.msra.mxu0 0.0
    %479 = vmatprep.subr.mxu0 0.0
    %480 = vmatpush1.msra.mxu0 0.0
    %481 = vmatprep.subr.mxu0 0.0
    %482 = vmatpush1.msra.mxu0 0.0
    %483 = vmatprep.subr.mxu0 0.0
    %484 = vmatpush1.msra.mxu0 0.0
    %485 = vmatprep.subr.mxu0 0.0
    %486 = vmatpush1.msra.mxu0 0.0
    %487 = vmatprep.subr.mxu0 0.0
    %488 = vmatpush1.msra.mxu0 0.0
    %489 = vmatprep.subr.mxu0 0.0
    %490 = vmatpush1.msra.mxu0 0.0
    %491 = vmatprep.subr.mxu0 0.0
    %492 = vmatpush1.msra.mxu0 0.0
    %493 = vmatprep.subr.mxu0 0.0
    %494 = vmatpush1.msra.mxu0 0.0
    %495 = vmatprep.mubr.f32.mxu0 0.0
    %496 = vmatmul.mubr.f32.gmra.mrb[0].mxu0 %v429
    %v497 = vpop.f32.mrb[0].mxu0
    %v498 = vadd.f32 0.0, %v497
    %v499 = vpop.f32.mrb[0].mxu0
    %v500 = vadd.f32 0.0, %v499
    %501 = vdwg.mxu0
    %vm502 = vcmask 1040384
    %v503 = vsel %vm502, %v498, 0.0
    %v504 = vsel %vm502, %v500, 0.0
    %v505 = vadd.f32 %v503, %v504
    %506 = vadd.xlane.f32.xlu0 %v505
    %v507 = vpop.xlane.xlu0 %506
    %v508 = vmul.f32 %v507, 0.00390625
    %v509 = vld [vmem:[%s5] sm:$0x1]
    %v510 = vadd.f32 %v508, %v509
    %v511 = vxor.u32 %v510, 2147483648
    %v512 = vmul.f32 %v511, 1.442695
    %v513 = vpow.pop %v512
    %v514 = vadd.f32 %v513, 1.0
    %v515 = vrcp.pop %v514
    %v516 = vmul.f32 1.0, %v515
    %vm517 = vcmask 0
    %518 = vst.msk [vmem:[%s13] sm:$0x1] %vm517, %v516
    %vm519 = vcmp.ge.f32.partialorder %v516, 0.5
    %v520 = vsel %vm519, 1.0, 0.0
    %s521 = scalar_lea.vmem %s4, 1
    %v522 = vld [vmem:[%s521] sm:$0x1]
    %v524 = vsel %vm359, %v522, 0
    %526 = vmatprep.subr.mxu0 %v420
    %527 = vmatpush1.msra.mxu0 %v419
    %528 = vmatprep.subr.mxu0 %v422
    %529 = vmatpush1.msra.mxu0 %v421
    %530 = vmatprep.subr.mxu0 0.0
    %531 = vmatpush1.msra.mxu0 0.0
    %532 = vmatprep.subr.mxu0 0.0
    %533 = vmatpush1.msra.mxu0 0.0
    %534 = vmatprep.subr.mxu0 0.0
    %535 = vmatpush1.msra.mxu0 0.0
    %536 = vmatprep.subr.mxu0 0.0
    %537 = vmatpush1.msra.mxu0 0.0
    %538 = vmatprep.subr.mxu0 0.0
    %539 = vmatpush1.msra.mxu0 0.0
    %540 = vmatprep.subr.mxu0 0.0
    %541 = vmatpush1.msra.mxu0 0.0
    %542 = vmatprep.subr.mxu0 0.0
    %543 = vmatpush1.msra.mxu0 0.0
    %544 = vmatprep.subr.mxu0 0.0
    %545 = vmatpush1.msra.mxu0 0.0
    %546 = vmatprep.subr.mxu0 0.0
    %547 = vmatpush1.msra.mxu0 0.0
    %548 = vmatprep.subr.mxu0 0.0
    %549 = vmatpush1.msra.mxu0 0.0
    %550 = vmatprep.subr.mxu0 0.0
    %551 = vmatpush1.msra.mxu0 0.0
    %552 = vmatprep.subr.mxu0 0.0
    %553 = vmatpush1.msra.mxu0 0.0
    %554 = vmatprep.subr.mxu0 0.0
    %555 = vmatpush1.msra.mxu0 0.0
    %556 = vmatprep.subr.mxu0 0.0
    %557 = vmatpush1.msra.mxu0 0.0
    %558 = vmatprep.subr.mxu0 0.0
    %559 = vmatpush1.msra.mxu0 0.0
    %560 = vmatprep.subr.mxu0 0.0
    %561 = vmatpush1.msra.mxu0 0.0
    %562 = vmatprep.subr.mxu0 0.0
    %563 = vmatpush1.msra.mxu0 0.0
    %564 = vmatprep.subr.mxu0 0.0
    %565 = vmatpush1.msra.mxu0 0.0
    %566 = vmatprep.subr.mxu0 0.0
    %567 = vmatpush1.msra.mxu0 0.0
    %568 = vmatprep.subr.mxu0 0.0
    %569 = vmatpush1.msra.mxu0 0.0
    %570 = vmatprep.subr.mxu0 0.0
    %571 = vmatpush1.msra.mxu0 0.0
    %572 = vmatprep.subr.mxu0 0.0
    %573 = vmatpush1.msra.mxu0 0.0
    %574 = vmatprep.subr.mxu0 0.0
    %575 = vmatpush1.msra.mxu0 0.0
    %576 = vmatprep.subr.mxu0 0.0
    %577 = vmatpush1.msra.mxu0 0.0
    %578 = vmatprep.subr.mxu0 0.0
    %579 = vmatpush1.msra.mxu0 0.0
    %580 = vmatprep.subr.mxu0 0.0
    %581 = vmatpush1.msra.mxu0 0.0
    %582 = vmatprep.subr.mxu0 0.0
    %583 = vmatpush1.msra.mxu0 0.0
    %584 = vmatprep.subr.mxu0 0.0
    %585 = vmatpush1.msra.mxu0 0.0
    %586 = vmatprep.subr.mxu0 0.0
    %587 = vmatpush1.msra.mxu0 0.0
    %588 = vmatprep.subr.mxu0 0.0
    %589 = vmatpush1.msra.mxu0 0.0
    %590 = vmatprep.mubr.f32.mxu0 0.0
    %591 = vmatmul.mubr.f32.gmra.mrb[0].mxu0 %v524
    %v592 = vpop.f32.mrb[0].mxu0
    %v593 = vadd.f32 0.0, %v592
    %v594 = vpop.f32.mrb[0].mxu0
    %v595 = vadd.f32 0.0, %v594
    %596 = vdwg.mxu0
    %v597 = vsel %vm502, %v593, 0.0
    %v598 = vsel %vm502, %v595, 0.0
    %v599 = vadd.f32 %v597, %v598
    %600 = vadd.xlane.f32.xlu0 %v599
    %v601 = vpop.xlane.xlu0 %600
    %v602 = vmul.f32 %v601, 0.00390625
    %s603 = scalar_lea.vmem %s5, 1
    %v604 = vld [vmem:[%s603] sm:$0x1]
    %v605 = vadd.f32 %v602, %v604
    %v606 = vxor.u32 %v605, 2147483648
    %v607 = vmul.f32 %v606, 1.442695
    %v608 = vpow.pop %v607
    %v609 = vadd.f32 %v608, 1.0
    %v610 = vrcp.pop %v609
    %v611 = vmul.f32 1.0, %v610
    %s612 = scalar_lea.vmem %s13, 1
    %613 = vst.msk [vmem:[%s612] sm:$0x1] %vm517, %v611
    %vm614 = vcmp.ge.f32.partialorder %v611, 0.5
    %v615 = vsel %vm614, 1.0, 0.0
    %s616 = scalar_lea.vmem %s4, 2
    %v617 = vld [vmem:[%s616] sm:$0x1]
    %v619 = vsel %vm359, %v617, 0
    %621 = vmatprep.subr.mxu0 %v420
    %622 = vmatpush1.msra.mxu0 %v419
    %623 = vmatprep.subr.mxu0 %v422
    %624 = vmatpush1.msra.mxu0 %v421
    %625 = vmatprep.subr.mxu0 0.0
    %626 = vmatpush1.msra.mxu0 0.0
    %627 = vmatprep.subr.mxu0 0.0
    %628 = vmatpush1.msra.mxu0 0.0
    %629 = vmatprep.subr.mxu0 0.0
    %630 = vmatpush1.msra.mxu0 0.0
    %631 = vmatprep.subr.mxu0 0.0
    %632 = vmatpush1.msra.mxu0 0.0
    %633 = vmatprep.subr.mxu0 0.0
    %634 = vmatpush1.msra.mxu0 0.0
    %635 = vmatprep.subr.mxu0 0.0
    %636 = vmatpush1.msra.mxu0 0.0
    %637 = vmatprep.subr.mxu0 0.0
    %638 = vmatpush1.msra.mxu0 0.0
    %639 = vmatprep.subr.mxu0 0.0
    %640 = vmatpush1.msra.mxu0 0.0
    %641 = vmatprep.subr.mxu0 0.0
    %642 = vmatpush1.msra.mxu0 0.0
    %643 = vmatprep.subr.mxu0 0.0
    %644 = vmatpush1.msra.mxu0 0.0
    %645 = vmatprep.subr.mxu0 0.0
    %646 = vmatpush1.msra.mxu0 0.0
    %647 = vmatprep.subr.mxu0 0.0
    %648 = vmatpush1.msra.mxu0 0.0
    %649 = vmatprep.subr.mxu0 0.0
    %650 = vmatpush1.msra.mxu0 0.0
    %651 = vmatprep.subr.mxu0 0.0
    %652 = vmatpush1.msra.mxu0 0.0
    %653 = vmatprep.subr.mxu0 0.0
    %654 = vmatpush1.msra.mxu0 0.0
    %655 = vmatprep.subr.mxu0 0.0
    %656 = vmatpush1.msra.mxu0 0.0
    %657 = vmatprep.subr.mxu0 0.0
    %658 = vmatpush1.msra.mxu0 0.0
    %659 = vmatprep.subr.mxu0 0.0
    %660 = vmatpush1.msra.mxu0 0.0
    %661 = vmatprep.subr.mxu0 0.0
    %662 = vmatpush1.msra.mxu0 0.0
    %663 = vmatprep.subr.mxu0 0.0
    %664 = vmatpush1.msra.mxu0 0.0
    %665 = vmatprep.subr.mxu0 0.0
    %666 = vmatpush1.msra.mxu0 0.0
    %667 = vmatprep.subr.mxu0 0.0
    %668 = vmatpush1.msra.mxu0 0.0
    %669 = vmatprep.subr.mxu0 0.0
    %670 = vmatpush1.msra.mxu0 0.0
    %671 = vmatprep.subr.mxu0 0.0
    %672 = vmatpush1.msra.mxu0 0.0
    %673 = vmatprep.subr.mxu0 0.0
    %674 = vmatpush1.msra.mxu0 0.0
    %675 = vmatprep.subr.mxu0 0.0
    %676 = vmatpush1.msra.mxu0 0.0
    %677 = vmatprep.subr.mxu0 0.0
    %678 = vmatpush1.msra.mxu0 0.0
    %679 = vmatprep.subr.mxu0 0.0
    %680 = vmatpush1.msra.mxu0 0.0
    %681 = vmatprep.subr.mxu0 0.0
    %682 = vmatpush1.msra.mxu0 0.0
    %683 = vmatprep.subr.mxu0 0.0
    %684 = vmatpush1.msra.mxu0 0.0
    %685 = vmatprep.mubr.f32.mxu0 0.0
    %686 = vmatmul.mubr.f32.gmra.mrb[0].mxu0 %v619
    %v687 = vpop.f32.mrb[0].mxu0
    %v688 = vadd.f32 0.0, %v687
    %v689 = vpop.f32.mrb[0].mxu0
    %v690 = vadd.f32 0.0, %v689
    %691 = vdwg.mxu0
    %v692 = vsel %vm502, %v688, 0.0
    %v693 = vsel %vm502, %v690, 0.0
    %v694 = vadd.f32 %v692, %v693
    %695 = vadd.xlane.f32.xlu0 %v694
    %v696 = vpop.xlane.xlu0 %695
    %v697 = vmul.f32 %v696, 0.00390625
    %s698 = scalar_lea.vmem %s5, 2
    %v699 = vld [vmem:[%s698] sm:$0x1]
    %v700 = vadd.f32 %v697, %v699
    %v701 = vxor.u32 %v700, 2147483648
    %v702 = vmul.f32 %v701, 1.442695
    %v703 = vpow.pop %v702
    %v704 = vadd.f32 %v703, 1.0
    %v705 = vrcp.pop %v704
    %v706 = vmul.f32 1.0, %v705
    %s707 = scalar_lea.vmem %s13, 2
    %708 = vst.msk [vmem:[%s707] sm:$0x1] %vm517, %v706
    %vm709 = vcmp.ge.f32.partialorder %v706, 0.5
    %v710 = vsel %vm709, 1.0, 0.0
    %s711 = scalar_lea.vmem %s4, 3
    %v712 = vld [vmem:[%s711] sm:$0x1]
    %v714 = vsel %vm359, %v712, 0
    %716 = vmatprep.subr.mxu0 %v420
    %717 = vmatpush1.msra.mxu0 %v419
    %718 = vmatprep.subr.mxu0 %v422
    %719 = vmatpush1.msra.mxu0 %v421
    %720 = vmatprep.subr.mxu0 0.0
    %721 = vmatpush1.msra.mxu0 0.0
    %722 = vmatprep.subr.mxu0 0.0
    %723 = vmatpush1.msra.mxu0 0.0
    %724 = vmatprep.subr.mxu0 0.0
    %725 = vmatpush1.msra.mxu0 0.0
    %726 = vmatprep.subr.mxu0 0.0
    %727 = vmatpush1.msra.mxu0 0.0
    %728 = vmatprep.subr.mxu0 0.0
    %729 = vmatpush1.msra.mxu0 0.0
    %730 = vmatprep.subr.mxu0 0.0
    %731 = vmatpush1.msra.mxu0 0.0
    %732 = vmatprep.subr.mxu0 0.0
    %733 = vmatpush1.msra.mxu0 0.0
    %734 = vmatprep.subr.mxu0 0.0
    %735 = vmatpush1.msra.mxu0 0.0
    %736 = vmatprep.subr.mxu0 0.0
    %737 = vmatpush1.msra.mxu0 0.0
    %738 = vmatprep.subr.mxu0 0.0
    %739 = vmatpush1.msra.mxu0 0.0
    %740 = vmatprep.subr.mxu0 0.0
    %741 = vmatpush1.msra.mxu0 0.0
    %742 = vmatprep.subr.mxu0 0.0
    %743 = vmatpush1.msra.mxu0 0.0
    %744 = vmatprep.subr.mxu0 0.0
    %745 = vmatpush1.msra.mxu0 0.0
    %746 = vmatprep.subr.mxu0 0.0
    %747 = vmatpush1.msra.mxu0 0.0
    %748 = vmatprep.subr.mxu0 0.0
    %749 = vmatpush1.msra.mxu0 0.0
    %750 = vmatprep.subr.mxu0 0.0
    %751 = vmatpush1.msra.mxu0 0.0
    %752 = vmatprep.subr.mxu0 0.0
    %753 = vmatpush1.msra.mxu0 0.0
    %754 = vmatprep.subr.mxu0 0.0
    %755 = vmatpush1.msra.mxu0 0.0
    %756 = vmatprep.subr.mxu0 0.0
    %757 = vmatpush1.msra.mxu0 0.0
    %758 = vmatprep.subr.mxu0 0.0
    %759 = vmatpush1.msra.mxu0 0.0
    %760 = vmatprep.subr.mxu0 0.0
    %761 = vmatpush1.msra.mxu0 0.0
    %762 = vmatprep.subr.mxu0 0.0
    %763 = vmatpush1.msra.mxu0 0.0
    %764 = vmatprep.subr.mxu0 0.0
    %765 = vmatpush1.msra.mxu0 0.0
    %766 = vmatprep.subr.mxu0 0.0
    %767 = vmatpush1.msra.mxu0 0.0
    %768 = vmatprep.subr.mxu0 0.0
    %769 = vmatpush1.msra.mxu0 0.0
    %770 = vmatprep.subr.mxu0 0.0
    %771 = vmatpush1.msra.mxu0 0.0
    %772 = vmatprep.subr.mxu0 0.0
    %773 = vmatpush1.msra.mxu0 0.0
    %774 = vmatprep.subr.mxu0 0.0
    %775 = vmatpush1.msra.mxu0 0.0
    %776 = vmatprep.subr.mxu0 0.0
    %777 = vmatpush1.msra.mxu0 0.0
    %778 = vmatprep.subr.mxu0 0.0
    %779 = vmatpush1.msra.mxu0 0.0
    %780 = vmatprep.mubr.f32.mxu0 0.0
    %781 = vmatmul.mubr.f32.gmra.mrb[0].mxu0 %v714
    %v782 = vpop.f32.mrb[0].mxu0
    %v783 = vadd.f32 0.0, %v782
    %v784 = vpop.f32.mrb[0].mxu0
    %v785 = vadd.f32 0.0, %v784
    %786 = vdwg.mxu0
    %v787 = vsel %vm502, %v783, 0.0
    %v788 = vsel %vm502, %v785, 0.0
    %v789 = vadd.f32 %v787, %v788
    %790 = vadd.xlane.f32.xlu0 %v789
    %v791 = vpop.xlane.xlu0 %790
    %v792 = vmul.f32 %v791, 0.00390625
    %s793 = scalar_lea.vmem %s5, 3
    %v794 = vld [vmem:[%s793] sm:$0x1]
    %v795 = vadd.f32 %v792, %v794
    %v796 = vxor.u32 %v795, 2147483648
    %v797 = vmul.f32 %v796, 1.442695
    %v798 = vpow.pop %v797
    %v799 = vadd.f32 %v798, 1.0
    %v800 = vrcp.pop %v799
    %v801 = vmul.f32 1.0, %v800
    %s802 = scalar_lea.vmem %s13, 3
    %803 = vst.msk [vmem:[%s802] sm:$0x1] %vm517, %v801
    %vm804 = vcmp.ge.f32.partialorder %v801, 0.5
    %v805 = vsel %vm804, 1.0, 0.0
    %806 = vrot.lane.b32.xlu0 %v423, 17
    %v807 = vpop.permute.xlu0 %806
    %808 = vrot.lane.b32.xlu0 %v425, 17
    %v809 = vpop.permute.xlu0 %808
    %810 = vrot.lane.b32.xlu0 %v424, 17
    %v811 = vpop.permute.xlu0 %810
    %812 = vrot.lane.b32.xlu0 %v426, 17
    %v813 = vpop.permute.xlu0 %812
    %v814 = vsel %vm99, %v807, %v811
    %v815 = vsel %vm99, %v809, %v813
    %v816 = vsel %vm99, %v811, %v807
    %v817 = vsel %vm99, %v813, %v809
    %v818 = vld [vmem:[%s1] sm:$0xff]
    %v819 = vld [vmem:[%s1 + $0x8] sm:$0xff]
    %v820 = vld [vmem:[%s1 + $0x10] sm:$0xff]
    %v821 = vld [vmem:[%s1 + $0x18] sm:$0xff]
    %v822 = vmul.f32 %v816, %v818
    %v823 = vmul.f32 %v814, %v819
    %v824 = vmul.f32 %v817, %v820
    %v825 = vmul.f32 %v815, %v821
    %v826 = vpack.c.bf16 %v824, %v822
    %v827 = vpack.c.bf16 %v825, %v823
    %828 = vst [vmem:[#allocation2] sm:$0xff] %v826
    %829 = vst [vmem:[#allocation2 + $0x8] sm:$0xff] %v827
    %830 = vrot.lane.b32.xlu0 %v423, 16
    %v831 = vpop.permute.xlu0 %830
    %832 = vrot.lane.b32.xlu0 %v425, 16
    %v833 = vpop.permute.xlu0 %832
    %834 = vrot.lane.b32.xlu0 %v424, 16
    %v835 = vpop.permute.xlu0 %834
    %836 = vrot.lane.b32.xlu0 %v426, 16
    %v837 = vpop.permute.xlu0 %836
    %v838 = vsel %vm124, %v831, %v835
    %v839 = vsel %vm124, %v833, %v837
    %v840 = vsel %vm124, %v835, %v831
    %v841 = vsel %vm124, %v837, %v833
    %v842 = vld [vmem:[%s1 + $0x20] sm:$0xff]
    %v843 = vld [vmem:[%s1 + $0x28] sm:$0xff]
    %v844 = vld [vmem:[%s1 + $0x30] sm:$0xff]
    %v845 = vld [vmem:[%s1 + $0x38] sm:$0xff]
    %v846 = vmul.f32 %v840, %v842
    %v847 = vmul.f32 %v838, %v843
    %v848 = vmul.f32 %v841, %v844
    %v849 = vmul.f32 %v839, %v845
    %v850 = vpack.c.bf16 %v848, %v846
    %v851 = vpack.c.bf16 %v849, %v847
    %852 = vst [vmem:[#allocation2 + $0x10] sm:$0xff] %v850
    %853 = vst [vmem:[#allocation2 + $0x18] sm:$0xff] %v851
    %854 = vrot.lane.b32.xlu0 %v423, 15
    %v855 = vpop.permute.xlu0 %854
    %856 = vrot.lane.b32.xlu0 %v425, 15
    %v857 = vpop.permute.xlu0 %856
    %858 = vrot.lane.b32.xlu0 %v424, 15
    %v859 = vpop.permute.xlu0 %858
    %860 = vrot.lane.b32.xlu0 %v426, 15
    %v861 = vpop.permute.xlu0 %860
    %v862 = vsel %vm149, %v855, %v859
    %v863 = vsel %vm149, %v857, %v861
    %v864 = vsel %vm149, %v859, %v855
    %v865 = vsel %vm149, %v861, %v857
    %v866 = vld [vmem:[%s1 + $0x40] sm:$0xff]
    %v867 = vld [vmem:[%s1 + $0x48] sm:$0xff]
    %v868 = vld [vmem:[%s1 + $0x50] sm:$0xff]
    %v869 = vld [vmem:[%s1 + $0x58] sm:$0xff]
    %v870 = vmul.f32 %v864, %v866
    %v871 = vmul.f32 %v862, %v867
    %v872 = vmul.f32 %v865, %v868
    %v873 = vmul.f32 %v863, %v869
    %v874 = vpack.c.bf16 %v872, %v870
    %v875 = vpack.c.bf16 %v873, %v871
    %876 = vst [vmem:[#allocation2 + $0x20] sm:$0xff] %v874
    %877 = vst [vmem:[#allocation2 + $0x28] sm:$0xff] %v875
    %878 = vrot.lane.b32.xlu0 %v423, 1
    %v879 = vpop.permute.xlu0 %878
    %880 = vrot.lane.b32.xlu0 %v425, 1
    %v881 = vpop.permute.xlu0 %880
    %882 = vrot.lane.b32.xlu0 %v424, 1
    %v883 = vpop.permute.xlu0 %882
    %884 = vrot.lane.b32.xlu0 %v426, 1
    %v885 = vpop.permute.xlu0 %884
    %v886 = vsel %vm174, %v879, %v883
    %v887 = vsel %vm174, %v881, %v885
    %v888 = vsel %vm174, %v883, %v879
    %v889 = vsel %vm174, %v885, %v881
    %v890 = vld [vmem:[%s1 + $0x60] sm:$0xff]
    %v891 = vld [vmem:[%s1 + $0x68] sm:$0xff]
    %v892 = vld [vmem:[%s1 + $0x70] sm:$0xff]
    %v893 = vld [vmem:[%s1 + $0x78] sm:$0xff]
    %v894 = vmul.f32 %v888, %v890
    %v895 = vmul.f32 %v886, %v891
    %v896 = vmul.f32 %v889, %v892
    %v897 = vmul.f32 %v887, %v893
    %v898 = vpack.c.bf16 %v896, %v894
    %v899 = vpack.c.bf16 %v897, %v895
    %900 = vst [vmem:[#allocation2 + $0x30] sm:$0xff] %v898
    %901 = vst [vmem:[#allocation2 + $0x38] sm:$0xff] %v899
    %v902 = vpack.c.bf16 %v425, %v423
    %v903 = vpack.c.bf16 %v426, %v424
    %904 = vst [vmem:[#allocation2 + $0x40] sm:$0xff] %v902
    %905 = vst [vmem:[#allocation2 + $0x48] sm:$0xff] %v903
    %906 = vrot.lane.b32.xlu0 %v423, 127
    %v907 = vpop.permute.xlu0 %906
    %908 = vrot.lane.b32.xlu0 %v425, 127
    %v909 = vpop.permute.xlu0 %908
    %910 = vrot.lane.b32.xlu0 %v424, 127
    %v911 = vpop.permute.xlu0 %910
    %912 = vrot.lane.b32.xlu0 %v426, 127
    %v913 = vpop.permute.xlu0 %912
    %v914 = vsel %vm203, %v907, %v911
    %v915 = vsel %vm203, %v909, %v913
    %v916 = vsel %vm203, %v911, %v907
    %v917 = vsel %vm203, %v913, %v909
    %v918 = vld [vmem:[%s1 + $0xa0] sm:$0xff]
    %v919 = vld [vmem:[%s1 + $0xa8] sm:$0xff]
    %v920 = vld [vmem:[%s1 + $0xb0] sm:$0xff]
    %v921 = vld [vmem:[%s1 + $0xb8] sm:$0xff]
    %v922 = vmul.f32 %v914, %v918
    %v923 = vmul.f32 %v916, %v919
    %v924 = vmul.f32 %v915, %v920
    %v925 = vmul.f32 %v917, %v921
    %v926 = vpack.c.bf16 %v924, %v922
    %v927 = vpack.c.bf16 %v925, %v923
    %928 = vst [vmem:[#allocation2 + $0x50] sm:$0xff] %v926
    %929 = vst [vmem:[#allocation2 + $0x58] sm:$0xff] %v927
    %930 = vrot.lane.b32.xlu0 %v423, 113
    %v931 = vpop.permute.xlu0 %930
    %932 = vrot.lane.b32.xlu0 %v425, 113
    %v933 = vpop.permute.xlu0 %932
    %934 = vrot.lane.b32.xlu0 %v424, 113
    %v935 = vpop.permute.xlu0 %934
    %936 = vrot.lane.b32.xlu0 %v426, 113
    %v937 = vpop.permute.xlu0 %936
    %v938 = vsel %vm228, %v931, %v935
    %v939 = vsel %vm228, %v933, %v937
    %v940 = vsel %vm228, %v935, %v931
    %v941 = vsel %vm228, %v937, %v933
    %v942 = vld [vmem:[%s1 + $0xc0] sm:$0xff]
    %v943 = vld [vmem:[%s1 + $0xc8] sm:$0xff]
    %v944 = vld [vmem:[%s1 + $0xd0] sm:$0xff]
    %v945 = vld [vmem:[%s1 + $0xd8] sm:$0xff]
    %v946 = vmul.f32 %v938, %v942
    %v947 = vmul.f32 %v940, %v943
    %v948 = vmul.f32 %v939, %v944
    %v949 = vmul.f32 %v941, %v945
    %v950 = vpack.c.bf16 %v948, %v946
    %v951 = vpack.c.bf16 %v949, %v947
    %952 = vst [vmem:[#allocation2 + $0x60] sm:$0xff] %v950
    %953 = vst [vmem:[#allocation2 + $0x68] sm:$0xff] %v951
    %954 = vrot.lane.b32.xlu0 %v423, 112
    %v955 = vpop.permute.xlu0 %954
    %956 = vrot.lane.b32.xlu0 %v425, 112
    %v957 = vpop.permute.xlu0 %956
    %958 = vrot.lane.b32.xlu0 %v424, 112
    %v959 = vpop.permute.xlu0 %958
    %960 = vrot.lane.b32.xlu0 %v426, 112
    %v961 = vpop.permute.xlu0 %960
    %v962 = vsel %vm253, %v955, %v959
    %v963 = vsel %vm253, %v957, %v961
    %v964 = vsel %vm253, %v959, %v955
    %v965 = vsel %vm253, %v961, %v957
    %v966 = vld [vmem:[%s1 + $0xe0] sm:$0xff]
    %v967 = vld [vmem:[%s1 + $0xe8] sm:$0xff]
    %v968 = vld [vmem:[%s1 + $0xf0] sm:$0xff]
    %v969 = vld [vmem:[%s1 + $0xf8] sm:$0xff]
    %v970 = vmul.f32 %v962, %v966
    %v971 = vmul.f32 %v964, %v967
    %v972 = vmul.f32 %v963, %v968
    %v973 = vmul.f32 %v965, %v969
    %v974 = vpack.c.bf16 %v972, %v970
    %v975 = vpack.c.bf16 %v973, %v971
    %976 = vst [vmem:[#allocation2 + $0x70] sm:$0xff] %v974
    %977 = vst [vmem:[#allocation2 + $0x78] sm:$0xff] %v975
    %978 = vrot.lane.b32.xlu0 %v423, 111
    %v979 = vpop.permute.xlu0 %978
    %980 = vrot.lane.b32.xlu0 %v425, 111
    %v981 = vpop.permute.xlu0 %980
    %982 = vrot.lane.b32.xlu0 %v424, 111
    %v983 = vpop.permute.xlu0 %982
    %984 = vrot.lane.b32.xlu0 %v426, 111
    %v985 = vpop.permute.xlu0 %984
    %v986 = vsel %vm278, %v979, %v983
    %v987 = vsel %vm278, %v981, %v985
    %v988 = vsel %vm278, %v983, %v979
    %v989 = vsel %vm278, %v985, %v981
    %v990 = vld [vmem:[%s1 + $0x100] sm:$0xff]
    %v991 = vld [vmem:[%s1 + $0x108] sm:$0xff]
    %v992 = vld [vmem:[%s1 + $0x110] sm:$0xff]
    %v993 = vld [vmem:[%s1 + $0x118] sm:$0xff]
    %v994 = vmul.f32 %v986, %v990
    %v995 = vmul.f32 %v988, %v991
    %v996 = vmul.f32 %v987, %v992
    %v997 = vmul.f32 %v989, %v993
    %v998 = vpack.c.bf16 %v996, %v994
    %v999 = vpack.c.bf16 %v997, %v995
    %1000 = vst [vmem:[#allocation2 + $0x80] sm:$0xff] %v998
    %1001 = vst [vmem:[#allocation2 + $0x88] sm:$0xff] %v999
    %v1002 = vld [vmem:[#allocation3] sm:$0xff]
    %v1003 = vld [vmem:[#allocation3 + $0x8] sm:$0xff]
    %v1004 = vld [vmem:[%s7] sm:$0xff]
    %v1005 = vld [vmem:[%s7 + $0x8] sm:$0xff]
    %v1006 = vld [vmem:[#allocation2] sm:$0xff]
    %v1007 = vld [vmem:[#allocation2 + $0x8] sm:$0xff]
    %v1008 = vld [vmem:[#allocation2 + $0x10] sm:$0xff]
    %v1009 = vld [vmem:[#allocation2 + $0x18] sm:$0xff]
    %v1010 = vld [vmem:[#allocation2 + $0x20] sm:$0xff]
    %v1011 = vld [vmem:[#allocation2 + $0x28] sm:$0xff]
    %v1012 = vld [vmem:[#allocation2 + $0x30] sm:$0xff]
    %v1013 = vld [vmem:[#allocation2 + $0x38] sm:$0xff]
    %v1014 = vld [vmem:[#allocation2 + $0x40] sm:$0xff]
    %v1015 = vld [vmem:[#allocation2 + $0x48] sm:$0xff]
    %v1016 = vld [vmem:[#allocation2 + $0x50] sm:$0xff]
    %v1017 = vld [vmem:[#allocation2 + $0x58] sm:$0xff]
    %v1018 = vld [vmem:[#allocation2 + $0x60] sm:$0xff]
    %v1019 = vld [vmem:[#allocation2 + $0x68] sm:$0xff]
    %v1020 = vld [vmem:[#allocation2 + $0x70] sm:$0xff]
    %v1021 = vld [vmem:[#allocation2 + $0x78] sm:$0xff]
    %v1022 = vld [vmem:[#allocation2 + $0x80] sm:$0xff]
    %v1023 = vld [vmem:[#allocation2 + $0x88] sm:$0xff]
    %1025 = vset.pattern.permute.xlu0 0
    %1026 = vperm.xlu0 %1025, %v1004
    %v1027 = vpop.permute.xlu0 %1026
    %1030 = vset.pattern.permute.xlu0 0
    %1031 = vperm.xlu0 %1030, %v1005
    %v1032 = vpop.permute.xlu0 %1031
    %v1036 = vunpack.c.l.b16 %v1002
    %v1037 = vunpack.c.h.b16 %v1002
    %v1038 = vunpack.c.l.b16 %v1003
    %v1039 = vunpack.c.h.b16 %v1003
    %v1040 = vpack.c.b16 %v1038, %v1036
    %v1041 = vpack.c.b16 %v1039, %v1037
    %v1044 = vsel %vm359, %v1041, 0
    %1046 = vmatprep.subr.bf16.mxu0 %v1007
    %1047 = vmatpush1.bf16.msra.mxu0 %v1006
    %1048 = vmatprep.subr.bf16.mxu0 %v1009
    %1049 = vmatpush1.bf16.msra.mxu0 %v1008
    %1050 = vmatprep.subr.bf16.mxu0 %v1011
    %1051 = vmatpush1.bf16.msra.mxu0 %v1010
    %1052 = vmatprep.subr.bf16.mxu0 %v1013
    %1053 = vmatpush1.bf16.msra.mxu0 %v1012
    %1054 = vmatprep.subr.bf16.mxu0 %v1015
    %1055 = vmatpush1.bf16.msra.mxu0 %v1014
    %1056 = vmatprep.subr.bf16.mxu0 %v1017
    %1057 = vmatpush1.bf16.msra.mxu0 %v1016
    %1058 = vmatprep.subr.bf16.mxu0 %v1019
    %1059 = vmatpush1.bf16.msra.mxu0 %v1018
    %1060 = vmatprep.subr.bf16.mxu0 %v1021
    %1061 = vmatpush1.bf16.msra.mxu0 %v1020
    %1062 = vmatprep.subr.bf16.mxu0 %v1023
    %1063 = vmatpush1.bf16.msra.mxu0 %v1022
    %1064 = vmatprep.subr.bf16.mxu0 0
    %1065 = vmatpush1.bf16.msra.mxu0 0
    %1066 = vmatprep.subr.bf16.mxu0 0
    %1067 = vmatpush1.bf16.msra.mxu0 0
    %1068 = vmatprep.subr.bf16.mxu0 0
    %1069 = vmatpush1.bf16.msra.mxu0 0
    %1070 = vmatprep.subr.bf16.mxu0 0
    %1071 = vmatpush1.bf16.msra.mxu0 0
    %1072 = vmatprep.subr.bf16.mxu0 0
    %1073 = vmatpush1.bf16.msra.mxu0 0
    %1074 = vmatprep.subr.bf16.mxu0 0
    %1075 = vmatpush1.bf16.msra.mxu0 0
    %1076 = vmatprep.subr.bf16.mxu0 0
    %1077 = vmatpush1.bf16.msra.mxu0 0
    %1078 = vmatprep.mubr.bf16.mxu0 %v1044
    %1079 = vmatmul.mubr.bf16.gmra.mrb[0].mxu0 %v1040
    %v1080 = vpop.f32.mrb[0].mxu0
    %v1081 = vadd.f32 %v1027, %v1080
    %v1082 = vpop.f32.mrb[0].mxu0
    %v1083 = vadd.f32 %v1027, %v1082
    %v1084 = vpop.f32.mrb[0].mxu0
    %v1085 = vadd.f32 %v1032, %v1084
    %v1086 = vpop.f32.mrb[0].mxu0
    %v1087 = vadd.f32 %v1032, %v1086
    %1088 = vdwg.mxu0
    %v1089 = vmax.f32 %v1081, 0.0
    %v1090 = vmax.f32 %v1083, 0.0
    %v1091 = vmax.f32 %v1085, 0.0
    %v1092 = vmax.f32 %v1087, 0.0
    %1093 = vrot.lane.b32.xlu0 %v1089, 17
    %v1094 = vpop.permute.xlu0 %1093
    %1095 = vrot.lane.b32.xlu0 %v1091, 17
    %v1096 = vpop.permute.xlu0 %1095
    %1097 = vrot.lane.b32.xlu0 %v1090, 17
    %v1098 = vpop.permute.xlu0 %1097
    %1099 = vrot.lane.b32.xlu0 %v1092, 17
    %v1100 = vpop.permute.xlu0 %1099
    %v1101 = vsel %vm99, %v1094, %v1098
    %v1102 = vsel %vm99, %v1096, %v1100
    %v1103 = vsel %vm99, %v1098, %v1094
    %v1104 = vsel %vm99, %v1100, %v1096
    %v1105 = vld [vmem:[%s1] sm:$0xff]
    %v1106 = vld [vmem:[%s1 + $0x8] sm:$0xff]
    %v1107 = vld [vmem:[%s1 + $0x10] sm:$0xff]
    %v1108 = vld [vmem:[%s1 + $0x18] sm:$0xff]
    %v1109 = vmul.f32 %v1103, %v1105
    %v1110 = vmul.f32 %v1101, %v1106
    %v1111 = vmul.f32 %v1104, %v1107
    %v1112 = vmul.f32 %v1102, %v1108
    %v1113 = vpack.c.bf16 %v1111, %v1109
    %v1114 = vpack.c.bf16 %v1112, %v1110
    %1115 = vst [vmem:[#allocation2] sm:$0xff] %v1113
    %1116 = vst [vmem:[#allocation2 + $0x8] sm:$0xff] %v1114
    %1117 = vrot.lane.b32.xlu0 %v1089, 16
    %v1118 = vpop.permute.xlu0 %1117
    %1119 = vrot.lane.b32.xlu0 %v1091, 16
    %v1120 = vpop.permute.xlu0 %1119
    %1121 = vrot.lane.b32.xlu0 %v1090, 16
    %v1122 = vpop.permute.xlu0 %1121
    %1123 = vrot.lane.b32.xlu0 %v1092, 16
    %v1124 = vpop.permute.xlu0 %1123
    %v1125 = vsel %vm124, %v1118, %v1122
    %v1126 = vsel %vm124, %v1120, %v1124
    %v1127 = vsel %vm124, %v1122, %v1118
    %v1128 = vsel %vm124, %v1124, %v1120
    %v1129 = vld [vmem:[%s1 + $0x20] sm:$0xff]
    %v1130 = vld [vmem:[%s1 + $0x28] sm:$0xff]
    %v1131 = vld [vmem:[%s1 + $0x30] sm:$0xff]
    %v1132 = vld [vmem:[%s1 + $0x38] sm:$0xff]
    %v1133 = vmul.f32 %v1127, %v1129
    %v1134 = vmul.f32 %v1125, %v1130
    %v1135 = vmul.f32 %v1128, %v1131
    %v1136 = vmul.f32 %v1126, %v1132
    %v1137 = vpack.c.bf16 %v1135, %v1133
    %v1138 = vpack.c.bf16 %v1136, %v1134
    %1139 = vst [vmem:[#allocation2 + $0x10] sm:$0xff] %v1137
    %1140 = vst [vmem:[#allocation2 + $0x18] sm:$0xff] %v1138
    %1141 = vrot.lane.b32.xlu0 %v1089, 15
    %v1142 = vpop.permute.xlu0 %1141
    %1143 = vrot.lane.b32.xlu0 %v1091, 15
    %v1144 = vpop.permute.xlu0 %1143
    %1145 = vrot.lane.b32.xlu0 %v1090, 15
    %v1146 = vpop.permute.xlu0 %1145
    %1147 = vrot.lane.b32.xlu0 %v1092, 15
    %v1148 = vpop.permute.xlu0 %1147
    %v1149 = vsel %vm149, %v1142, %v1146
    %v1150 = vsel %vm149, %v1144, %v1148
    %v1151 = vsel %vm149, %v1146, %v1142
    %v1152 = vsel %vm149, %v1148, %v1144
    %v1153 = vld [vmem:[%s1 + $0x40] sm:$0xff]
    %v1154 = vld [vmem:[%s1 + $0x48] sm:$0xff]
    %v1155 = vld [vmem:[%s1 + $0x50] sm:$0xff]
    %v1156 = vld [vmem:[%s1 + $0x58] sm:$0xff]
    %v1157 = vmul.f32 %v1151, %v1153
    %v1158 = vmul.f32 %v1149, %v1154
    %v1159 = vmul.f32 %v1152, %v1155
    %v1160 = vmul.f32 %v1150, %v1156
    %v1161 = vpack.c.bf16 %v1159, %v1157
    %v1162 = vpack.c.bf16 %v1160, %v1158
    %1163 = vst [vmem:[#allocation2 + $0x20] sm:$0xff] %v1161
    %1164 = vst [vmem:[#allocation2 + $0x28] sm:$0xff] %v1162
    %1165 = vrot.lane.b32.xlu0 %v1089, 1
    %v1166 = vpop.permute.xlu0 %1165
    %1167 = vrot.lane.b32.xlu0 %v1091, 1
    %v1168 = vpop.permute.xlu0 %1167
    %1169 = vrot.lane.b32.xlu0 %v1090, 1
    %v1170 = vpop.permute.xlu0 %1169
    %1171 = vrot.lane.b32.xlu0 %v1092, 1
    %v1172 = vpop.permute.xlu0 %1171
    %v1173 = vsel %vm174, %v1166, %v1170
    %v1174 = vsel %vm174, %v1168, %v1172
    %v1175 = vsel %vm174, %v1170, %v1166
    %v1176 = vsel %vm174, %v1172, %v1168
    %v1177 = vld [vmem:[%s1 + $0x60] sm:$0xff]
    %v1178 = vld [vmem:[%s1 + $0x68] sm:$0xff]
    %v1179 = vld [vmem:[%s1 + $0x70] sm:$0xff]
    %v1180 = vld [vmem:[%s1 + $0x78] sm:$0xff]
    %v1181 = vmul.f32 %v1175, %v1177
    %v1182 = vmul.f32 %v1173, %v1178
    %v1183 = vmul.f32 %v1176, %v1179
    %v1184 = vmul.f32 %v1174, %v1180
    %v1185 = vpack.c.bf16 %v1183, %v1181
    %v1186 = vpack.c.bf16 %v1184, %v1182
    %1187 = vst [vmem:[#allocation2 + $0x30] sm:$0xff] %v1185
    %1188 = vst [vmem:[#allocation2 + $0x38] sm:$0xff] %v1186
    %v1189 = vpack.c.bf16 %v1091, %v1089
    %v1190 = vpack.c.bf16 %v1092, %v1090
    %1191 = vst [vmem:[#allocation2 + $0x40] sm:$0xff] %v1189
    %1192 = vst [vmem:[#allocation2 + $0x48] sm:$0xff] %v1190
    %1193 = vrot.lane.b32.xlu0 %v1089, 127
    %v1194 = vpop.permute.xlu0 %1193
    %1195 = vrot.lane.b32.xlu0 %v1091, 127
    %v1196 = vpop.permute.xlu0 %1195
    %1197 = vrot.lane.b32.xlu0 %v1090, 127
    %v1198 = vpop.permute.xlu0 %1197
    %1199 = vrot.lane.b32.xlu0 %v1092, 127
    %v1200 = vpop.permute.xlu0 %1199
    %v1201 = vsel %vm203, %v1194, %v1198
    %v1202 = vsel %vm203, %v1196, %v1200
    %v1203 = vsel %vm203, %v1198, %v1194
    %v1204 = vsel %vm203, %v1200, %v1196
    %v1205 = vld [vmem:[%s1 + $0xa0] sm:$0xff]
    %v1206 = vld [vmem:[%s1 + $0xa8] sm:$0xff]
    %v1207 = vld [vmem:[%s1 + $0xb0] sm:$0xff]
    %v1208 = vld [vmem:[%s1 + $0xb8] sm:$0xff]
    %v1209 = vmul.f32 %v1201, %v1205
    %v1210 = vmul.f32 %v1203, %v1206
    %v1211 = vmul.f32 %v1202, %v1207
    %v1212 = vmul.f32 %v1204, %v1208
    %v1213 = vpack.c.bf16 %v1211, %v1209
    %v1214 = vpack.c.bf16 %v1212, %v1210
    %1215 = vst [vmem:[#allocation2 + $0x50] sm:$0xff] %v1213
    %1216 = vst [vmem:[#allocation2 + $0x58] sm:$0xff] %v1214
    %1217 = vrot.lane.b32.xlu0 %v1089, 113
    %v1218 = vpop.permute.xlu0 %1217
    %1219 = vrot.lane.b32.xlu0 %v1091, 113
    %v1220 = vpop.permute.xlu0 %1219
    %1221 = vrot.lane.b32.xlu0 %v1090, 113
    %v1222 = vpop.permute.xlu0 %1221
    %1223 = vrot.lane.b32.xlu0 %v1092, 113
    %v1224 = vpop.permute.xlu0 %1223
    %v1225 = vsel %vm228, %v1218, %v1222
    %v1226 = vsel %vm228, %v1220, %v1224
    %v1227 = vsel %vm228, %v1222, %v1218
    %v1228 = vsel %vm228, %v1224, %v1220
    %v1229 = vld [vmem:[%s1 + $0xc0] sm:$0xff]
    %v1230 = vld [vmem:[%s1 + $0xc8] sm:$0xff]
    %v1231 = vld [vmem:[%s1 + $0xd0] sm:$0xff]
    %v1232 = vld [vmem:[%s1 + $0xd8] sm:$0xff]
    %v1233 = vmul.f32 %v1225, %v1229
    %v1234 = vmul.f32 %v1227, %v1230
    %v1235 = vmul.f32 %v1226, %v1231
    %v1236 = vmul.f32 %v1228, %v1232
    %v1237 = vpack.c.bf16 %v1235, %v1233
    %v1238 = vpack.c.bf16 %v1236, %v1234
    %1239 = vst [vmem:[#allocation2 + $0x60] sm:$0xff] %v1237
    %1240 = vst [vmem:[#allocation2 + $0x68] sm:$0xff] %v1238
    %1241 = vrot.lane.b32.xlu0 %v1089, 112
    %v1242 = vpop.permute.xlu0 %1241
    %1243 = vrot.lane.b32.xlu0 %v1091, 112
    %v1244 = vpop.permute.xlu0 %1243
    %1245 = vrot.lane.b32.xlu0 %v1090, 112
    %v1246 = vpop.permute.xlu0 %1245
    %1247 = vrot.lane.b32.xlu0 %v1092, 112
    %v1248 = vpop.permute.xlu0 %1247
    %v1249 = vsel %vm253, %v1242, %v1246
    %v1250 = vsel %vm253, %v1244, %v1248
    %v1251 = vsel %vm253, %v1246, %v1242
    %v1252 = vsel %vm253, %v1248, %v1244
    %v1253 = vld [vmem:[%s1 + $0xe0] sm:$0xff]
    %v1254 = vld [vmem:[%s1 + $0xe8] sm:$0xff]
    %v1255 = vld [vmem:[%s1 + $0xf0] sm:$0xff]
    %v1256 = vld [vmem:[%s1 + $0xf8] sm:$0xff]
    %v1257 = vmul.f32 %v1249, %v1253
    %v1258 = vmul.f32 %v1251, %v1254
    %v1259 = vmul.f32 %v1250, %v1255
    %v1260 = vmul.f32 %v1252, %v1256
    %v1261 = vpack.c.bf16 %v1259, %v1257
    %v1262 = vpack.c.bf16 %v1260, %v1258
    %1263 = vst [vmem:[#allocation2 + $0x70] sm:$0xff] %v1261
    %1264 = vst [vmem:[#allocation2 + $0x78] sm:$0xff] %v1262
    %1265 = vrot.lane.b32.xlu0 %v1089, 111
    %v1266 = vpop.permute.xlu0 %1265
    %1267 = vrot.lane.b32.xlu0 %v1091, 111
    %v1268 = vpop.permute.xlu0 %1267
    %1269 = vrot.lane.b32.xlu0 %v1090, 111
    %v1270 = vpop.permute.xlu0 %1269
    %1271 = vrot.lane.b32.xlu0 %v1092, 111
    %v1272 = vpop.permute.xlu0 %1271
    %v1273 = vsel %vm278, %v1266, %v1270
    %v1274 = vsel %vm278, %v1268, %v1272
    %v1275 = vsel %vm278, %v1270, %v1266
    %v1276 = vsel %vm278, %v1272, %v1268
    %v1277 = vld [vmem:[%s1 + $0x100] sm:$0xff]
    %v1278 = vld [vmem:[%s1 + $0x108] sm:$0xff]
    %v1279 = vld [vmem:[%s1 + $0x110] sm:$0xff]
    %v1280 = vld [vmem:[%s1 + $0x118] sm:$0xff]
    %v1281 = vmul.f32 %v1273, %v1277
    %v1282 = vmul.f32 %v1275, %v1278
    %v1283 = vmul.f32 %v1274, %v1279
    %v1284 = vmul.f32 %v1276, %v1280
    %v1285 = vpack.c.bf16 %v1283, %v1281
    %v1286 = vpack.c.bf16 %v1284, %v1282
    %1287 = vst [vmem:[#allocation2 + $0x80] sm:$0xff] %v1285
    %1288 = vst [vmem:[#allocation2 + $0x88] sm:$0xff] %v1286
    %v1289 = vld [vmem:[#allocation5] sm:$0xff]
    %v1290 = vld [vmem:[#allocation5 + $0x8] sm:$0xff]
    %v1291 = vld [vmem:[%s9] sm:$0xff]
    %v1292 = vld [vmem:[%s9 + $0x8] sm:$0xff]
    %v1293 = vld [vmem:[#allocation2] sm:$0xff]
    %v1294 = vld [vmem:[#allocation2 + $0x8] sm:$0xff]
    %v1295 = vld [vmem:[#allocation2 + $0x10] sm:$0xff]
    %v1296 = vld [vmem:[#allocation2 + $0x18] sm:$0xff]
    %v1297 = vld [vmem:[#allocation2 + $0x20] sm:$0xff]
    %v1298 = vld [vmem:[#allocation2 + $0x28] sm:$0xff]
    %v1299 = vld [vmem:[#allocation2 + $0x30] sm:$0xff]
    %v1300 = vld [vmem:[#allocation2 + $0x38] sm:$0xff]
    %v1301 = vld [vmem:[#allocation2 + $0x40] sm:$0xff]
    %v1302 = vld [vmem:[#allocation2 + $0x48] sm:$0xff]
    %v1303 = vld [vmem:[#allocation2 + $0x50] sm:$0xff]
    %v1304 = vld [vmem:[#allocation2 + $0x58] sm:$0xff]
    %v1305 = vld [vmem:[#allocation2 + $0x60] sm:$0xff]
    %v1306 = vld [vmem:[#allocation2 + $0x68] sm:$0xff]
    %v1307 = vld [vmem:[#allocation2 + $0x70] sm:$0xff]
    %v1308 = vld [vmem:[#allocation2 + $0x78] sm:$0xff]
    %v1309 = vld [vmem:[#allocation2 + $0x80] sm:$0xff]
    %v1310 = vld [vmem:[#allocation2 + $0x88] sm:$0xff]
    %1312 = vset.pattern.permute.xlu0 0
    %1313 = vperm.xlu0 %1312, %v1291
    %v1314 = vpop.permute.xlu0 %1313
    %1317 = vset.pattern.permute.xlu0 0
    %1318 = vperm.xlu0 %1317, %v1292
    %v1319 = vpop.permute.xlu0 %1318
    %v1323 = vunpack.c.l.b16 %v1289
    %v1324 = vunpack.c.h.b16 %v1289
    %v1325 = vunpack.c.l.b16 %v1290
    %v1326 = vunpack.c.h.b16 %v1290
    %v1327 = vpack.c.b16 %v1325, %v1323
    %v1328 = vpack.c.b16 %v1326, %v1324
    %v1331 = vsel %vm359, %v1328, 0
    %1333 = vmatprep.subr.bf16.mxu0 %v1294
    %1334 = vmatpush1.bf16.msra.mxu0 %v1293
    %1335 = vmatprep.subr.bf16.mxu0 %v1296
    %1336 = vmatpush1.bf16.msra.mxu0 %v1295
    %1337 = vmatprep.subr.bf16.mxu0 %v1298
    %1338 = vmatpush1.bf16.msra.mxu0 %v1297
    %1339 = vmatprep.subr.bf16.mxu0 %v1300
    %1340 = vmatpush1.bf16.msra.mxu0 %v1299
    %1341 = vmatprep.subr.bf16.mxu0 %v1302
    %1342 = vmatpush1.bf16.msra.mxu0 %v1301
    %1343 = vmatprep.subr.bf16.mxu0 %v1304
    %1344 = vmatpush1.bf16.msra.mxu0 %v1303
    %1345 = vmatprep.subr.bf16.mxu0 %v1306
    %1346 = vmatpush1.bf16.msra.mxu0 %v1305
    %1347 = vmatprep.subr.bf16.mxu0 %v1308
    %1348 = vmatpush1.bf16.msra.mxu0 %v1307
    %1349 = vmatprep.subr.bf16.mxu0 %v1310
    %1350 = vmatpush1.bf16.msra.mxu0 %v1309
    %1351 = vmatprep.subr.bf16.mxu0 0
    %1352 = vmatpush1.bf16.msra.mxu0 0
    %1353 = vmatprep.subr.bf16.mxu0 0
    %1354 = vmatpush1.bf16.msra.mxu0 0
    %1355 = vmatprep.subr.bf16.mxu0 0
    %1356 = vmatpush1.bf16.msra.mxu0 0
    %1357 = vmatprep.subr.bf16.mxu0 0
    %1358 = vmatpush1.bf16.msra.mxu0 0
    %1359 = vmatprep.subr.bf16.mxu0 0
    %1360 = vmatpush1.bf16.msra.mxu0 0
    %1361 = vmatprep.subr.bf16.mxu0 0
    %1362 = vmatpush1.bf16.msra.mxu0 0
    %1363 = vmatprep.subr.bf16.mxu0 0
    %1364 = vmatpush1.bf16.msra.mxu0 0
    %1365 = vmatprep.mubr.bf16.mxu0 %v1331
    %1366 = vmatmul.mubr.bf16.gmra.mrb[0].mxu0 %v1327
    %v1367 = vpop.f32.mrb[0].mxu0
    %v1368 = vadd.f32 %v1314, %v1367
    %v1369 = vpop.f32.mrb[0].mxu0
    %v1370 = vadd.f32 %v1314, %v1369
    %v1371 = vpop.f32.mrb[0].mxu0
    %v1372 = vadd.f32 %v1319, %v1371
    %v1373 = vpop.f32.mrb[0].mxu0
    %v1374 = vadd.f32 %v1319, %v1373
    %1375 = vdwg.mxu0
    %s1377 = vtos %v520
    %v1378 = vstv %s1377
    %v1380 = vmul.f32 %v1378, %v1368
    %v1381 = vmul.f32 %v1378, %v1370
    %v1382 = vmul.f32 %v1378, %v1372
    %v1383 = vmul.f32 %v1378, %v1374
    %v1384 = vadd.f32 %v423, %v1380
    %v1385 = vadd.f32 %v424, %v1381
    %v1386 = vadd.f32 %v425, %v1382
    %v1387 = vadd.f32 %v426, %v1383
    %v1388 = vmax.f32 %v1384, 0.0
    %v1389 = vmax.f32 %v1385, 0.0
    %v1390 = vmax.f32 %v1386, 0.0
    %v1391 = vmax.f32 %v1387, 0.0
    %1392 = vrot.lane.b32.xlu0 %v1388, 17
    %v1393 = vpop.permute.xlu0 %1392
    %1394 = vrot.lane.b32.xlu0 %v1390, 17
    %v1395 = vpop.permute.xlu0 %1394
    %1396 = vrot.lane.b32.xlu0 %v1389, 17
    %v1397 = vpop.permute.xlu0 %1396
    %1398 = vrot.lane.b32.xlu0 %v1391, 17
    %v1399 = vpop.permute.xlu0 %1398
    %v1400 = vsel %vm99, %v1393, %v1397
    %v1401 = vsel %vm99, %v1395, %v1399
    %v1402 = vsel %vm99, %v1397, %v1393
    %v1403 = vsel %vm99, %v1399, %v1395
    %v1404 = vld [vmem:[%s1] sm:$0xff]
    %v1405 = vld [vmem:[%s1 + $0x8] sm:$0xff]
    %v1406 = vld [vmem:[%s1 + $0x10] sm:$0xff]
    %v1407 = vld [vmem:[%s1 + $0x18] sm:$0xff]
    %v1408 = vmul.f32 %v1402, %v1404
    %v1409 = vmul.f32 %v1400, %v1405
    %v1410 = vmul.f32 %v1403, %v1406
    %v1411 = vmul.f32 %v1401, %v1407
    %v1412 = vpack.c.bf16 %v1410, %v1408
    %v1413 = vpack.c.bf16 %v1411, %v1409
    %1414 = vst [vmem:[#allocation2] sm:$0xff] %v1412
    %1415 = vst [vmem:[#allocation2 + $0x8] sm:$0xff] %v1413
    %1416 = vrot.lane.b32.xlu0 %v1388, 16
    %v1417 = vpop.permute.xlu0 %1416
    %1418 = vrot.lane.b32.xlu0 %v1390, 16
    %v1419 = vpop.permute.xlu0 %1418
    %1420 = vrot.lane.b32.xlu0 %v1389, 16
    %v1421 = vpop.permute.xlu0 %1420
    %1422 = vrot.lane.b32.xlu0 %v1391, 16
    %v1423 = vpop.permute.xlu0 %1422
    %v1424 = vsel %vm124, %v1417, %v1421
    %v1425 = vsel %vm124, %v1419, %v1423
    %v1426 = vsel %vm124, %v1421, %v1417
    %v1427 = vsel %vm124, %v1423, %v1419
    %v1428 = vld [vmem:[%s1 + $0x20] sm:$0xff]
    %v1429 = vld [vmem:[%s1 + $0x28] sm:$0xff]
    %v1430 = vld [vmem:[%s1 + $0x30] sm:$0xff]
    %v1431 = vld [vmem:[%s1 + $0x38] sm:$0xff]
    %v1432 = vmul.f32 %v1426, %v1428
    %v1433 = vmul.f32 %v1424, %v1429
    %v1434 = vmul.f32 %v1427, %v1430
    %v1435 = vmul.f32 %v1425, %v1431
    %v1436 = vpack.c.bf16 %v1434, %v1432
    %v1437 = vpack.c.bf16 %v1435, %v1433
    %1438 = vst [vmem:[#allocation2 + $0x10] sm:$0xff] %v1436
    %1439 = vst [vmem:[#allocation2 + $0x18] sm:$0xff] %v1437
    %1440 = vrot.lane.b32.xlu0 %v1388, 15
    %v1441 = vpop.permute.xlu0 %1440
    %1442 = vrot.lane.b32.xlu0 %v1390, 15
    %v1443 = vpop.permute.xlu0 %1442
    %1444 = vrot.lane.b32.xlu0 %v1389, 15
    %v1445 = vpop.permute.xlu0 %1444
    %1446 = vrot.lane.b32.xlu0 %v1391, 15
    %v1447 = vpop.permute.xlu0 %1446
    %v1448 = vsel %vm149, %v1441, %v1445
    %v1449 = vsel %vm149, %v1443, %v1447
    %v1450 = vsel %vm149, %v1445, %v1441
    %v1451 = vsel %vm149, %v1447, %v1443
    %v1452 = vld [vmem:[%s1 + $0x40] sm:$0xff]
    %v1453 = vld [vmem:[%s1 + $0x48] sm:$0xff]
    %v1454 = vld [vmem:[%s1 + $0x50] sm:$0xff]
    %v1455 = vld [vmem:[%s1 + $0x58] sm:$0xff]
    %v1456 = vmul.f32 %v1450, %v1452
    %v1457 = vmul.f32 %v1448, %v1453
    %v1458 = vmul.f32 %v1451, %v1454
    %v1459 = vmul.f32 %v1449, %v1455
    %v1460 = vpack.c.bf16 %v1458, %v1456
    %v1461 = vpack.c.bf16 %v1459, %v1457
    %1462 = vst [vmem:[#allocation2 + $0x20] sm:$0xff] %v1460
    %1463 = vst [vmem:[#allocation2 + $0x28] sm:$0xff] %v1461
    %1464 = vrot.lane.b32.xlu0 %v1388, 1
    %v1465 = vpop.permute.xlu0 %1464
    %1466 = vrot.lane.b32.xlu0 %v1390, 1
    %v1467 = vpop.permute.xlu0 %1466
    %1468 = vrot.lane.b32.xlu0 %v1389, 1
    %v1469 = vpop.permute.xlu0 %1468
    %1470 = vrot.lane.b32.xlu0 %v1391, 1
    %v1471 = vpop.permute.xlu0 %1470
    %v1472 = vsel %vm174, %v1465, %v1469
    %v1473 = vsel %vm174, %v1467, %v1471
    %v1474 = vsel %vm174, %v1469, %v1465
    %v1475 = vsel %vm174, %v1471, %v1467
    %v1476 = vld [vmem:[%s1 + $0x60] sm:$0xff]
    %v1477 = vld [vmem:[%s1 + $0x68] sm:$0xff]
    %v1478 = vld [vmem:[%s1 + $0x70] sm:$0xff]
    %v1479 = vld [vmem:[%s1 + $0x78] sm:$0xff]
    %v1480 = vmul.f32 %v1474, %v1476
    %v1481 = vmul.f32 %v1472, %v1477
    %v1482 = vmul.f32 %v1475, %v1478
    %v1483 = vmul.f32 %v1473, %v1479
    %v1484 = vpack.c.bf16 %v1482, %v1480
    %v1485 = vpack.c.bf16 %v1483, %v1481
    %1486 = vst [vmem:[#allocation2 + $0x30] sm:$0xff] %v1484
    %1487 = vst [vmem:[#allocation2 + $0x38] sm:$0xff] %v1485
    %v1488 = vpack.c.bf16 %v1390, %v1388
    %v1489 = vpack.c.bf16 %v1391, %v1389
    %1490 = vst [vmem:[#allocation2 + $0x40] sm:$0xff] %v1488
    %1491 = vst [vmem:[#allocation2 + $0x48] sm:$0xff] %v1489
    %1492 = vrot.lane.b32.xlu0 %v1388, 127
    %v1493 = vpop.permute.xlu0 %1492
    %1494 = vrot.lane.b32.xlu0 %v1390, 127
    %v1495 = vpop.permute.xlu0 %1494
    %1496 = vrot.lane.b32.xlu0 %v1389, 127
    %v1497 = vpop.permute.xlu0 %1496
    %1498 = vrot.lane.b32.xlu0 %v1391, 127
    %v1499 = vpop.permute.xlu0 %1498
    %v1500 = vsel %vm203, %v1493, %v1497
    %v1501 = vsel %vm203, %v1495, %v1499
    %v1502 = vsel %vm203, %v1497, %v1493
    %v1503 = vsel %vm203, %v1499, %v1495
    %v1504 = vld [vmem:[%s1 + $0xa0] sm:$0xff]
    %v1505 = vld [vmem:[%s1 + $0xa8] sm:$0xff]
    %v1506 = vld [vmem:[%s1 + $0xb0] sm:$0xff]
    %v1507 = vld [vmem:[%s1 + $0xb8] sm:$0xff]
    %v1508 = vmul.f32 %v1500, %v1504
    %v1509 = vmul.f32 %v1502, %v1505
    %v1510 = vmul.f32 %v1501, %v1506
    %v1511 = vmul.f32 %v1503, %v1507
    %v1512 = vpack.c.bf16 %v1510, %v1508
    %v1513 = vpack.c.bf16 %v1511, %v1509
    %1514 = vst [vmem:[#allocation2 + $0x50] sm:$0xff] %v1512
    %1515 = vst [vmem:[#allocation2 + $0x58] sm:$0xff] %v1513
    %1516 = vrot.lane.b32.xlu0 %v1388, 113
    %v1517 = vpop.permute.xlu0 %1516
    %1518 = vrot.lane.b32.xlu0 %v1390, 113
    %v1519 = vpop.permute.xlu0 %1518
    %1520 = vrot.lane.b32.xlu0 %v1389, 113
    %v1521 = vpop.permute.xlu0 %1520
    %1522 = vrot.lane.b32.xlu0 %v1391, 113
    %v1523 = vpop.permute.xlu0 %1522
    %v1524 = vsel %vm228, %v1517, %v1521
    %v1525 = vsel %vm228, %v1519, %v1523
    %v1526 = vsel %vm228, %v1521, %v1517
    %v1527 = vsel %vm228, %v1523, %v1519
    %v1528 = vld [vmem:[%s1 + $0xc0] sm:$0xff]
    %v1529 = vld [vmem:[%s1 + $0xc8] sm:$0xff]
    %v1530 = vld [vmem:[%s1 + $0xd0] sm:$0xff]
    %v1531 = vld [vmem:[%s1 + $0xd8] sm:$0xff]
    %v1532 = vmul.f32 %v1524, %v1528
    %v1533 = vmul.f32 %v1526, %v1529
    %v1534 = vmul.f32 %v1525, %v1530
    %v1535 = vmul.f32 %v1527, %v1531
    %v1536 = vpack.c.bf16 %v1534, %v1532
    %v1537 = vpack.c.bf16 %v1535, %v1533
    %1538 = vst [vmem:[#allocation2 + $0x60] sm:$0xff] %v1536
    %1539 = vst [vmem:[#allocation2 + $0x68] sm:$0xff] %v1537
    %1540 = vrot.lane.b32.xlu0 %v1388, 112
    %v1541 = vpop.permute.xlu0 %1540
    %1542 = vrot.lane.b32.xlu0 %v1390, 112
    %v1543 = vpop.permute.xlu0 %1542
    %1544 = vrot.lane.b32.xlu0 %v1389, 112
    %v1545 = vpop.permute.xlu0 %1544
    %1546 = vrot.lane.b32.xlu0 %v1391, 112
    %v1547 = vpop.permute.xlu0 %1546
    %v1548 = vsel %vm253, %v1541, %v1545
    %v1549 = vsel %vm253, %v1543, %v1547
    %v1550 = vsel %vm253, %v1545, %v1541
    %v1551 = vsel %vm253, %v1547, %v1543
    %v1552 = vld [vmem:[%s1 + $0xe0] sm:$0xff]
    %v1553 = vld [vmem:[%s1 + $0xe8] sm:$0xff]
    %v1554 = vld [vmem:[%s1 + $0xf0] sm:$0xff]
    %v1555 = vld [vmem:[%s1 + $0xf8] sm:$0xff]
    %v1556 = vmul.f32 %v1548, %v1552
    %v1557 = vmul.f32 %v1550, %v1553
    %v1558 = vmul.f32 %v1549, %v1554
    %v1559 = vmul.f32 %v1551, %v1555
    %v1560 = vpack.c.bf16 %v1558, %v1556
    %v1561 = vpack.c.bf16 %v1559, %v1557
    %1562 = vst [vmem:[#allocation2 + $0x70] sm:$0xff] %v1560
    %1563 = vst [vmem:[#allocation2 + $0x78] sm:$0xff] %v1561
    %1564 = vrot.lane.b32.xlu0 %v1388, 111
    %v1565 = vpop.permute.xlu0 %1564
    %1566 = vrot.lane.b32.xlu0 %v1390, 111
    %v1567 = vpop.permute.xlu0 %1566
    %1568 = vrot.lane.b32.xlu0 %v1389, 111
    %v1569 = vpop.permute.xlu0 %1568
    %1570 = vrot.lane.b32.xlu0 %v1391, 111
    %v1571 = vpop.permute.xlu0 %1570
    %v1572 = vsel %vm278, %v1565, %v1569
    %v1573 = vsel %vm278, %v1567, %v1571
    %v1574 = vsel %vm278, %v1569, %v1565
    %v1575 = vsel %vm278, %v1571, %v1567
    %v1576 = vld [vmem:[%s1 + $0x100] sm:$0xff]
    %v1577 = vld [vmem:[%s1 + $0x108] sm:$0xff]
    %v1578 = vld [vmem:[%s1 + $0x110] sm:$0xff]
    %v1579 = vld [vmem:[%s1 + $0x118] sm:$0xff]
    %v1580 = vmul.f32 %v1572, %v1576
    %v1581 = vmul.f32 %v1574, %v1577
    %v1582 = vmul.f32 %v1573, %v1578
    %v1583 = vmul.f32 %v1575, %v1579
    %v1584 = vpack.c.bf16 %v1582, %v1580
    %v1585 = vpack.c.bf16 %v1583, %v1581
    %1586 = vst [vmem:[#allocation2 + $0x80] sm:$0xff] %v1584
    %1587 = vst [vmem:[#allocation2 + $0x88] sm:$0xff] %v1585
    %s1588 = scalar_lea.vmem [#allocation3], 16
    %v1589 = vld [vmem:[%s1588] sm:$0xff]
    %v1590 = vld [vmem:[%s1588 + $0x8] sm:$0xff]
    %s1591 = scalar_lea.vmem %s7, 16
    %v1592 = vld [vmem:[%s1591] sm:$0xff]
    %v1593 = vld [vmem:[%s1591 + $0x8] sm:$0xff]
    %v1594 = vld [vmem:[#allocation2] sm:$0xff]
    %v1595 = vld [vmem:[#allocation2 + $0x8] sm:$0xff]
    %v1596 = vld [vmem:[#allocation2 + $0x10] sm:$0xff]
    %v1597 = vld [vmem:[#allocation2 + $0x18] sm:$0xff]
    %v1598 = vld [vmem:[#allocation2 + $0x20] sm:$0xff]
    %v1599 = vld [vmem:[#allocation2 + $0x28] sm:$0xff]
    %v1600 = vld [vmem:[#allocation2 + $0x30] sm:$0xff]
    %v1601 = vld [vmem:[#allocation2 + $0x38] sm:$0xff]
    %v1602 = vld [vmem:[#allocation2 + $0x40] sm:$0xff]
    %v1603 = vld [vmem:[#allocation2 + $0x48] sm:$0xff]
    %v1604 = vld [vmem:[#allocation2 + $0x50] sm:$0xff]
    %v1605 = vld [vmem:[#allocation2 + $0x58] sm:$0xff]
    %v1606 = vld [vmem:[#allocation2 + $0x60] sm:$0xff]
    %v1607 = vld [vmem:[#allocation2 + $0x68] sm:$0xff]
    %v1608 = vld [vmem:[#allocation2 + $0x70] sm:$0xff]
    %v1609 = vld [vmem:[#allocation2 + $0x78] sm:$0xff]
    %v1610 = vld [vmem:[#allocation2 + $0x80] sm:$0xff]
    %v1611 = vld [vmem:[#allocation2 + $0x88] sm:$0xff]
    %1613 = vset.pattern.permute.xlu0 0
    %1614 = vperm.xlu0 %1613, %v1592
    %v1615 = vpop.permute.xlu0 %1614
    %1618 = vset.pattern.permute.xlu0 0
    %1619 = vperm.xlu0 %1618, %v1593
    %v1620 = vpop.permute.xlu0 %1619
    %v1624 = vunpack.c.l.b16 %v1589
    %v1625 = vunpack.c.h.b16 %v1589
    %v1626 = vunpack.c.l.b16 %v1590
    %v1627 = vunpack.c.h.b16 %v1590
    %v1628 = vpack.c.b16 %v1626, %v1624
    %v1629 = vpack.c.b16 %v1627, %v1625
    %v1632 = vsel %vm359, %v1629, 0
    %1634 = vmatprep.subr.bf16.mxu0 %v1595
    %1635 = vmatpush1.bf16.msra.mxu0 %v1594
    %1636 = vmatprep.subr.bf16.mxu0 %v1597
    %1637 = vmatpush1.bf16.msra.mxu0 %v1596
    %1638 = vmatprep.subr.bf16.mxu0 %v1599
    %1639 = vmatpush1.bf16.msra.mxu0 %v1598
    %1640 = vmatprep.subr.bf16.mxu0 %v1601
    %1641 = vmatpush1.bf16.msra.mxu0 %v1600
    %1642 = vmatprep.subr.bf16.mxu0 %v1603
    %1643 = vmatpush1.bf16.msra.mxu0 %v1602
    %1644 = vmatprep.subr.bf16.mxu0 %v1605
    %1645 = vmatpush1.bf16.msra.mxu0 %v1604
    %1646 = vmatprep.subr.bf16.mxu0 %v1607
    %1647 = vmatpush1.bf16.msra.mxu0 %v1606
    %1648 = vmatprep.subr.bf16.mxu0 %v1609
    %1649 = vmatpush1.bf16.msra.mxu0 %v1608
    %1650 = vmatprep.subr.bf16.mxu0 %v1611
    %1651 = vmatpush1.bf16.msra.mxu0 %v1610
    %1652 = vmatprep.subr.bf16.mxu0 0
    %1653 = vmatpush1.bf16.msra.mxu0 0
    %1654 = vmatprep.subr.bf16.mxu0 0
    %1655 = vmatpush1.bf16.msra.mxu0 0
    %1656 = vmatprep.subr.bf16.mxu0 0
    %1657 = vmatpush1.bf16.msra.mxu0 0
    %1658 = vmatprep.subr.bf16.mxu0 0
    %1659 = vmatpush1.bf16.msra.mxu0 0
    %1660 = vmatprep.subr.bf16.mxu0 0
    %1661 = vmatpush1.bf16.msra.mxu0 0
    %1662 = vmatprep.subr.bf16.mxu0 0
    %1663 = vmatpush1.bf16.msra.mxu0 0
    %1664 = vmatprep.subr.bf16.mxu0 0
    %1665 = vmatpush1.bf16.msra.mxu0 0
    %1666 = vmatprep.mubr.bf16.mxu0 %v1632
    %1667 = vmatmul.mubr.bf16.gmra.mrb[0].mxu0 %v1628
    %v1668 = vpop.f32.mrb[0].mxu0
    %v1669 = vadd.f32 %v1615, %v1668
    %v1670 = vpop.f32.mrb[0].mxu0
    %v1671 = vadd.f32 %v1615, %v1670
    %v1672 = vpop.f32.mrb[0].mxu0
    %v1673 = vadd.f32 %v1620, %v1672
    %v1674 = vpop.f32.mrb[0].mxu0
    %v1675 = vadd.f32 %v1620, %v1674
    %1676 = vdwg.mxu0
    %v1677 = vmax.f32 %v1669, 0.0
    %v1678 = vmax.f32 %v1671, 0.0
    %v1679 = vmax.f32 %v1673, 0.0
    %v1680 = vmax.f32 %v1675, 0.0
    %1681 = vrot.lane.b32.xlu0 %v1677, 17
    %v1682 = vpop.permute.xlu0 %1681
    %1683 = vrot.lane.b32.xlu0 %v1679, 17
    %v1684 = vpop.permute.xlu0 %1683
    %1685 = vrot.lane.b32.xlu0 %v1678, 17
    %v1686 = vpop.permute.xlu0 %1685
    %1687 = vrot.lane.b32.xlu0 %v1680, 17
    %v1688 = vpop.permute.xlu0 %1687
    %v1689 = vsel %vm99, %v1682, %v1686
    %v1690 = vsel %vm99, %v1684, %v1688
    %v1691 = vsel %vm99, %v1686, %v1682
    %v1692 = vsel %vm99, %v1688, %v1684
    %v1693 = vld [vmem:[%s1] sm:$0xff]
    %v1694 = vld [vmem:[%s1 + $0x8] sm:$0xff]
    %v1695 = vld [vmem:[%s1 + $0x10] sm:$0xff]
    %v1696 = vld [vmem:[%s1 + $0x18] sm:$0xff]
    %v1697 = vmul.f32 %v1691, %v1693
    %v1698 = vmul.f32 %v1689, %v1694
    %v1699 = vmul.f32 %v1692, %v1695
    %v1700 = vmul.f32 %v1690, %v1696
    %v1701 = vpack.c.bf16 %v1699, %v1697
    %v1702 = vpack.c.bf16 %v1700, %v1698
    %1703 = vst [vmem:[#allocation2] sm:$0xff] %v1701
    %1704 = vst [vmem:[#allocation2 + $0x8] sm:$0xff] %v1702
    %1705 = vrot.lane.b32.xlu0 %v1677, 16
    %v1706 = vpop.permute.xlu0 %1705
    %1707 = vrot.lane.b32.xlu0 %v1679, 16
    %v1708 = vpop.permute.xlu0 %1707
    %1709 = vrot.lane.b32.xlu0 %v1678, 16
    %v1710 = vpop.permute.xlu0 %1709
    %1711 = vrot.lane.b32.xlu0 %v1680, 16
    %v1712 = vpop.permute.xlu0 %1711
    %v1713 = vsel %vm124, %v1706, %v1710
    %v1714 = vsel %vm124, %v1708, %v1712
    %v1715 = vsel %vm124, %v1710, %v1706
    %v1716 = vsel %vm124, %v1712, %v1708
    %v1717 = vld [vmem:[%s1 + $0x20] sm:$0xff]
    %v1718 = vld [vmem:[%s1 + $0x28] sm:$0xff]
    %v1719 = vld [vmem:[%s1 + $0x30] sm:$0xff]
    %v1720 = vld [vmem:[%s1 + $0x38] sm:$0xff]
    %v1721 = vmul.f32 %v1715, %v1717
    %v1722 = vmul.f32 %v1713, %v1718
    %v1723 = vmul.f32 %v1716, %v1719
    %v1724 = vmul.f32 %v1714, %v1720
    %v1725 = vpack.c.bf16 %v1723, %v1721
    %v1726 = vpack.c.bf16 %v1724, %v1722
    %1727 = vst [vmem:[#allocation2 + $0x10] sm:$0xff] %v1725
    %1728 = vst [vmem:[#allocation2 + $0x18] sm:$0xff] %v1726
    %1729 = vrot.lane.b32.xlu0 %v1677, 15
    %v1730 = vpop.permute.xlu0 %1729
    %1731 = vrot.lane.b32.xlu0 %v1679, 15
    %v1732 = vpop.permute.xlu0 %1731
    %1733 = vrot.lane.b32.xlu0 %v1678, 15
    %v1734 = vpop.permute.xlu0 %1733
    %1735 = vrot.lane.b32.xlu0 %v1680, 15
    %v1736 = vpop.permute.xlu0 %1735
    %v1737 = vsel %vm149, %v1730, %v1734
    %v1738 = vsel %vm149, %v1732, %v1736
    %v1739 = vsel %vm149, %v1734, %v1730
    %v1740 = vsel %vm149, %v1736, %v1732
    %v1741 = vld [vmem:[%s1 + $0x40] sm:$0xff]
    %v1742 = vld [vmem:[%s1 + $0x48] sm:$0xff]
    %v1743 = vld [vmem:[%s1 + $0x50] sm:$0xff]
    %v1744 = vld [vmem:[%s1 + $0x58] sm:$0xff]
    %v1745 = vmul.f32 %v1739, %v1741
    %v1746 = vmul.f32 %v1737, %v1742
    %v1747 = vmul.f32 %v1740, %v1743
    %v1748 = vmul.f32 %v1738, %v1744
    %v1749 = vpack.c.bf16 %v1747, %v1745
    %v1750 = vpack.c.bf16 %v1748, %v1746
    %1751 = vst [vmem:[#allocation2 + $0x20] sm:$0xff] %v1749
    %1752 = vst [vmem:[#allocation2 + $0x28] sm:$0xff] %v1750
    %1753 = vrot.lane.b32.xlu0 %v1677, 1
    %v1754 = vpop.permute.xlu0 %1753
    %1755 = vrot.lane.b32.xlu0 %v1679, 1
    %v1756 = vpop.permute.xlu0 %1755
    %1757 = vrot.lane.b32.xlu0 %v1678, 1
    %v1758 = vpop.permute.xlu0 %1757
    %1759 = vrot.lane.b32.xlu0 %v1680, 1
    %v1760 = vpop.permute.xlu0 %1759
    %v1761 = vsel %vm174, %v1754, %v1758
    %v1762 = vsel %vm174, %v1756, %v1760
    %v1763 = vsel %vm174, %v1758, %v1754
    %v1764 = vsel %vm174, %v1760, %v1756
    %v1765 = vld [vmem:[%s1 + $0x60] sm:$0xff]
    %v1766 = vld [vmem:[%s1 + $0x68] sm:$0xff]
    %v1767 = vld [vmem:[%s1 + $0x70] sm:$0xff]
    %v1768 = vld [vmem:[%s1 + $0x78] sm:$0xff]
    %v1769 = vmul.f32 %v1763, %v1765
    %v1770 = vmul.f32 %v1761, %v1766
    %v1771 = vmul.f32 %v1764, %v1767
    %v1772 = vmul.f32 %v1762, %v1768
    %v1773 = vpack.c.bf16 %v1771, %v1769
    %v1774 = vpack.c.bf16 %v1772, %v1770
    %1775 = vst [vmem:[#allocation2 + $0x30] sm:$0xff] %v1773
    %1776 = vst [vmem:[#allocation2 + $0x38] sm:$0xff] %v1774
    %v1777 = vpack.c.bf16 %v1679, %v1677
    %v1778 = vpack.c.bf16 %v1680, %v1678
    %1779 = vst [vmem:[#allocation2 + $0x40] sm:$0xff] %v1777
    %1780 = vst [vmem:[#allocation2 + $0x48] sm:$0xff] %v1778
    %1781 = vrot.lane.b32.xlu0 %v1677, 127
    %v1782 = vpop.permute.xlu0 %1781
    %1783 = vrot.lane.b32.xlu0 %v1679, 127
    %v1784 = vpop.permute.xlu0 %1783
    %1785 = vrot.lane.b32.xlu0 %v1678, 127
    %v1786 = vpop.permute.xlu0 %1785
    %1787 = vrot.lane.b32.xlu0 %v1680, 127
    %v1788 = vpop.permute.xlu0 %1787
    %v1789 = vsel %vm203, %v1782, %v1786
    %v1790 = vsel %vm203, %v1784, %v1788
    %v1791 = vsel %vm203, %v1786, %v1782
    %v1792 = vsel %vm203, %v1788, %v1784
    %v1793 = vld [vmem:[%s1 + $0xa0] sm:$0xff]
    %v1794 = vld [vmem:[%s1 + $0xa8] sm:$0xff]
    %v1795 = vld [vmem:[%s1 + $0xb0] sm:$0xff]
    %v1796 = vld [vmem:[%s1 + $0xb8] sm:$0xff]
    %v1797 = vmul.f32 %v1789, %v1793
    %v1798 = vmul.f32 %v1791, %v1794
    %v1799 = vmul.f32 %v1790, %v1795
    %v1800 = vmul.f32 %v1792, %v1796
    %v1801 = vpack.c.bf16 %v1799, %v1797
    %v1802 = vpack.c.bf16 %v1800, %v1798
    %1803 = vst [vmem:[#allocation2 + $0x50] sm:$0xff] %v1801
    %1804 = vst [vmem:[#allocation2 + $0x58] sm:$0xff] %v1802
    %1805 = vrot.lane.b32.xlu0 %v1677, 113
    %v1806 = vpop.permute.xlu0 %1805
    %1807 = vrot.lane.b32.xlu0 %v1679, 113
    %v1808 = vpop.permute.xlu0 %1807
    %1809 = vrot.lane.b32.xlu0 %v1678, 113
    %v1810 = vpop.permute.xlu0 %1809
    %1811 = vrot.lane.b32.xlu0 %v1680, 113
    %v1812 = vpop.permute.xlu0 %1811
    %v1813 = vsel %vm228, %v1806, %v1810
    %v1814 = vsel %vm228, %v1808, %v1812
    %v1815 = vsel %vm228, %v1810, %v1806
    %v1816 = vsel %vm228, %v1812, %v1808
    %v1817 = vld [vmem:[%s1 + $0xc0] sm:$0xff]
    %v1818 = vld [vmem:[%s1 + $0xc8] sm:$0xff]
    %v1819 = vld [vmem:[%s1 + $0xd0] sm:$0xff]
    %v1820 = vld [vmem:[%s1 + $0xd8] sm:$0xff]
    %v1821 = vmul.f32 %v1813, %v1817
    %v1822 = vmul.f32 %v1815, %v1818
    %v1823 = vmul.f32 %v1814, %v1819
    %v1824 = vmul.f32 %v1816, %v1820
    %v1825 = vpack.c.bf16 %v1823, %v1821
    %v1826 = vpack.c.bf16 %v1824, %v1822
    %1827 = vst [vmem:[#allocation2 + $0x60] sm:$0xff] %v1825
    %1828 = vst [vmem:[#allocation2 + $0x68] sm:$0xff] %v1826
    %1829 = vrot.lane.b32.xlu0 %v1677, 112
    %v1830 = vpop.permute.xlu0 %1829
    %1831 = vrot.lane.b32.xlu0 %v1679, 112
    %v1832 = vpop.permute.xlu0 %1831
    %1833 = vrot.lane.b32.xlu0 %v1678, 112
    %v1834 = vpop.permute.xlu0 %1833
    %1835 = vrot.lane.b32.xlu0 %v1680, 112
    %v1836 = vpop.permute.xlu0 %1835
    %v1837 = vsel %vm253, %v1830, %v1834
    %v1838 = vsel %vm253, %v1832, %v1836
    %v1839 = vsel %vm253, %v1834, %v1830
    %v1840 = vsel %vm253, %v1836, %v1832
    %v1841 = vld [vmem:[%s1 + $0xe0] sm:$0xff]
    %v1842 = vld [vmem:[%s1 + $0xe8] sm:$0xff]
    %v1843 = vld [vmem:[%s1 + $0xf0] sm:$0xff]
    %v1844 = vld [vmem:[%s1 + $0xf8] sm:$0xff]
    %v1845 = vmul.f32 %v1837, %v1841
    %v1846 = vmul.f32 %v1839, %v1842
    %v1847 = vmul.f32 %v1838, %v1843
    %v1848 = vmul.f32 %v1840, %v1844
    %v1849 = vpack.c.bf16 %v1847, %v1845
    %v1850 = vpack.c.bf16 %v1848, %v1846
    %1851 = vst [vmem:[#allocation2 + $0x70] sm:$0xff] %v1849
    %1852 = vst [vmem:[#allocation2 + $0x78] sm:$0xff] %v1850
    %1853 = vrot.lane.b32.xlu0 %v1677, 111
    %v1854 = vpop.permute.xlu0 %1853
    %1855 = vrot.lane.b32.xlu0 %v1679, 111
    %v1856 = vpop.permute.xlu0 %1855
    %1857 = vrot.lane.b32.xlu0 %v1678, 111
    %v1858 = vpop.permute.xlu0 %1857
    %1859 = vrot.lane.b32.xlu0 %v1680, 111
    %v1860 = vpop.permute.xlu0 %1859
    %v1861 = vsel %vm278, %v1854, %v1858
    %v1862 = vsel %vm278, %v1856, %v1860
    %v1863 = vsel %vm278, %v1858, %v1854
    %v1864 = vsel %vm278, %v1860, %v1856
    %v1865 = vld [vmem:[%s1 + $0x100] sm:$0xff]
    %v1866 = vld [vmem:[%s1 + $0x108] sm:$0xff]
    %v1867 = vld [vmem:[%s1 + $0x110] sm:$0xff]
    %v1868 = vld [vmem:[%s1 + $0x118] sm:$0xff]
    %v1869 = vmul.f32 %v1861, %v1865
    %v1870 = vmul.f32 %v1863, %v1866
    %v1871 = vmul.f32 %v1862, %v1867
    %v1872 = vmul.f32 %v1864, %v1868
    %v1873 = vpack.c.bf16 %v1871, %v1869
    %v1874 = vpack.c.bf16 %v1872, %v1870
    %1875 = vst [vmem:[#allocation2 + $0x80] sm:$0xff] %v1873
    %1876 = vst [vmem:[#allocation2 + $0x88] sm:$0xff] %v1874
    %s1877 = scalar_lea.vmem [#allocation5], 16
    %v1878 = vld [vmem:[%s1877] sm:$0xff]
    %v1879 = vld [vmem:[%s1877 + $0x8] sm:$0xff]
    %s1880 = scalar_lea.vmem %s9, 16
    %v1881 = vld [vmem:[%s1880] sm:$0xff]
    %v1882 = vld [vmem:[%s1880 + $0x8] sm:$0xff]
    %v1883 = vld [vmem:[#allocation2] sm:$0xff]
    %v1884 = vld [vmem:[#allocation2 + $0x8] sm:$0xff]
    %v1885 = vld [vmem:[#allocation2 + $0x10] sm:$0xff]
    %v1886 = vld [vmem:[#allocation2 + $0x18] sm:$0xff]
    %v1887 = vld [vmem:[#allocation2 + $0x20] sm:$0xff]
    %v1888 = vld [vmem:[#allocation2 + $0x28] sm:$0xff]
    %v1889 = vld [vmem:[#allocation2 + $0x30] sm:$0xff]
    %v1890 = vld [vmem:[#allocation2 + $0x38] sm:$0xff]
    %v1891 = vld [vmem:[#allocation2 + $0x40] sm:$0xff]
    %v1892 = vld [vmem:[#allocation2 + $0x48] sm:$0xff]
    %v1893 = vld [vmem:[#allocation2 + $0x50] sm:$0xff]
    %v1894 = vld [vmem:[#allocation2 + $0x58] sm:$0xff]
    %v1895 = vld [vmem:[#allocation2 + $0x60] sm:$0xff]
    %v1896 = vld [vmem:[#allocation2 + $0x68] sm:$0xff]
    %v1897 = vld [vmem:[#allocation2 + $0x70] sm:$0xff]
    %v1898 = vld [vmem:[#allocation2 + $0x78] sm:$0xff]
    %v1899 = vld [vmem:[#allocation2 + $0x80] sm:$0xff]
    %v1900 = vld [vmem:[#allocation2 + $0x88] sm:$0xff]
    %1902 = vset.pattern.permute.xlu0 0
    %1903 = vperm.xlu0 %1902, %v1881
    %v1904 = vpop.permute.xlu0 %1903
    %1907 = vset.pattern.permute.xlu0 0
    %1908 = vperm.xlu0 %1907, %v1882
    %v1909 = vpop.permute.xlu0 %1908
    %v1913 = vunpack.c.l.b16 %v1878
    %v1914 = vunpack.c.h.b16 %v1878
    %v1915 = vunpack.c.l.b16 %v1879
    %v1916 = vunpack.c.h.b16 %v1879
    %v1917 = vpack.c.b16 %v1915, %v1913
    %v1918 = vpack.c.b16 %v1916, %v1914
    %v1921 = vsel %vm359, %v1918, 0
    %1923 = vmatprep.subr.bf16.mxu0 %v1884
    %1924 = vmatpush1.bf16.msra.mxu0 %v1883
    %1925 = vmatprep.subr.bf16.mxu0 %v1886
    %1926 = vmatpush1.bf16.msra.mxu0 %v1885
    %1927 = vmatprep.subr.bf16.mxu0 %v1888
    %1928 = vmatpush1.bf16.msra.mxu0 %v1887
    %1929 = vmatprep.subr.bf16.mxu0 %v1890
    %1930 = vmatpush1.bf16.msra.mxu0 %v1889
    %1931 = vmatprep.subr.bf16.mxu0 %v1892
    %1932 = vmatpush1.bf16.msra.mxu0 %v1891
    %1933 = vmatprep.subr.bf16.mxu0 %v1894
    %1934 = vmatpush1.bf16.msra.mxu0 %v1893
    %1935 = vmatprep.subr.bf16.mxu0 %v1896
    %1936 = vmatpush1.bf16.msra.mxu0 %v1895
    %1937 = vmatprep.subr.bf16.mxu0 %v1898
    %1938 = vmatpush1.bf16.msra.mxu0 %v1897
    %1939 = vmatprep.subr.bf16.mxu0 %v1900
    %1940 = vmatpush1.bf16.msra.mxu0 %v1899
    %1941 = vmatprep.subr.bf16.mxu0 0
    %1942 = vmatpush1.bf16.msra.mxu0 0
    %1943 = vmatprep.subr.bf16.mxu0 0
    %1944 = vmatpush1.bf16.msra.mxu0 0
    %1945 = vmatprep.subr.bf16.mxu0 0
    %1946 = vmatpush1.bf16.msra.mxu0 0
    %1947 = vmatprep.subr.bf16.mxu0 0
    %1948 = vmatpush1.bf16.msra.mxu0 0
    %1949 = vmatprep.subr.bf16.mxu0 0
    %1950 = vmatpush1.bf16.msra.mxu0 0
    %1951 = vmatprep.subr.bf16.mxu0 0
    %1952 = vmatpush1.bf16.msra.mxu0 0
    %1953 = vmatprep.subr.bf16.mxu0 0
    %1954 = vmatpush1.bf16.msra.mxu0 0
    %1955 = vmatprep.mubr.bf16.mxu0 %v1921
    %1956 = vmatmul.mubr.bf16.gmra.mrb[0].mxu0 %v1917
    %v1957 = vpop.f32.mrb[0].mxu0
    %v1958 = vadd.f32 %v1904, %v1957
    %v1959 = vpop.f32.mrb[0].mxu0
    %v1960 = vadd.f32 %v1904, %v1959
    %v1961 = vpop.f32.mrb[0].mxu0
    %v1962 = vadd.f32 %v1909, %v1961
    %v1963 = vpop.f32.mrb[0].mxu0
    %v1964 = vadd.f32 %v1909, %v1963
    %1965 = vdwg.mxu0
    %s1967 = vtos %v615
    %v1968 = vstv %s1967
    %v1970 = vmul.f32 %v1968, %v1958
    %v1971 = vmul.f32 %v1968, %v1960
    %v1972 = vmul.f32 %v1968, %v1962
    %v1973 = vmul.f32 %v1968, %v1964
    %v1974 = vadd.f32 %v1388, %v1970
    %v1975 = vadd.f32 %v1389, %v1971
    %v1976 = vadd.f32 %v1390, %v1972
    %v1977 = vadd.f32 %v1391, %v1973
    %v1978 = vmax.f32 %v1974, 0.0
    %v1979 = vmax.f32 %v1975, 0.0
    %v1980 = vmax.f32 %v1976, 0.0
    %v1981 = vmax.f32 %v1977, 0.0
    %1982 = vrot.lane.b32.xlu0 %v1978, 17
    %v1983 = vpop.permute.xlu0 %1982
    %1984 = vrot.lane.b32.xlu0 %v1980, 17
    %v1985 = vpop.permute.xlu0 %1984
    %1986 = vrot.lane.b32.xlu0 %v1979, 17
    %v1987 = vpop.permute.xlu0 %1986
    %1988 = vrot.lane.b32.xlu0 %v1981, 17
    %v1989 = vpop.permute.xlu0 %1988
    %v1990 = vsel %vm99, %v1983, %v1987
    %v1991 = vsel %vm99, %v1985, %v1989
    %v1992 = vsel %vm99, %v1987, %v1983
    %v1993 = vsel %vm99, %v1989, %v1985
    %v1994 = vld [vmem:[%s1] sm:$0xff]
    %v1995 = vld [vmem:[%s1 + $0x8] sm:$0xff]
    %v1996 = vld [vmem:[%s1 + $0x10] sm:$0xff]
    %v1997 = vld [vmem:[%s1 + $0x18] sm:$0xff]
    %v1998 = vmul.f32 %v1992, %v1994
    %v1999 = vmul.f32 %v1990, %v1995
    %v2000 = vmul.f32 %v1993, %v1996
    %v2001 = vmul.f32 %v1991, %v1997
    %v2002 = vpack.c.bf16 %v2000, %v1998
    %v2003 = vpack.c.bf16 %v2001, %v1999
    %2004 = vst [vmem:[#allocation2] sm:$0xff] %v2002
    %2005 = vst [vmem:[#allocation2 + $0x8] sm:$0xff] %v2003
    %2006 = vrot.lane.b32.xlu0 %v1978, 16
    %v2007 = vpop.permute.xlu0 %2006
    %2008 = vrot.lane.b32.xlu0 %v1980, 16
    %v2009 = vpop.permute.xlu0 %2008
    %2010 = vrot.lane.b32.xlu0 %v1979, 16
    %v2011 = vpop.permute.xlu0 %2010
    %2012 = vrot.lane.b32.xlu0 %v1981, 16
    %v2013 = vpop.permute.xlu0 %2012
    %v2014 = vsel %vm124, %v2007, %v2011
    %v2015 = vsel %vm124, %v2009, %v2013
    %v2016 = vsel %vm124, %v2011, %v2007
    %v2017 = vsel %vm124, %v2013, %v2009
    %v2018 = vld [vmem:[%s1 + $0x20] sm:$0xff]
    %v2019 = vld [vmem:[%s1 + $0x28] sm:$0xff]
    %v2020 = vld [vmem:[%s1 + $0x30] sm:$0xff]
    %v2021 = vld [vmem:[%s1 + $0x38] sm:$0xff]
    %v2022 = vmul.f32 %v2016, %v2018
    %v2023 = vmul.f32 %v2014, %v2019
    %v2024 = vmul.f32 %v2017, %v2020
    %v2025 = vmul.f32 %v2015, %v2021
    %v2026 = vpack.c.bf16 %v2024, %v2022
    %v2027 = vpack.c.bf16 %v2025, %v2023
    %2028 = vst [vmem:[#allocation2 + $0x10] sm:$0xff] %v2026
    %2029 = vst [vmem:[#allocation2 + $0x18] sm:$0xff] %v2027
    %2030 = vrot.lane.b32.xlu0 %v1978, 15
    %v2031 = vpop.permute.xlu0 %2030
    %2032 = vrot.lane.b32.xlu0 %v1980, 15
    %v2033 = vpop.permute.xlu0 %2032
    %2034 = vrot.lane.b32.xlu0 %v1979, 15
    %v2035 = vpop.permute.xlu0 %2034
    %2036 = vrot.lane.b32.xlu0 %v1981, 15
    %v2037 = vpop.permute.xlu0 %2036
    %v2038 = vsel %vm149, %v2031, %v2035
    %v2039 = vsel %vm149, %v2033, %v2037
    %v2040 = vsel %vm149, %v2035, %v2031
    %v2041 = vsel %vm149, %v2037, %v2033
    %v2042 = vld [vmem:[%s1 + $0x40] sm:$0xff]
    %v2043 = vld [vmem:[%s1 + $0x48] sm:$0xff]
    %v2044 = vld [vmem:[%s1 + $0x50] sm:$0xff]
    %v2045 = vld [vmem:[%s1 + $0x58] sm:$0xff]
    %v2046 = vmul.f32 %v2040, %v2042
    %v2047 = vmul.f32 %v2038, %v2043
    %v2048 = vmul.f32 %v2041, %v2044
    %v2049 = vmul.f32 %v2039, %v2045
    %v2050 = vpack.c.bf16 %v2048, %v2046
    %v2051 = vpack.c.bf16 %v2049, %v2047
    %2052 = vst [vmem:[#allocation2 + $0x20] sm:$0xff] %v2050
    %2053 = vst [vmem:[#allocation2 + $0x28] sm:$0xff] %v2051
    %2054 = vrot.lane.b32.xlu0 %v1978, 1
    %v2055 = vpop.permute.xlu0 %2054
    %2056 = vrot.lane.b32.xlu0 %v1980, 1
    %v2057 = vpop.permute.xlu0 %2056
    %2058 = vrot.lane.b32.xlu0 %v1979, 1
    %v2059 = vpop.permute.xlu0 %2058
    %2060 = vrot.lane.b32.xlu0 %v1981, 1
    %v2061 = vpop.permute.xlu0 %2060
    %v2062 = vsel %vm174, %v2055, %v2059
    %v2063 = vsel %vm174, %v2057, %v2061
    %v2064 = vsel %vm174, %v2059, %v2055
    %v2065 = vsel %vm174, %v2061, %v2057
    %v2066 = vld [vmem:[%s1 + $0x60] sm:$0xff]
    %v2067 = vld [vmem:[%s1 + $0x68] sm:$0xff]
    %v2068 = vld [vmem:[%s1 + $0x70] sm:$0xff]
    %v2069 = vld [vmem:[%s1 + $0x78] sm:$0xff]
    %v2070 = vmul.f32 %v2064, %v2066
    %v2071 = vmul.f32 %v2062, %v2067
    %v2072 = vmul.f32 %v2065, %v2068
    %v2073 = vmul.f32 %v2063, %v2069
    %v2074 = vpack.c.bf16 %v2072, %v2070
    %v2075 = vpack.c.bf16 %v2073, %v2071
    %2076 = vst [vmem:[#allocation2 + $0x30] sm:$0xff] %v2074
    %2077 = vst [vmem:[#allocation2 + $0x38] sm:$0xff] %v2075
    %v2078 = vpack.c.bf16 %v1980, %v1978
    %v2079 = vpack.c.bf16 %v1981, %v1979
    %2080 = vst [vmem:[#allocation2 + $0x40] sm:$0xff] %v2078
    %2081 = vst [vmem:[#allocation2 + $0x48] sm:$0xff] %v2079
    %2082 = vrot.lane.b32.xlu0 %v1978, 127
    %v2083 = vpop.permute.xlu0 %2082
    %2084 = vrot.lane.b32.xlu0 %v1980, 127
    %v2085 = vpop.permute.xlu0 %2084
    %2086 = vrot.lane.b32.xlu0 %v1979, 127
    %v2087 = vpop.permute.xlu0 %2086
    %2088 = vrot.lane.b32.xlu0 %v1981, 127
    %v2089 = vpop.permute.xlu0 %2088
    %v2090 = vsel %vm203, %v2083, %v2087
    %v2091 = vsel %vm203, %v2085, %v2089
    %v2092 = vsel %vm203, %v2087, %v2083
    %v2093 = vsel %vm203, %v2089, %v2085
    %v2094 = vld [vmem:[%s1 + $0xa0] sm:$0xff]
    %v2095 = vld [vmem:[%s1 + $0xa8] sm:$0xff]
    %v2096 = vld [vmem:[%s1 + $0xb0] sm:$0xff]
    %v2097 = vld [vmem:[%s1 + $0xb8] sm:$0xff]
    %v2098 = vmul.f32 %v2090, %v2094
    %v2099 = vmul.f32 %v2092, %v2095
    %v2100 = vmul.f32 %v2091, %v2096
    %v2101 = vmul.f32 %v2093, %v2097
    %v2102 = vpack.c.bf16 %v2100, %v2098
    %v2103 = vpack.c.bf16 %v2101, %v2099
    %2104 = vst [vmem:[#allocation2 + $0x50] sm:$0xff] %v2102
    %2105 = vst [vmem:[#allocation2 + $0x58] sm:$0xff] %v2103
    %2106 = vrot.lane.b32.xlu0 %v1978, 113
    %v2107 = vpop.permute.xlu0 %2106
    %2108 = vrot.lane.b32.xlu0 %v1980, 113
    %v2109 = vpop.permute.xlu0 %2108
    %2110 = vrot.lane.b32.xlu0 %v1979, 113
    %v2111 = vpop.permute.xlu0 %2110
    %2112 = vrot.lane.b32.xlu0 %v1981, 113
    %v2113 = vpop.permute.xlu0 %2112
    %v2114 = vsel %vm228, %v2107, %v2111
    %v2115 = vsel %vm228, %v2109, %v2113
    %v2116 = vsel %vm228, %v2111, %v2107
    %v2117 = vsel %vm228, %v2113, %v2109
    %v2118 = vld [vmem:[%s1 + $0xc0] sm:$0xff]
    %v2119 = vld [vmem:[%s1 + $0xc8] sm:$0xff]
    %v2120 = vld [vmem:[%s1 + $0xd0] sm:$0xff]
    %v2121 = vld [vmem:[%s1 + $0xd8] sm:$0xff]
    %v2122 = vmul.f32 %v2114, %v2118
    %v2123 = vmul.f32 %v2116, %v2119
    %v2124 = vmul.f32 %v2115, %v2120
    %v2125 = vmul.f32 %v2117, %v2121
    %v2126 = vpack.c.bf16 %v2124, %v2122
    %v2127 = vpack.c.bf16 %v2125, %v2123
    %2128 = vst [vmem:[#allocation2 + $0x60] sm:$0xff] %v2126
    %2129 = vst [vmem:[#allocation2 + $0x68] sm:$0xff] %v2127
    %2130 = vrot.lane.b32.xlu0 %v1978, 112
    %v2131 = vpop.permute.xlu0 %2130
    %2132 = vrot.lane.b32.xlu0 %v1980, 112
    %v2133 = vpop.permute.xlu0 %2132
    %2134 = vrot.lane.b32.xlu0 %v1979, 112
    %v2135 = vpop.permute.xlu0 %2134
    %2136 = vrot.lane.b32.xlu0 %v1981, 112
    %v2137 = vpop.permute.xlu0 %2136
    %v2138 = vsel %vm253, %v2131, %v2135
    %v2139 = vsel %vm253, %v2133, %v2137
    %v2140 = vsel %vm253, %v2135, %v2131
    %v2141 = vsel %vm253, %v2137, %v2133
    %v2142 = vld [vmem:[%s1 + $0xe0] sm:$0xff]
    %v2143 = vld [vmem:[%s1 + $0xe8] sm:$0xff]
    %v2144 = vld [vmem:[%s1 + $0xf0] sm:$0xff]
    %v2145 = vld [vmem:[%s1 + $0xf8] sm:$0xff]
    %v2146 = vmul.f32 %v2138, %v2142
    %v2147 = vmul.f32 %v2140, %v2143
    %v2148 = vmul.f32 %v2139, %v2144
    %v2149 = vmul.f32 %v2141, %v2145
    %v2150 = vpack.c.bf16 %v2148, %v2146
    %v2151 = vpack.c.bf16 %v2149, %v2147
    %2152 = vst [vmem:[#allocation2 + $0x70] sm:$0xff] %v2150
    %2153 = vst [vmem:[#allocation2 + $0x78] sm:$0xff] %v2151
    %2154 = vrot.lane.b32.xlu0 %v1978, 111
    %v2155 = vpop.permute.xlu0 %2154
    %2156 = vrot.lane.b32.xlu0 %v1980, 111
    %v2157 = vpop.permute.xlu0 %2156
    %2158 = vrot.lane.b32.xlu0 %v1979, 111
    %v2159 = vpop.permute.xlu0 %2158
    %2160 = vrot.lane.b32.xlu0 %v1981, 111
    %v2161 = vpop.permute.xlu0 %2160
    %v2162 = vsel %vm278, %v2155, %v2159
    %v2163 = vsel %vm278, %v2157, %v2161
    %v2164 = vsel %vm278, %v2159, %v2155
    %v2165 = vsel %vm278, %v2161, %v2157
    %v2166 = vld [vmem:[%s1 + $0x100] sm:$0xff]
    %v2167 = vld [vmem:[%s1 + $0x108] sm:$0xff]
    %v2168 = vld [vmem:[%s1 + $0x110] sm:$0xff]
    %v2169 = vld [vmem:[%s1 + $0x118] sm:$0xff]
    %v2170 = vmul.f32 %v2162, %v2166
    %v2171 = vmul.f32 %v2164, %v2167
    %v2172 = vmul.f32 %v2163, %v2168
    %v2173 = vmul.f32 %v2165, %v2169
    %v2174 = vpack.c.bf16 %v2172, %v2170
    %v2175 = vpack.c.bf16 %v2173, %v2171
    %2176 = vst [vmem:[#allocation2 + $0x80] sm:$0xff] %v2174
    %2177 = vst [vmem:[#allocation2 + $0x88] sm:$0xff] %v2175
    %s2178 = scalar_lea.vmem [#allocation3], 32
    %v2179 = vld [vmem:[%s2178] sm:$0xff]
    %v2180 = vld [vmem:[%s2178 + $0x8] sm:$0xff]
    %s2181 = scalar_lea.vmem %s7, 32
    %v2182 = vld [vmem:[%s2181] sm:$0xff]
    %v2183 = vld [vmem:[%s2181 + $0x8] sm:$0xff]
    %v2184 = vld [vmem:[#allocation2] sm:$0xff]
    %v2185 = vld [vmem:[#allocation2 + $0x8] sm:$0xff]
    %v2186 = vld [vmem:[#allocation2 + $0x10] sm:$0xff]
    %v2187 = vld [vmem:[#allocation2 + $0x18] sm:$0xff]
    %v2188 = vld [vmem:[#allocation2 + $0x20] sm:$0xff]
    %v2189 = vld [vmem:[#allocation2 + $0x28] sm:$0xff]
    %v2190 = vld [vmem:[#allocation2 + $0x30] sm:$0xff]
    %v2191 = vld [vmem:[#allocation2 + $0x38] sm:$0xff]
    %v2192 = vld [vmem:[#allocation2 + $0x40] sm:$0xff]
    %v2193 = vld [vmem:[#allocation2 + $0x48] sm:$0xff]
    %v2194 = vld [vmem:[#allocation2 + $0x50] sm:$0xff]
    %v2195 = vld [vmem:[#allocation2 + $0x58] sm:$0xff]
    %v2196 = vld [vmem:[#allocation2 + $0x60] sm:$0xff]
    %v2197 = vld [vmem:[#allocation2 + $0x68] sm:$0xff]
    %v2198 = vld [vmem:[#allocation2 + $0x70] sm:$0xff]
    %v2199 = vld [vmem:[#allocation2 + $0x78] sm:$0xff]
    %v2200 = vld [vmem:[#allocation2 + $0x80] sm:$0xff]
    %v2201 = vld [vmem:[#allocation2 + $0x88] sm:$0xff]
    %2203 = vset.pattern.permute.xlu0 0
    %2204 = vperm.xlu0 %2203, %v2182
    %v2205 = vpop.permute.xlu0 %2204
    %2208 = vset.pattern.permute.xlu0 0
    %2209 = vperm.xlu0 %2208, %v2183
    %v2210 = vpop.permute.xlu0 %2209
    %v2214 = vunpack.c.l.b16 %v2179
    %v2215 = vunpack.c.h.b16 %v2179
    %v2216 = vunpack.c.l.b16 %v2180
    %v2217 = vunpack.c.h.b16 %v2180
    %v2218 = vpack.c.b16 %v2216, %v2214
    %v2219 = vpack.c.b16 %v2217, %v2215
    %v2222 = vsel %vm359, %v2219, 0
    %2224 = vmatprep.subr.bf16.mxu0 %v2185
    %2225 = vmatpush1.bf16.msra.mxu0 %v2184
    %2226 = vmatprep.subr.bf16.mxu0 %v2187
    %2227 = vmatpush1.bf16.msra.mxu0 %v2186
    %2228 = vmatprep.subr.bf16.mxu0 %v2189
    %2229 = vmatpush1.bf16.msra.mxu0 %v2188
    %2230 = vmatprep.subr.bf16.mxu0 %v2191
    %2231 = vmatpush1.bf16.msra.mxu0 %v2190
    %2232 = vmatprep.subr.bf16.mxu0 %v2193
    %2233 = vmatpush1.bf16.msra.mxu0 %v2192
    %2234 = vmatprep.subr.bf16.mxu0 %v2195
    %2235 = vmatpush1.bf16.msra.mxu0 %v2194
    %2236 = vmatprep.subr.bf16.mxu0 %v2197
    %2237 = vmatpush1.bf16.msra.mxu0 %v2196
    %2238 = vmatprep.subr.bf16.mxu0 %v2199
    %2239 = vmatpush1.bf16.msra.mxu0 %v2198
    %2240 = vmatprep.subr.bf16.mxu0 %v2201
    %2241 = vmatpush1.bf16.msra.mxu0 %v2200
    %2242 = vmatprep.subr.bf16.mxu0 0
    %2243 = vmatpush1.bf16.msra.mxu0 0
    %2244 = vmatprep.subr.bf16.mxu0 0
    %2245 = vmatpush1.bf16.msra.mxu0 0
    %2246 = vmatprep.subr.bf16.mxu0 0
    %2247 = vmatpush1.bf16.msra.mxu0 0
    %2248 = vmatprep.subr.bf16.mxu0 0
    %2249 = vmatpush1.bf16.msra.mxu0 0
    %2250 = vmatprep.subr.bf16.mxu0 0
    %2251 = vmatpush1.bf16.msra.mxu0 0
    %2252 = vmatprep.subr.bf16.mxu0 0
    %2253 = vmatpush1.bf16.msra.mxu0 0
    %2254 = vmatprep.subr.bf16.mxu0 0
    %2255 = vmatpush1.bf16.msra.mxu0 0
    %2256 = vmatprep.mubr.bf16.mxu0 %v2222
    %2257 = vmatmul.mubr.bf16.gmra.mrb[0].mxu0 %v2218
    %v2258 = vpop.f32.mrb[0].mxu0
    %v2259 = vadd.f32 %v2205, %v2258
    %v2260 = vpop.f32.mrb[0].mxu0
    %v2261 = vadd.f32 %v2205, %v2260
    %v2262 = vpop.f32.mrb[0].mxu0
    %v2263 = vadd.f32 %v2210, %v2262
    %v2264 = vpop.f32.mrb[0].mxu0
    %v2265 = vadd.f32 %v2210, %v2264
    %2266 = vdwg.mxu0
    %v2267 = vmax.f32 %v2259, 0.0
    %v2268 = vmax.f32 %v2261, 0.0
    %v2269 = vmax.f32 %v2263, 0.0
    %v2270 = vmax.f32 %v2265, 0.0
    %2271 = vrot.lane.b32.xlu0 %v2267, 17
    %v2272 = vpop.permute.xlu0 %2271
    %2273 = vrot.lane.b32.xlu0 %v2269, 17
    %v2274 = vpop.permute.xlu0 %2273
    %2275 = vrot.lane.b32.xlu0 %v2268, 17
    %v2276 = vpop.permute.xlu0 %2275
    %2277 = vrot.lane.b32.xlu0 %v2270, 17
    %v2278 = vpop.permute.xlu0 %2277
    %v2279 = vsel %vm99, %v2272, %v2276
    %v2280 = vsel %vm99, %v2274, %v2278
    %v2281 = vsel %vm99, %v2276, %v2272
    %v2282 = vsel %vm99, %v2278, %v2274
    %v2283 = vld [vmem:[%s1] sm:$0xff]
    %v2284 = vld [vmem:[%s1 + $0x8] sm:$0xff]
    %v2285 = vld [vmem:[%s1 + $0x10] sm:$0xff]
    %v2286 = vld [vmem:[%s1 + $0x18] sm:$0xff]
    %v2287 = vmul.f32 %v2281, %v2283
    %v2288 = vmul.f32 %v2279, %v2284
    %v2289 = vmul.f32 %v2282, %v2285
    %v2290 = vmul.f32 %v2280, %v2286
    %v2291 = vpack.c.bf16 %v2289, %v2287
    %v2292 = vpack.c.bf16 %v2290, %v2288
    %2293 = vst [vmem:[#allocation2] sm:$0xff] %v2291
    %2294 = vst [vmem:[#allocation2 + $0x8] sm:$0xff] %v2292
    %2295 = vrot.lane.b32.xlu0 %v2267, 16
    %v2296 = vpop.permute.xlu0 %2295
    %2297 = vrot.lane.b32.xlu0 %v2269, 16
    %v2298 = vpop.permute.xlu0 %2297
    %2299 = vrot.lane.b32.xlu0 %v2268, 16
    %v2300 = vpop.permute.xlu0 %2299
    %2301 = vrot.lane.b32.xlu0 %v2270, 16
    %v2302 = vpop.permute.xlu0 %2301
    %v2303 = vsel %vm124, %v2296, %v2300
    %v2304 = vsel %vm124, %v2298, %v2302
    %v2305 = vsel %vm124, %v2300, %v2296
    %v2306 = vsel %vm124, %v2302, %v2298
    %v2307 = vld [vmem:[%s1 + $0x20] sm:$0xff]
    %v2308 = vld [vmem:[%s1 + $0x28] sm:$0xff]
    %v2309 = vld [vmem:[%s1 + $0x30] sm:$0xff]
    %v2310 = vld [vmem:[%s1 + $0x38] sm:$0xff]
    %v2311 = vmul.f32 %v2305, %v2307
    %v2312 = vmul.f32 %v2303, %v2308
    %v2313 = vmul.f32 %v2306, %v2309
    %v2314 = vmul.f32 %v2304, %v2310
    %v2315 = vpack.c.bf16 %v2313, %v2311
    %v2316 = vpack.c.bf16 %v2314, %v2312
    %2317 = vst [vmem:[#allocation2 + $0x10] sm:$0xff] %v2315
    %2318 = vst [vmem:[#allocation2 + $0x18] sm:$0xff] %v2316
    %2319 = vrot.lane.b32.xlu0 %v2267, 15
    %v2320 = vpop.permute.xlu0 %2319
    %2321 = vrot.lane.b32.xlu0 %v2269, 15
    %v2322 = vpop.permute.xlu0 %2321
    %2323 = vrot.lane.b32.xlu0 %v2268, 15
    %v2324 = vpop.permute.xlu0 %2323
    %2325 = vrot.lane.b32.xlu0 %v2270, 15
    %v2326 = vpop.permute.xlu0 %2325
    %v2327 = vsel %vm149, %v2320, %v2324
    %v2328 = vsel %vm149, %v2322, %v2326
    %v2329 = vsel %vm149, %v2324, %v2320
    %v2330 = vsel %vm149, %v2326, %v2322
    %v2331 = vld [vmem:[%s1 + $0x40] sm:$0xff]
    %v2332 = vld [vmem:[%s1 + $0x48] sm:$0xff]
    %v2333 = vld [vmem:[%s1 + $0x50] sm:$0xff]
    %v2334 = vld [vmem:[%s1 + $0x58] sm:$0xff]
    %v2335 = vmul.f32 %v2329, %v2331
    %v2336 = vmul.f32 %v2327, %v2332
    %v2337 = vmul.f32 %v2330, %v2333
    %v2338 = vmul.f32 %v2328, %v2334
    %v2339 = vpack.c.bf16 %v2337, %v2335
    %v2340 = vpack.c.bf16 %v2338, %v2336
    %2341 = vst [vmem:[#allocation2 + $0x20] sm:$0xff] %v2339
    %2342 = vst [vmem:[#allocation2 + $0x28] sm:$0xff] %v2340
    %2343 = vrot.lane.b32.xlu0 %v2267, 1
    %v2344 = vpop.permute.xlu0 %2343
    %2345 = vrot.lane.b32.xlu0 %v2269, 1
    %v2346 = vpop.permute.xlu0 %2345
    %2347 = vrot.lane.b32.xlu0 %v2268, 1
    %v2348 = vpop.permute.xlu0 %2347
    %2349 = vrot.lane.b32.xlu0 %v2270, 1
    %v2350 = vpop.permute.xlu0 %2349
    %v2351 = vsel %vm174, %v2344, %v2348
    %v2352 = vsel %vm174, %v2346, %v2350
    %v2353 = vsel %vm174, %v2348, %v2344
    %v2354 = vsel %vm174, %v2350, %v2346
    %v2355 = vld [vmem:[%s1 + $0x60] sm:$0xff]
    %v2356 = vld [vmem:[%s1 + $0x68] sm:$0xff]
    %v2357 = vld [vmem:[%s1 + $0x70] sm:$0xff]
    %v2358 = vld [vmem:[%s1 + $0x78] sm:$0xff]
    %v2359 = vmul.f32 %v2353, %v2355
    %v2360 = vmul.f32 %v2351, %v2356
    %v2361 = vmul.f32 %v2354, %v2357
    %v2362 = vmul.f32 %v2352, %v2358
    %v2363 = vpack.c.bf16 %v2361, %v2359
    %v2364 = vpack.c.bf16 %v2362, %v2360
    %2365 = vst [vmem:[#allocation2 + $0x30] sm:$0xff] %v2363
    %2366 = vst [vmem:[#allocation2 + $0x38] sm:$0xff] %v2364
    %v2367 = vpack.c.bf16 %v2269, %v2267
    %v2368 = vpack.c.bf16 %v2270, %v2268
    %2369 = vst [vmem:[#allocation2 + $0x40] sm:$0xff] %v2367
    %2370 = vst [vmem:[#allocation2 + $0x48] sm:$0xff] %v2368
    %2371 = vrot.lane.b32.xlu0 %v2267, 127
    %v2372 = vpop.permute.xlu0 %2371
    %2373 = vrot.lane.b32.xlu0 %v2269, 127
    %v2374 = vpop.permute.xlu0 %2373
    %2375 = vrot.lane.b32.xlu0 %v2268, 127
    %v2376 = vpop.permute.xlu0 %2375
    %2377 = vrot.lane.b32.xlu0 %v2270, 127
    %v2378 = vpop.permute.xlu0 %2377
    %v2379 = vsel %vm203, %v2372, %v2376
    %v2380 = vsel %vm203, %v2374, %v2378
    %v2381 = vsel %vm203, %v2376, %v2372
    %v2382 = vsel %vm203, %v2378, %v2374
    %v2383 = vld [vmem:[%s1 + $0xa0] sm:$0xff]
    %v2384 = vld [vmem:[%s1 + $0xa8] sm:$0xff]
    %v2385 = vld [vmem:[%s1 + $0xb0] sm:$0xff]
    %v2386 = vld [vmem:[%s1 + $0xb8] sm:$0xff]
    %v2387 = vmul.f32 %v2379, %v2383
    %v2388 = vmul.f32 %v2381, %v2384
    %v2389 = vmul.f32 %v2380, %v2385
    %v2390 = vmul.f32 %v2382, %v2386
    %v2391 = vpack.c.bf16 %v2389, %v2387
    %v2392 = vpack.c.bf16 %v2390, %v2388
    %2393 = vst [vmem:[#allocation2 + $0x50] sm:$0xff] %v2391
    %2394 = vst [vmem:[#allocation2 + $0x58] sm:$0xff] %v2392
    %2395 = vrot.lane.b32.xlu0 %v2267, 113
    %v2396 = vpop.permute.xlu0 %2395
    %2397 = vrot.lane.b32.xlu0 %v2269, 113
    %v2398 = vpop.permute.xlu0 %2397
    %2399 = vrot.lane.b32.xlu0 %v2268, 113
    %v2400 = vpop.permute.xlu0 %2399
    %2401 = vrot.lane.b32.xlu0 %v2270, 113
    %v2402 = vpop.permute.xlu0 %2401
    %v2403 = vsel %vm228, %v2396, %v2400
    %v2404 = vsel %vm228, %v2398, %v2402
    %v2405 = vsel %vm228, %v2400, %v2396
    %v2406 = vsel %vm228, %v2402, %v2398
    %v2407 = vld [vmem:[%s1 + $0xc0] sm:$0xff]
    %v2408 = vld [vmem:[%s1 + $0xc8] sm:$0xff]
    %v2409 = vld [vmem:[%s1 + $0xd0] sm:$0xff]
    %v2410 = vld [vmem:[%s1 + $0xd8] sm:$0xff]
    %v2411 = vmul.f32 %v2403, %v2407
    %v2412 = vmul.f32 %v2405, %v2408
    %v2413 = vmul.f32 %v2404, %v2409
    %v2414 = vmul.f32 %v2406, %v2410
    %v2415 = vpack.c.bf16 %v2413, %v2411
    %v2416 = vpack.c.bf16 %v2414, %v2412
    %2417 = vst [vmem:[#allocation2 + $0x60] sm:$0xff] %v2415
    %2418 = vst [vmem:[#allocation2 + $0x68] sm:$0xff] %v2416
    %2419 = vrot.lane.b32.xlu0 %v2267, 112
    %v2420 = vpop.permute.xlu0 %2419
    %2421 = vrot.lane.b32.xlu0 %v2269, 112
    %v2422 = vpop.permute.xlu0 %2421
    %2423 = vrot.lane.b32.xlu0 %v2268, 112
    %v2424 = vpop.permute.xlu0 %2423
    %2425 = vrot.lane.b32.xlu0 %v2270, 112
    %v2426 = vpop.permute.xlu0 %2425
    %v2427 = vsel %vm253, %v2420, %v2424
    %v2428 = vsel %vm253, %v2422, %v2426
    %v2429 = vsel %vm253, %v2424, %v2420
    %v2430 = vsel %vm253, %v2426, %v2422
    %v2431 = vld [vmem:[%s1 + $0xe0] sm:$0xff]
    %v2432 = vld [vmem:[%s1 + $0xe8] sm:$0xff]
    %v2433 = vld [vmem:[%s1 + $0xf0] sm:$0xff]
    %v2434 = vld [vmem:[%s1 + $0xf8] sm:$0xff]
    %v2435 = vmul.f32 %v2427, %v2431
    %v2436 = vmul.f32 %v2429, %v2432
    %v2437 = vmul.f32 %v2428, %v2433
    %v2438 = vmul.f32 %v2430, %v2434
    %v2439 = vpack.c.bf16 %v2437, %v2435
    %v2440 = vpack.c.bf16 %v2438, %v2436
    %2441 = vst [vmem:[#allocation2 + $0x70] sm:$0xff] %v2439
    %2442 = vst [vmem:[#allocation2 + $0x78] sm:$0xff] %v2440
    %2443 = vrot.lane.b32.xlu0 %v2267, 111
    %v2444 = vpop.permute.xlu0 %2443
    %2445 = vrot.lane.b32.xlu0 %v2269, 111
    %v2446 = vpop.permute.xlu0 %2445
    %2447 = vrot.lane.b32.xlu0 %v2268, 111
    %v2448 = vpop.permute.xlu0 %2447
    %2449 = vrot.lane.b32.xlu0 %v2270, 111
    %v2450 = vpop.permute.xlu0 %2449
    %v2451 = vsel %vm278, %v2444, %v2448
    %v2452 = vsel %vm278, %v2446, %v2450
    %v2453 = vsel %vm278, %v2448, %v2444
    %v2454 = vsel %vm278, %v2450, %v2446
    %v2455 = vld [vmem:[%s1 + $0x100] sm:$0xff]
    %v2456 = vld [vmem:[%s1 + $0x108] sm:$0xff]
    %v2457 = vld [vmem:[%s1 + $0x110] sm:$0xff]
    %v2458 = vld [vmem:[%s1 + $0x118] sm:$0xff]
    %v2459 = vmul.f32 %v2451, %v2455
    %v2460 = vmul.f32 %v2453, %v2456
    %v2461 = vmul.f32 %v2452, %v2457
    %v2462 = vmul.f32 %v2454, %v2458
    %v2463 = vpack.c.bf16 %v2461, %v2459
    %v2464 = vpack.c.bf16 %v2462, %v2460
    %2465 = vst [vmem:[#allocation2 + $0x80] sm:$0xff] %v2463
    %2466 = vst [vmem:[#allocation2 + $0x88] sm:$0xff] %v2464
    %s2467 = scalar_lea.vmem [#allocation5], 32
    %v2468 = vld [vmem:[%s2467] sm:$0xff]
    %v2469 = vld [vmem:[%s2467 + $0x8] sm:$0xff]
    %s2470 = scalar_lea.vmem %s9, 32
    %v2471 = vld [vmem:[%s2470] sm:$0xff]
    %v2472 = vld [vmem:[%s2470 + $0x8] sm:$0xff]
    %v2473 = vld [vmem:[#allocation2] sm:$0xff]
    %v2474 = vld [vmem:[#allocation2 + $0x8] sm:$0xff]
    %v2475 = vld [vmem:[#allocation2 + $0x10] sm:$0xff]
    %v2476 = vld [vmem:[#allocation2 + $0x18] sm:$0xff]
    %v2477 = vld [vmem:[#allocation2 + $0x20] sm:$0xff]
    %v2478 = vld [vmem:[#allocation2 + $0x28] sm:$0xff]
    %v2479 = vld [vmem:[#allocation2 + $0x30] sm:$0xff]
    %v2480 = vld [vmem:[#allocation2 + $0x38] sm:$0xff]
    %v2481 = vld [vmem:[#allocation2 + $0x40] sm:$0xff]
    %v2482 = vld [vmem:[#allocation2 + $0x48] sm:$0xff]
    %v2483 = vld [vmem:[#allocation2 + $0x50] sm:$0xff]
    %v2484 = vld [vmem:[#allocation2 + $0x58] sm:$0xff]
    %v2485 = vld [vmem:[#allocation2 + $0x60] sm:$0xff]
    %v2486 = vld [vmem:[#allocation2 + $0x68] sm:$0xff]
    %v2487 = vld [vmem:[#allocation2 + $0x70] sm:$0xff]
    %v2488 = vld [vmem:[#allocation2 + $0x78] sm:$0xff]
    %v2489 = vld [vmem:[#allocation2 + $0x80] sm:$0xff]
    %v2490 = vld [vmem:[#allocation2 + $0x88] sm:$0xff]
    %2492 = vset.pattern.permute.xlu0 0
    %2493 = vperm.xlu0 %2492, %v2471
    %v2494 = vpop.permute.xlu0 %2493
    %2497 = vset.pattern.permute.xlu0 0
    %2498 = vperm.xlu0 %2497, %v2472
    %v2499 = vpop.permute.xlu0 %2498
    %v2503 = vunpack.c.l.b16 %v2468
    %v2504 = vunpack.c.h.b16 %v2468
    %v2505 = vunpack.c.l.b16 %v2469
    %v2506 = vunpack.c.h.b16 %v2469
    %v2507 = vpack.c.b16 %v2505, %v2503
    %v2508 = vpack.c.b16 %v2506, %v2504
    %v2511 = vsel %vm359, %v2508, 0
    %2513 = vmatprep.subr.bf16.mxu0 %v2474
    %2514 = vmatpush1.bf16.msra.mxu0 %v2473
    %2515 = vmatprep.subr.bf16.mxu0 %v2476
    %2516 = vmatpush1.bf16.msra.mxu0 %v2475
    %2517 = vmatprep.subr.bf16.mxu0 %v2478
    %2518 = vmatpush1.bf16.msra.mxu0 %v2477
    %2519 = vmatprep.subr.bf16.mxu0 %v2480
    %2520 = vmatpush1.bf16.msra.mxu0 %v2479
    %2521 = vmatprep.subr.bf16.mxu0 %v2482
    %2522 = vmatpush1.bf16.msra.mxu0 %v2481
    %2523 = vmatprep.subr.bf16.mxu0 %v2484
    %2524 = vmatpush1.bf16.msra.mxu0 %v2483
    %2525 = vmatprep.subr.bf16.mxu0 %v2486
    %2526 = vmatpush1.bf16.msra.mxu0 %v2485
    %2527 = vmatprep.subr.bf16.mxu0 %v2488
    %2528 = vmatpush1.bf16.msra.mxu0 %v2487
    %2529 = vmatprep.subr.bf16.mxu0 %v2490
    %2530 = vmatpush1.bf16.msra.mxu0 %v2489
    %2531 = vmatprep.subr.bf16.mxu0 0
    %2532 = vmatpush1.bf16.msra.mxu0 0
    %2533 = vmatprep.subr.bf16.mxu0 0
    %2534 = vmatpush1.bf16.msra.mxu0 0
    %2535 = vmatprep.subr.bf16.mxu0 0
    %2536 = vmatpush1.bf16.msra.mxu0 0
    %2537 = vmatprep.subr.bf16.mxu0 0
    %2538 = vmatpush1.bf16.msra.mxu0 0
    %2539 = vmatprep.subr.bf16.mxu0 0
    %2540 = vmatpush1.bf16.msra.mxu0 0
    %2541 = vmatprep.subr.bf16.mxu0 0
    %2542 = vmatpush1.bf16.msra.mxu0 0
    %2543 = vmatprep.subr.bf16.mxu0 0
    %2544 = vmatpush1.bf16.msra.mxu0 0
    %2545 = vmatprep.mubr.bf16.mxu0 %v2511
    %2546 = vmatmul.mubr.bf16.gmra.mrb[0].mxu0 %v2507
    %v2547 = vpop.f32.mrb[0].mxu0
    %v2548 = vadd.f32 %v2494, %v2547
    %v2549 = vpop.f32.mrb[0].mxu0
    %v2550 = vadd.f32 %v2494, %v2549
    %v2551 = vpop.f32.mrb[0].mxu0
    %v2552 = vadd.f32 %v2499, %v2551
    %v2553 = vpop.f32.mrb[0].mxu0
    %v2554 = vadd.f32 %v2499, %v2553
    %2555 = vdwg.mxu0
    %s2557 = vtos %v710
    %v2558 = vstv %s2557
    %v2560 = vmul.f32 %v2558, %v2548
    %v2561 = vmul.f32 %v2558, %v2550
    %v2562 = vmul.f32 %v2558, %v2552
    %v2563 = vmul.f32 %v2558, %v2554
    %v2564 = vadd.f32 %v1978, %v2560
    %v2565 = vadd.f32 %v1979, %v2561
    %v2566 = vadd.f32 %v1980, %v2562
    %v2567 = vadd.f32 %v1981, %v2563
    %v2568 = vmax.f32 %v2564, 0.0
    %v2569 = vmax.f32 %v2565, 0.0
    %v2570 = vmax.f32 %v2566, 0.0
    %v2571 = vmax.f32 %v2567, 0.0
    %2572 = vrot.lane.b32.xlu0 %v2568, 17
    %v2573 = vpop.permute.xlu0 %2572
    %2574 = vrot.lane.b32.xlu0 %v2570, 17
    %v2575 = vpop.permute.xlu0 %2574
    %2576 = vrot.lane.b32.xlu0 %v2569, 17
    %v2577 = vpop.permute.xlu0 %2576
    %2578 = vrot.lane.b32.xlu0 %v2571, 17
    %v2579 = vpop.permute.xlu0 %2578
    %v2580 = vsel %vm99, %v2573, %v2577
    %v2581 = vsel %vm99, %v2575, %v2579
    %v2582 = vsel %vm99, %v2577, %v2573
    %v2583 = vsel %vm99, %v2579, %v2575
    %v2584 = vld [vmem:[%s1] sm:$0xff]
    %v2585 = vld [vmem:[%s1 + $0x8] sm:$0xff]
    %v2586 = vld [vmem:[%s1 + $0x10] sm:$0xff]
    %v2587 = vld [vmem:[%s1 + $0x18] sm:$0xff]
    %v2588 = vmul.f32 %v2582, %v2584
    %v2589 = vmul.f32 %v2580, %v2585
    %v2590 = vmul.f32 %v2583, %v2586
    %v2591 = vmul.f32 %v2581, %v2587
    %v2592 = vpack.c.bf16 %v2590, %v2588
    %v2593 = vpack.c.bf16 %v2591, %v2589
    %2594 = vst [vmem:[#allocation2] sm:$0xff] %v2592
    %2595 = vst [vmem:[#allocation2 + $0x8] sm:$0xff] %v2593
    %2596 = vrot.lane.b32.xlu0 %v2568, 16
    %v2597 = vpop.permute.xlu0 %2596
    %2598 = vrot.lane.b32.xlu0 %v2570, 16
    %v2599 = vpop.permute.xlu0 %2598
    %2600 = vrot.lane.b32.xlu0 %v2569, 16
    %v2601 = vpop.permute.xlu0 %2600
    %2602 = vrot.lane.b32.xlu0 %v2571, 16
    %v2603 = vpop.permute.xlu0 %2602
    %v2604 = vsel %vm124, %v2597, %v2601
    %v2605 = vsel %vm124, %v2599, %v2603
    %v2606 = vsel %vm124, %v2601, %v2597
    %v2607 = vsel %vm124, %v2603, %v2599
    %v2608 = vld [vmem:[%s1 + $0x20] sm:$0xff]
    %v2609 = vld [vmem:[%s1 + $0x28] sm:$0xff]
    %v2610 = vld [vmem:[%s1 + $0x30] sm:$0xff]
    %v2611 = vld [vmem:[%s1 + $0x38] sm:$0xff]
    %v2612 = vmul.f32 %v2606, %v2608
    %v2613 = vmul.f32 %v2604, %v2609
    %v2614 = vmul.f32 %v2607, %v2610
    %v2615 = vmul.f32 %v2605, %v2611
    %v2616 = vpack.c.bf16 %v2614, %v2612
    %v2617 = vpack.c.bf16 %v2615, %v2613
    %2618 = vst [vmem:[#allocation2 + $0x10] sm:$0xff] %v2616
    %2619 = vst [vmem:[#allocation2 + $0x18] sm:$0xff] %v2617
    %2620 = vrot.lane.b32.xlu0 %v2568, 15
    %v2621 = vpop.permute.xlu0 %2620
    %2622 = vrot.lane.b32.xlu0 %v2570, 15
    %v2623 = vpop.permute.xlu0 %2622
    %2624 = vrot.lane.b32.xlu0 %v2569, 15
    %v2625 = vpop.permute.xlu0 %2624
    %2626 = vrot.lane.b32.xlu0 %v2571, 15
    %v2627 = vpop.permute.xlu0 %2626
    %v2628 = vsel %vm149, %v2621, %v2625
    %v2629 = vsel %vm149, %v2623, %v2627
    %v2630 = vsel %vm149, %v2625, %v2621
    %v2631 = vsel %vm149, %v2627, %v2623
    %v2632 = vld [vmem:[%s1 + $0x40] sm:$0xff]
    %v2633 = vld [vmem:[%s1 + $0x48] sm:$0xff]
    %v2634 = vld [vmem:[%s1 + $0x50] sm:$0xff]
    %v2635 = vld [vmem:[%s1 + $0x58] sm:$0xff]
    %v2636 = vmul.f32 %v2630, %v2632
    %v2637 = vmul.f32 %v2628, %v2633
    %v2638 = vmul.f32 %v2631, %v2634
    %v2639 = vmul.f32 %v2629, %v2635
    %v2640 = vpack.c.bf16 %v2638, %v2636
    %v2641 = vpack.c.bf16 %v2639, %v2637
    %2642 = vst [vmem:[#allocation2 + $0x20] sm:$0xff] %v2640
    %2643 = vst [vmem:[#allocation2 + $0x28] sm:$0xff] %v2641
    %2644 = vrot.lane.b32.xlu0 %v2568, 1
    %v2645 = vpop.permute.xlu0 %2644
    %2646 = vrot.lane.b32.xlu0 %v2570, 1
    %v2647 = vpop.permute.xlu0 %2646
    %2648 = vrot.lane.b32.xlu0 %v2569, 1
    %v2649 = vpop.permute.xlu0 %2648
    %2650 = vrot.lane.b32.xlu0 %v2571, 1
    %v2651 = vpop.permute.xlu0 %2650
    %v2652 = vsel %vm174, %v2645, %v2649
    %v2653 = vsel %vm174, %v2647, %v2651
    %v2654 = vsel %vm174, %v2649, %v2645
    %v2655 = vsel %vm174, %v2651, %v2647
    %v2656 = vld [vmem:[%s1 + $0x60] sm:$0xff]
    %v2657 = vld [vmem:[%s1 + $0x68] sm:$0xff]
    %v2658 = vld [vmem:[%s1 + $0x70] sm:$0xff]
    %v2659 = vld [vmem:[%s1 + $0x78] sm:$0xff]
    %v2660 = vmul.f32 %v2654, %v2656
    %v2661 = vmul.f32 %v2652, %v2657
    %v2662 = vmul.f32 %v2655, %v2658
    %v2663 = vmul.f32 %v2653, %v2659
    %v2664 = vpack.c.bf16 %v2662, %v2660
    %v2665 = vpack.c.bf16 %v2663, %v2661
    %2666 = vst [vmem:[#allocation2 + $0x30] sm:$0xff] %v2664
    %2667 = vst [vmem:[#allocation2 + $0x38] sm:$0xff] %v2665
    %v2668 = vpack.c.bf16 %v2570, %v2568
    %v2669 = vpack.c.bf16 %v2571, %v2569
    %2670 = vst [vmem:[#allocation2 + $0x40] sm:$0xff] %v2668
    %2671 = vst [vmem:[#allocation2 + $0x48] sm:$0xff] %v2669
    %2672 = vrot.lane.b32.xlu0 %v2568, 127
    %v2673 = vpop.permute.xlu0 %2672
    %2674 = vrot.lane.b32.xlu0 %v2570, 127
    %v2675 = vpop.permute.xlu0 %2674
    %2676 = vrot.lane.b32.xlu0 %v2569, 127
    %v2677 = vpop.permute.xlu0 %2676
    %2678 = vrot.lane.b32.xlu0 %v2571, 127
    %v2679 = vpop.permute.xlu0 %2678
    %v2680 = vsel %vm203, %v2673, %v2677
    %v2681 = vsel %vm203, %v2675, %v2679
    %v2682 = vsel %vm203, %v2677, %v2673
    %v2683 = vsel %vm203, %v2679, %v2675
    %v2684 = vld [vmem:[%s1 + $0xa0] sm:$0xff]
    %v2685 = vld [vmem:[%s1 + $0xa8] sm:$0xff]
    %v2686 = vld [vmem:[%s1 + $0xb0] sm:$0xff]
    %v2687 = vld [vmem:[%s1 + $0xb8] sm:$0xff]
    %v2688 = vmul.f32 %v2680, %v2684
    %v2689 = vmul.f32 %v2682, %v2685
    %v2690 = vmul.f32 %v2681, %v2686
    %v2691 = vmul.f32 %v2683, %v2687
    %v2692 = vpack.c.bf16 %v2690, %v2688
    %v2693 = vpack.c.bf16 %v2691, %v2689
    %2694 = vst [vmem:[#allocation2 + $0x50] sm:$0xff] %v2692
    %2695 = vst [vmem:[#allocation2 + $0x58] sm:$0xff] %v2693
    %2696 = vrot.lane.b32.xlu0 %v2568, 113
    %v2697 = vpop.permute.xlu0 %2696
    %2698 = vrot.lane.b32.xlu0 %v2570, 113
    %v2699 = vpop.permute.xlu0 %2698
    %2700 = vrot.lane.b32.xlu0 %v2569, 113
    %v2701 = vpop.permute.xlu0 %2700
    %2702 = vrot.lane.b32.xlu0 %v2571, 113
    %v2703 = vpop.permute.xlu0 %2702
    %v2704 = vsel %vm228, %v2697, %v2701
    %v2705 = vsel %vm228, %v2699, %v2703
    %v2706 = vsel %vm228, %v2701, %v2697
    %v2707 = vsel %vm228, %v2703, %v2699
    %v2708 = vld [vmem:[%s1 + $0xc0] sm:$0xff]
    %v2709 = vld [vmem:[%s1 + $0xc8] sm:$0xff]
    %v2710 = vld [vmem:[%s1 + $0xd0] sm:$0xff]
    %v2711 = vld [vmem:[%s1 + $0xd8] sm:$0xff]
    %v2712 = vmul.f32 %v2704, %v2708
    %v2713 = vmul.f32 %v2706, %v2709
    %v2714 = vmul.f32 %v2705, %v2710
    %v2715 = vmul.f32 %v2707, %v2711
    %v2716 = vpack.c.bf16 %v2714, %v2712
    %v2717 = vpack.c.bf16 %v2715, %v2713
    %2718 = vst [vmem:[#allocation2 + $0x60] sm:$0xff] %v2716
    %2719 = vst [vmem:[#allocation2 + $0x68] sm:$0xff] %v2717
    %2720 = vrot.lane.b32.xlu0 %v2568, 112
    %v2721 = vpop.permute.xlu0 %2720
    %2722 = vrot.lane.b32.xlu0 %v2570, 112
    %v2723 = vpop.permute.xlu0 %2722
    %2724 = vrot.lane.b32.xlu0 %v2569, 112
    %v2725 = vpop.permute.xlu0 %2724
    %2726 = vrot.lane.b32.xlu0 %v2571, 112
    %v2727 = vpop.permute.xlu0 %2726
    %v2728 = vsel %vm253, %v2721, %v2725
    %v2729 = vsel %vm253, %v2723, %v2727
    %v2730 = vsel %vm253, %v2725, %v2721
    %v2731 = vsel %vm253, %v2727, %v2723
    %v2732 = vld [vmem:[%s1 + $0xe0] sm:$0xff]
    %v2733 = vld [vmem:[%s1 + $0xe8] sm:$0xff]
    %v2734 = vld [vmem:[%s1 + $0xf0] sm:$0xff]
    %v2735 = vld [vmem:[%s1 + $0xf8] sm:$0xff]
    %v2736 = vmul.f32 %v2728, %v2732
    %v2737 = vmul.f32 %v2730, %v2733
    %v2738 = vmul.f32 %v2729, %v2734
    %v2739 = vmul.f32 %v2731, %v2735
    %v2740 = vpack.c.bf16 %v2738, %v2736
    %v2741 = vpack.c.bf16 %v2739, %v2737
    %2742 = vst [vmem:[#allocation2 + $0x70] sm:$0xff] %v2740
    %2743 = vst [vmem:[#allocation2 + $0x78] sm:$0xff] %v2741
    %2744 = vrot.lane.b32.xlu0 %v2568, 111
    %v2745 = vpop.permute.xlu0 %2744
    %2746 = vrot.lane.b32.xlu0 %v2570, 111
    %v2747 = vpop.permute.xlu0 %2746
    %2748 = vrot.lane.b32.xlu0 %v2569, 111
    %v2749 = vpop.permute.xlu0 %2748
    %2750 = vrot.lane.b32.xlu0 %v2571, 111
    %v2751 = vpop.permute.xlu0 %2750
    %v2752 = vsel %vm278, %v2745, %v2749
    %v2753 = vsel %vm278, %v2747, %v2751
    %v2754 = vsel %vm278, %v2749, %v2745
    %v2755 = vsel %vm278, %v2751, %v2747
    %v2756 = vld [vmem:[%s1 + $0x100] sm:$0xff]
    %v2757 = vld [vmem:[%s1 + $0x108] sm:$0xff]
    %v2758 = vld [vmem:[%s1 + $0x110] sm:$0xff]
    %v2759 = vld [vmem:[%s1 + $0x118] sm:$0xff]
    %v2760 = vmul.f32 %v2752, %v2756
    %v2761 = vmul.f32 %v2754, %v2757
    %v2762 = vmul.f32 %v2753, %v2758
    %v2763 = vmul.f32 %v2755, %v2759
    %v2764 = vpack.c.bf16 %v2762, %v2760
    %v2765 = vpack.c.bf16 %v2763, %v2761
    %2766 = vst [vmem:[#allocation2 + $0x80] sm:$0xff] %v2764
    %2767 = vst [vmem:[#allocation2 + $0x88] sm:$0xff] %v2765
    %s2768 = scalar_lea.vmem [#allocation3], 48
    %v2769 = vld [vmem:[%s2768] sm:$0xff]
    %v2770 = vld [vmem:[%s2768 + $0x8] sm:$0xff]
    %s2771 = scalar_lea.vmem %s7, 48
    %v2772 = vld [vmem:[%s2771] sm:$0xff]
    %v2773 = vld [vmem:[%s2771 + $0x8] sm:$0xff]
    %v2774 = vld [vmem:[#allocation2] sm:$0xff]
    %v2775 = vld [vmem:[#allocation2 + $0x8] sm:$0xff]
    %v2776 = vld [vmem:[#allocation2 + $0x10] sm:$0xff]
    %v2777 = vld [vmem:[#allocation2 + $0x18] sm:$0xff]
    %v2778 = vld [vmem:[#allocation2 + $0x20] sm:$0xff]
    %v2779 = vld [vmem:[#allocation2 + $0x28] sm:$0xff]
    %v2780 = vld [vmem:[#allocation2 + $0x30] sm:$0xff]
    %v2781 = vld [vmem:[#allocation2 + $0x38] sm:$0xff]
    %v2782 = vld [vmem:[#allocation2 + $0x40] sm:$0xff]
    %v2783 = vld [vmem:[#allocation2 + $0x48] sm:$0xff]
    %v2784 = vld [vmem:[#allocation2 + $0x50] sm:$0xff]
    %v2785 = vld [vmem:[#allocation2 + $0x58] sm:$0xff]
    %v2786 = vld [vmem:[#allocation2 + $0x60] sm:$0xff]
    %v2787 = vld [vmem:[#allocation2 + $0x68] sm:$0xff]
    %v2788 = vld [vmem:[#allocation2 + $0x70] sm:$0xff]
    %v2789 = vld [vmem:[#allocation2 + $0x78] sm:$0xff]
    %v2790 = vld [vmem:[#allocation2 + $0x80] sm:$0xff]
    %v2791 = vld [vmem:[#allocation2 + $0x88] sm:$0xff]
    %2793 = vset.pattern.permute.xlu0 0
    %2794 = vperm.xlu0 %2793, %v2772
    %v2795 = vpop.permute.xlu0 %2794
    %2798 = vset.pattern.permute.xlu0 0
    %2799 = vperm.xlu0 %2798, %v2773
    %v2800 = vpop.permute.xlu0 %2799
    %v2804 = vunpack.c.l.b16 %v2769
    %v2805 = vunpack.c.h.b16 %v2769
    %v2806 = vunpack.c.l.b16 %v2770
    %v2807 = vunpack.c.h.b16 %v2770
    %v2808 = vpack.c.b16 %v2806, %v2804
    %v2809 = vpack.c.b16 %v2807, %v2805
    %v2812 = vsel %vm359, %v2809, 0
    %2814 = vmatprep.subr.bf16.mxu0 %v2775
    %2815 = vmatpush1.bf16.msra.mxu0 %v2774
    %2816 = vmatprep.subr.bf16.mxu0 %v2777
    %2817 = vmatpush1.bf16.msra.mxu0 %v2776
    %2818 = vmatprep.subr.bf16.mxu0 %v2779
    %2819 = vmatpush1.bf16.msra.mxu0 %v2778
    %2820 = vmatprep.subr.bf16.mxu0 %v2781
    %2821 = vmatpush1.bf16.msra.mxu0 %v2780
    %2822 = vmatprep.subr.bf16.mxu0 %v2783
    %2823 = vmatpush1.bf16.msra.mxu0 %v2782
    %2824 = vmatprep.subr.bf16.mxu0 %v2785
    %2825 = vmatpush1.bf16.msra.mxu0 %v2784
    %2826 = vmatprep.subr.bf16.mxu0 %v2787
    %2827 = vmatpush1.bf16.msra.mxu0 %v2786
    %2828 = vmatprep.subr.bf16.mxu0 %v2789
    %2829 = vmatpush1.bf16.msra.mxu0 %v2788
    %2830 = vmatprep.subr.bf16.mxu0 %v2791
    %2831 = vmatpush1.bf16.msra.mxu0 %v2790
    %2832 = vmatprep.subr.bf16.mxu0 0
    %2833 = vmatpush1.bf16.msra.mxu0 0
    %2834 = vmatprep.subr.bf16.mxu0 0
    %2835 = vmatpush1.bf16.msra.mxu0 0
    %2836 = vmatprep.subr.bf16.mxu0 0
    %2837 = vmatpush1.bf16.msra.mxu0 0
    %2838 = vmatprep.subr.bf16.mxu0 0
    %2839 = vmatpush1.bf16.msra.mxu0 0
    %2840 = vmatprep.subr.bf16.mxu0 0
    %2841 = vmatpush1.bf16.msra.mxu0 0
    %2842 = vmatprep.subr.bf16.mxu0 0
    %2843 = vmatpush1.bf16.msra.mxu0 0
    %2844 = vmatprep.subr.bf16.mxu0 0
    %2845 = vmatpush1.bf16.msra.mxu0 0
    %2846 = vmatprep.mubr.bf16.mxu0 %v2812
    %2847 = vmatmul.mubr.bf16.gmra.mrb[0].mxu0 %v2808
    %v2848 = vpop.f32.mrb[0].mxu0
    %v2849 = vadd.f32 %v2795, %v2848
    %v2850 = vpop.f32.mrb[0].mxu0
    %v2851 = vadd.f32 %v2795, %v2850
    %v2852 = vpop.f32.mrb[0].mxu0
    %v2853 = vadd.f32 %v2800, %v2852
    %v2854 = vpop.f32.mrb[0].mxu0
    %v2855 = vadd.f32 %v2800, %v2854
    %2856 = vdwg.mxu0
    %v2857 = vmax.f32 %v2849, 0.0
    %v2858 = vmax.f32 %v2851, 0.0
    %v2859 = vmax.f32 %v2853, 0.0
    %v2860 = vmax.f32 %v2855, 0.0
    %2861 = vrot.lane.b32.xlu0 %v2857, 17
    %v2862 = vpop.permute.xlu0 %2861
    %2863 = vrot.lane.b32.xlu0 %v2859, 17
    %v2864 = vpop.permute.xlu0 %2863
    %2865 = vrot.lane.b32.xlu0 %v2858, 17
    %v2866 = vpop.permute.xlu0 %2865
    %2867 = vrot.lane.b32.xlu0 %v2860, 17
    %v2868 = vpop.permute.xlu0 %2867
    %v2869 = vsel %vm99, %v2862, %v2866
    %v2870 = vsel %vm99, %v2864, %v2868
    %v2871 = vsel %vm99, %v2866, %v2862
    %v2872 = vsel %vm99, %v2868, %v2864
    %v2873 = vld [vmem:[%s1] sm:$0xff]
    %v2874 = vld [vmem:[%s1 + $0x8] sm:$0xff]
    %v2875 = vld [vmem:[%s1 + $0x10] sm:$0xff]
    %v2876 = vld [vmem:[%s1 + $0x18] sm:$0xff]
    %v2877 = vmul.f32 %v2871, %v2873
    %v2878 = vmul.f32 %v2869, %v2874
    %v2879 = vmul.f32 %v2872, %v2875
    %v2880 = vmul.f32 %v2870, %v2876
    %v2881 = vpack.c.bf16 %v2879, %v2877
    %v2882 = vpack.c.bf16 %v2880, %v2878
    %2883 = vst [vmem:[#allocation2] sm:$0xff] %v2881
    %2884 = vst [vmem:[#allocation2 + $0x8] sm:$0xff] %v2882
    %2885 = vrot.lane.b32.xlu0 %v2857, 16
    %v2886 = vpop.permute.xlu0 %2885
    %2887 = vrot.lane.b32.xlu0 %v2859, 16
    %v2888 = vpop.permute.xlu0 %2887
    %2889 = vrot.lane.b32.xlu0 %v2858, 16
    %v2890 = vpop.permute.xlu0 %2889
    %2891 = vrot.lane.b32.xlu0 %v2860, 16
    %v2892 = vpop.permute.xlu0 %2891
    %v2893 = vsel %vm124, %v2886, %v2890
    %v2894 = vsel %vm124, %v2888, %v2892
    %v2895 = vsel %vm124, %v2890, %v2886
    %v2896 = vsel %vm124, %v2892, %v2888
    %v2897 = vld [vmem:[%s1 + $0x20] sm:$0xff]
    %v2898 = vld [vmem:[%s1 + $0x28] sm:$0xff]
    %v2899 = vld [vmem:[%s1 + $0x30] sm:$0xff]
    %v2900 = vld [vmem:[%s1 + $0x38] sm:$0xff]
    %v2901 = vmul.f32 %v2895, %v2897
    %v2902 = vmul.f32 %v2893, %v2898
    %v2903 = vmul.f32 %v2896, %v2899
    %v2904 = vmul.f32 %v2894, %v2900
    %v2905 = vpack.c.bf16 %v2903, %v2901
    %v2906 = vpack.c.bf16 %v2904, %v2902
    %2907 = vst [vmem:[#allocation2 + $0x10] sm:$0xff] %v2905
    %2908 = vst [vmem:[#allocation2 + $0x18] sm:$0xff] %v2906
    %2909 = vrot.lane.b32.xlu0 %v2857, 15
    %v2910 = vpop.permute.xlu0 %2909
    %2911 = vrot.lane.b32.xlu0 %v2859, 15
    %v2912 = vpop.permute.xlu0 %2911
    %2913 = vrot.lane.b32.xlu0 %v2858, 15
    %v2914 = vpop.permute.xlu0 %2913
    %2915 = vrot.lane.b32.xlu0 %v2860, 15
    %v2916 = vpop.permute.xlu0 %2915
    %v2917 = vsel %vm149, %v2910, %v2914
    %v2918 = vsel %vm149, %v2912, %v2916
    %v2919 = vsel %vm149, %v2914, %v2910
    %v2920 = vsel %vm149, %v2916, %v2912
    %v2921 = vld [vmem:[%s1 + $0x40] sm:$0xff]
    %v2922 = vld [vmem:[%s1 + $0x48] sm:$0xff]
    %v2923 = vld [vmem:[%s1 + $0x50] sm:$0xff]
    %v2924 = vld [vmem:[%s1 + $0x58] sm:$0xff]
    %v2925 = vmul.f32 %v2919, %v2921
    %v2926 = vmul.f32 %v2917, %v2922
    %v2927 = vmul.f32 %v2920, %v2923
    %v2928 = vmul.f32 %v2918, %v2924
    %v2929 = vpack.c.bf16 %v2927, %v2925
    %v2930 = vpack.c.bf16 %v2928, %v2926
    %2931 = vst [vmem:[#allocation2 + $0x20] sm:$0xff] %v2929
    %2932 = vst [vmem:[#allocation2 + $0x28] sm:$0xff] %v2930
    %2933 = vrot.lane.b32.xlu0 %v2857, 1
    %v2934 = vpop.permute.xlu0 %2933
    %2935 = vrot.lane.b32.xlu0 %v2859, 1
    %v2936 = vpop.permute.xlu0 %2935
    %2937 = vrot.lane.b32.xlu0 %v2858, 1
    %v2938 = vpop.permute.xlu0 %2937
    %2939 = vrot.lane.b32.xlu0 %v2860, 1
    %v2940 = vpop.permute.xlu0 %2939
    %v2941 = vsel %vm174, %v2934, %v2938
    %v2942 = vsel %vm174, %v2936, %v2940
    %v2943 = vsel %vm174, %v2938, %v2934
    %v2944 = vsel %vm174, %v2940, %v2936
    %v2945 = vld [vmem:[%s1 + $0x60] sm:$0xff]
    %v2946 = vld [vmem:[%s1 + $0x68] sm:$0xff]
    %v2947 = vld [vmem:[%s1 + $0x70] sm:$0xff]
    %v2948 = vld [vmem:[%s1 + $0x78] sm:$0xff]
    %v2949 = vmul.f32 %v2943, %v2945
    %v2950 = vmul.f32 %v2941, %v2946
    %v2951 = vmul.f32 %v2944, %v2947
    %v2952 = vmul.f32 %v2942, %v2948
    %v2953 = vpack.c.bf16 %v2951, %v2949
    %v2954 = vpack.c.bf16 %v2952, %v2950
    %2955 = vst [vmem:[#allocation2 + $0x30] sm:$0xff] %v2953
    %2956 = vst [vmem:[#allocation2 + $0x38] sm:$0xff] %v2954
    %v2957 = vpack.c.bf16 %v2859, %v2857
    %v2958 = vpack.c.bf16 %v2860, %v2858
    %2959 = vst [vmem:[#allocation2 + $0x40] sm:$0xff] %v2957
    %2960 = vst [vmem:[#allocation2 + $0x48] sm:$0xff] %v2958
    %2961 = vrot.lane.b32.xlu0 %v2857, 127
    %v2962 = vpop.permute.xlu0 %2961
    %2963 = vrot.lane.b32.xlu0 %v2859, 127
    %v2964 = vpop.permute.xlu0 %2963
    %2965 = vrot.lane.b32.xlu0 %v2858, 127
    %v2966 = vpop.permute.xlu0 %2965
    %2967 = vrot.lane.b32.xlu0 %v2860, 127
    %v2968 = vpop.permute.xlu0 %2967
    %v2969 = vsel %vm203, %v2962, %v2966
    %v2970 = vsel %vm203, %v2964, %v2968
    %v2971 = vsel %vm203, %v2966, %v2962
    %v2972 = vsel %vm203, %v2968, %v2964
    %v2973 = vld [vmem:[%s1 + $0xa0] sm:$0xff]
    %v2974 = vld [vmem:[%s1 + $0xa8] sm:$0xff]
    %v2975 = vld [vmem:[%s1 + $0xb0] sm:$0xff]
    %v2976 = vld [vmem:[%s1 + $0xb8] sm:$0xff]
    %v2977 = vmul.f32 %v2969, %v2973
    %v2978 = vmul.f32 %v2971, %v2974
    %v2979 = vmul.f32 %v2970, %v2975
    %v2980 = vmul.f32 %v2972, %v2976
    %v2981 = vpack.c.bf16 %v2979, %v2977
    %v2982 = vpack.c.bf16 %v2980, %v2978
    %2983 = vst [vmem:[#allocation2 + $0x50] sm:$0xff] %v2981
    %2984 = vst [vmem:[#allocation2 + $0x58] sm:$0xff] %v2982
    %2985 = vrot.lane.b32.xlu0 %v2857, 113
    %v2986 = vpop.permute.xlu0 %2985
    %2987 = vrot.lane.b32.xlu0 %v2859, 113
    %v2988 = vpop.permute.xlu0 %2987
    %2989 = vrot.lane.b32.xlu0 %v2858, 113
    %v2990 = vpop.permute.xlu0 %2989
    %2991 = vrot.lane.b32.xlu0 %v2860, 113
    %v2992 = vpop.permute.xlu0 %2991
    %v2993 = vsel %vm228, %v2986, %v2990
    %v2994 = vsel %vm228, %v2988, %v2992
    %v2995 = vsel %vm228, %v2990, %v2986
    %v2996 = vsel %vm228, %v2992, %v2988
    %v2997 = vld [vmem:[%s1 + $0xc0] sm:$0xff]
    %v2998 = vld [vmem:[%s1 + $0xc8] sm:$0xff]
    %v2999 = vld [vmem:[%s1 + $0xd0] sm:$0xff]
    %v3000 = vld [vmem:[%s1 + $0xd8] sm:$0xff]
    %v3001 = vmul.f32 %v2993, %v2997
    %v3002 = vmul.f32 %v2995, %v2998
    %v3003 = vmul.f32 %v2994, %v2999
    %v3004 = vmul.f32 %v2996, %v3000
    %v3005 = vpack.c.bf16 %v3003, %v3001
    %v3006 = vpack.c.bf16 %v3004, %v3002
    %3007 = vst [vmem:[#allocation2 + $0x60] sm:$0xff] %v3005
    %3008 = vst [vmem:[#allocation2 + $0x68] sm:$0xff] %v3006
    %3009 = vrot.lane.b32.xlu0 %v2857, 112
    %v3010 = vpop.permute.xlu0 %3009
    %3011 = vrot.lane.b32.xlu0 %v2859, 112
    %v3012 = vpop.permute.xlu0 %3011
    %3013 = vrot.lane.b32.xlu0 %v2858, 112
    %v3014 = vpop.permute.xlu0 %3013
    %3015 = vrot.lane.b32.xlu0 %v2860, 112
    %v3016 = vpop.permute.xlu0 %3015
    %v3017 = vsel %vm253, %v3010, %v3014
    %v3018 = vsel %vm253, %v3012, %v3016
    %v3019 = vsel %vm253, %v3014, %v3010
    %v3020 = vsel %vm253, %v3016, %v3012
    %v3021 = vld [vmem:[%s1 + $0xe0] sm:$0xff]
    %v3022 = vld [vmem:[%s1 + $0xe8] sm:$0xff]
    %v3023 = vld [vmem:[%s1 + $0xf0] sm:$0xff]
    %v3024 = vld [vmem:[%s1 + $0xf8] sm:$0xff]
    %v3025 = vmul.f32 %v3017, %v3021
    %v3026 = vmul.f32 %v3019, %v3022
    %v3027 = vmul.f32 %v3018, %v3023
    %v3028 = vmul.f32 %v3020, %v3024
    %v3029 = vpack.c.bf16 %v3027, %v3025
    %v3030 = vpack.c.bf16 %v3028, %v3026
    %3031 = vst [vmem:[#allocation2 + $0x70] sm:$0xff] %v3029
    %3032 = vst [vmem:[#allocation2 + $0x78] sm:$0xff] %v3030
    %3033 = vrot.lane.b32.xlu0 %v2857, 111
    %v3034 = vpop.permute.xlu0 %3033
    %3035 = vrot.lane.b32.xlu0 %v2859, 111
    %v3036 = vpop.permute.xlu0 %3035
    %3037 = vrot.lane.b32.xlu0 %v2858, 111
    %v3038 = vpop.permute.xlu0 %3037
    %3039 = vrot.lane.b32.xlu0 %v2860, 111
    %v3040 = vpop.permute.xlu0 %3039
    %v3041 = vsel %vm278, %v3034, %v3038
    %v3042 = vsel %vm278, %v3036, %v3040
    %v3043 = vsel %vm278, %v3038, %v3034
    %v3044 = vsel %vm278, %v3040, %v3036
    %v3045 = vld [vmem:[%s1 + $0x100] sm:$0xff]
    %v3046 = vld [vmem:[%s1 + $0x108] sm:$0xff]
    %v3047 = vld [vmem:[%s1 + $0x110] sm:$0xff]
    %v3048 = vld [vmem:[%s1 + $0x118] sm:$0xff]
    %v3049 = vmul.f32 %v3041, %v3045
    %v3050 = vmul.f32 %v3043, %v3046
    %v3051 = vmul.f32 %v3042, %v3047
    %v3052 = vmul.f32 %v3044, %v3048
    %v3053 = vpack.c.bf16 %v3051, %v3049
    %v3054 = vpack.c.bf16 %v3052, %v3050
    %3055 = vst [vmem:[#allocation2 + $0x80] sm:$0xff] %v3053
    %3056 = vst [vmem:[#allocation2 + $0x88] sm:$0xff] %v3054
    %s3057 = scalar_lea.vmem [#allocation5], 48
    %v3058 = vld [vmem:[%s3057] sm:$0xff]
    %v3059 = vld [vmem:[%s3057 + $0x8] sm:$0xff]
    %s3060 = scalar_lea.vmem %s9, 48
    %v3061 = vld [vmem:[%s3060] sm:$0xff]
    %v3062 = vld [vmem:[%s3060 + $0x8] sm:$0xff]
    %v3063 = vld [vmem:[#allocation2] sm:$0xff]
    %v3064 = vld [vmem:[#allocation2 + $0x8] sm:$0xff]
    %v3065 = vld [vmem:[#allocation2 + $0x10] sm:$0xff]
    %v3066 = vld [vmem:[#allocation2 + $0x18] sm:$0xff]
    %v3067 = vld [vmem:[#allocation2 + $0x20] sm:$0xff]
    %v3068 = vld [vmem:[#allocation2 + $0x28] sm:$0xff]
    %v3069 = vld [vmem:[#allocation2 + $0x30] sm:$0xff]
    %v3070 = vld [vmem:[#allocation2 + $0x38] sm:$0xff]
    %v3071 = vld [vmem:[#allocation2 + $0x40] sm:$0xff]
    %v3072 = vld [vmem:[#allocation2 + $0x48] sm:$0xff]
    %v3073 = vld [vmem:[#allocation2 + $0x50] sm:$0xff]
    %v3074 = vld [vmem:[#allocation2 + $0x58] sm:$0xff]
    %v3075 = vld [vmem:[#allocation2 + $0x60] sm:$0xff]
    %v3076 = vld [vmem:[#allocation2 + $0x68] sm:$0xff]
    %v3077 = vld [vmem:[#allocation2 + $0x70] sm:$0xff]
    %v3078 = vld [vmem:[#allocation2 + $0x78] sm:$0xff]
    %v3079 = vld [vmem:[#allocation2 + $0x80] sm:$0xff]
    %v3080 = vld [vmem:[#allocation2 + $0x88] sm:$0xff]
    %3082 = vset.pattern.permute.xlu0 0
    %3083 = vperm.xlu0 %3082, %v3061
    %v3084 = vpop.permute.xlu0 %3083
    %3087 = vset.pattern.permute.xlu0 0
    %3088 = vperm.xlu0 %3087, %v3062
    %v3089 = vpop.permute.xlu0 %3088
    %v3093 = vunpack.c.l.b16 %v3058
    %v3094 = vunpack.c.h.b16 %v3058
    %v3095 = vunpack.c.l.b16 %v3059
    %v3096 = vunpack.c.h.b16 %v3059
    %v3097 = vpack.c.b16 %v3095, %v3093
    %v3098 = vpack.c.b16 %v3096, %v3094
    %v3101 = vsel %vm359, %v3098, 0
    %3103 = vmatprep.subr.bf16.mxu0 %v3064
    %3104 = vmatpush1.bf16.msra.mxu0 %v3063
    %3105 = vmatprep.subr.bf16.mxu0 %v3066
    %3106 = vmatpush1.bf16.msra.mxu0 %v3065
    %3107 = vmatprep.subr.bf16.mxu0 %v3068
    %3108 = vmatpush1.bf16.msra.mxu0 %v3067
    %3109 = vmatprep.subr.bf16.mxu0 %v3070
    %3110 = vmatpush1.bf16.msra.mxu0 %v3069
    %3111 = vmatprep.subr.bf16.mxu0 %v3072
    %3112 = vmatpush1.bf16.msra.mxu0 %v3071
    %3113 = vmatprep.subr.bf16.mxu0 %v3074
    %3114 = vmatpush1.bf16.msra.mxu0 %v3073
    %3115 = vmatprep.subr.bf16.mxu0 %v3076
    %3116 = vmatpush1.bf16.msra.mxu0 %v3075
    %3117 = vmatprep.subr.bf16.mxu0 %v3078
    %3118 = vmatpush1.bf16.msra.mxu0 %v3077
    %3119 = vmatprep.subr.bf16.mxu0 %v3080
    %3120 = vmatpush1.bf16.msra.mxu0 %v3079
    %3121 = vmatprep.subr.bf16.mxu0 0
    %3122 = vmatpush1.bf16.msra.mxu0 0
    %3123 = vmatprep.subr.bf16.mxu0 0
    %3124 = vmatpush1.bf16.msra.mxu0 0
    %3125 = vmatprep.subr.bf16.mxu0 0
    %3126 = vmatpush1.bf16.msra.mxu0 0
    %3127 = vmatprep.subr.bf16.mxu0 0
    %3128 = vmatpush1.bf16.msra.mxu0 0
    %3129 = vmatprep.subr.bf16.mxu0 0
    %3130 = vmatpush1.bf16.msra.mxu0 0
    %3131 = vmatprep.subr.bf16.mxu0 0
    %3132 = vmatpush1.bf16.msra.mxu0 0
    %3133 = vmatprep.subr.bf16.mxu0 0
    %3134 = vmatpush1.bf16.msra.mxu0 0
    %3135 = vmatprep.mubr.bf16.mxu0 %v3101
    %3136 = vmatmul.mubr.bf16.gmra.mrb[0].mxu0 %v3097
    %v3137 = vpop.f32.mrb[0].mxu0
    %v3138 = vadd.f32 %v3084, %v3137
    %v3139 = vpop.f32.mrb[0].mxu0
    %v3140 = vadd.f32 %v3084, %v3139
    %v3141 = vpop.f32.mrb[0].mxu0
    %v3142 = vadd.f32 %v3089, %v3141
    %v3143 = vpop.f32.mrb[0].mxu0
    %v3144 = vadd.f32 %v3089, %v3143
    %3145 = vdwg.mxu0
    %s3147 = vtos %v805
    %v3148 = vstv %s3147
    %v3150 = vmul.f32 %v3148, %v3138
    %v3151 = vmul.f32 %v3148, %v3140
    %v3152 = vmul.f32 %v3148, %v3142
    %v3153 = vmul.f32 %v3148, %v3144
    %v3154 = vadd.f32 %v2568, %v3150
    %v3155 = vadd.f32 %v2569, %v3151
    %v3156 = vadd.f32 %v2570, %v3152
    %v3157 = vadd.f32 %v2571, %v3153
    %v3158 = vmax.f32 %v3154, 0.0
    %v3159 = vmax.f32 %v3155, 0.0
    %v3160 = vmax.f32 %v3156, 0.0
    %v3161 = vmax.f32 %v3157, 0.0
    %v3162 = vld [vmem:[#allocation7] sm:$0xff]
    %v3163 = vld [vmem:[#allocation7 + $0x8] sm:$0x3]
    %v3165 = vsel %vm359, %v3162, 0
    %v3168 = vsel %vm359, %v3163, 0
    %3170 = vmatprep.subr.mxu0 %v3159
    %3171 = vmatpush1.msra.mxu0 %v3158
    %3172 = vmatprep.subr.mxu0 %v3161
    %3173 = vmatpush1.msra.mxu0 %v3160
    %3174 = vmatprep.subr.mxu0 0.0
    %3175 = vmatpush1.msra.mxu0 0.0
    %3176 = vmatprep.subr.mxu0 0.0
    %3177 = vmatpush1.msra.mxu0 0.0
    %3178 = vmatprep.subr.mxu0 0.0
    %3179 = vmatpush1.msra.mxu0 0.0
    %3180 = vmatprep.subr.mxu0 0.0
    %3181 = vmatpush1.msra.mxu0 0.0
    %3182 = vmatprep.subr.mxu0 0.0
    %3183 = vmatpush1.msra.mxu0 0.0
    %3184 = vmatprep.subr.mxu0 0.0
    %3185 = vmatpush1.msra.mxu0 0.0
    %3186 = vmatprep.subr.mxu0 0.0
    %3187 = vmatpush1.msra.mxu0 0.0
    %3188 = vmatprep.subr.mxu0 0.0
    %3189 = vmatpush1.msra.mxu0 0.0
    %3190 = vmatprep.subr.mxu0 0.0
    %3191 = vmatpush1.msra.mxu0 0.0
    %3192 = vmatprep.subr.mxu0 0.0
    %3193 = vmatpush1.msra.mxu0 0.0
    %3194 = vmatprep.subr.mxu0 0.0
    %3195 = vmatpush1.msra.mxu0 0.0
    %3196 = vmatprep.subr.mxu0 0.0
    %3197 = vmatpush1.msra.mxu0 0.0
    %3198 = vmatprep.subr.mxu0 0.0
    %3199 = vmatpush1.msra.mxu0 0.0
    %3200 = vmatprep.subr.mxu0 0.0
    %3201 = vmatpush1.msra.mxu0 0.0
    %3202 = vmatprep.subr.mxu0 0.0
    %3203 = vmatpush1.msra.mxu0 0.0
    %3204 = vmatprep.subr.mxu0 0.0
    %3205 = vmatpush1.msra.mxu0 0.0
    %3206 = vmatprep.subr.mxu0 0.0
    %3207 = vmatpush1.msra.mxu0 0.0
    %3208 = vmatprep.subr.mxu0 0.0
    %3209 = vmatpush1.msra.mxu0 0.0
    %3210 = vmatprep.subr.mxu0 0.0
    %3211 = vmatpush1.msra.mxu0 0.0
    %3212 = vmatprep.subr.mxu0 0.0
    %3213 = vmatpush1.msra.mxu0 0.0
    %3214 = vmatprep.subr.mxu0 0.0
    %3215 = vmatpush1.msra.mxu0 0.0
    %3216 = vmatprep.subr.mxu0 0.0
    %3217 = vmatpush1.msra.mxu0 0.0
    %3218 = vmatprep.subr.mxu0 0.0
    %3219 = vmatpush1.msra.mxu0 0.0
    %3220 = vmatprep.subr.mxu0 0.0
    %3221 = vmatpush1.msra.mxu0 0.0
    %3222 = vmatprep.subr.mxu0 0.0
    %3223 = vmatpush1.msra.mxu0 0.0
    %3224 = vmatprep.subr.mxu0 0.0
    %3225 = vmatpush1.msra.mxu0 0.0
    %3226 = vmatprep.subr.mxu0 0.0
    %3227 = vmatpush1.msra.mxu0 0.0
    %3228 = vmatprep.subr.mxu0 0.0
    %3229 = vmatpush1.msra.mxu0 0.0
    %3230 = vmatprep.subr.mxu0 0.0
    %3231 = vmatpush1.msra.mxu0 0.0
    %3232 = vmatprep.subr.mxu0 0.0
    %3233 = vmatpush1.msra.mxu0 0.0
    %3234 = vmatprep.mubr.f32.mxu0 0.0
    %3235 = vmatmul.mubr.f32.gmra.mrb[0].mxu0 %v3165
    %v3236 = vpop.f32.mrb[0].mxu0
    %v3237 = vadd.f32 0.0, %v3236
    %v3238 = vpop.f32.mrb[0].mxu0
    %v3239 = vadd.f32 0.0, %v3238
    %3240 = vmatprep.mubr.f32.mxu0 0.0
    %3241 = vmatmul.mubr.f32.gmra.mrb[0].mxu0 %v3168
    %v3242 = vpop.f32.mrb[0].mxu0
    %v3243 = vadd.f32 0.0, %v3242
    %v3244 = vpop.f32.mrb[0].mxu0
    %v3245 = vadd.f32 0.0, %v3244
    %3246 = vdwg.mxu0
    %v3247 = vadd.f32 %v3237, %v3239
    %3248 = vadd.xlane.f32.xlu0 %v3247
    %v3249 = vpop.xlane.xlu0 %3248
    %vm3250 = vcmask 1041408
    %v3251 = vsel %vm3250, %v3243, 0.0
    %v3252 = vsel %vm3250, %v3245, 0.0
    %v3253 = vadd.f32 %v3251, %v3252
    %3254 = vadd.xlane.f32.xlu0 %v3253
    %v3255 = vpop.xlane.xlu0 %3254
    %v3256 = vmul.f32 %v3249, 0.00390625
    %v3257 = vmul.f32 %v3255, 0.00390625
    %v3258 = vld [vmem:[%s11] sm:$0xff]
    %v3259 = vld [vmem:[%s11 + $0x8] sm:$0x3]
    %v3260 = vadd.f32 %v3256, %v3258
    %v3261 = vadd.f32 %v3257, %v3259
    %vm3262 = vcmask 7168
    %3263 = vst.msk [vmem:[%s12] sm:$0xff] %vm3262, %v3260
    %vm3264 = vcmask 1024
    %3265 = vst.msk [vmem:[%s12 + $0x8] sm:$0x3] %vm3264, %v3261
    // Predicated region
    $region62: #{policy_net_forward.1} parent=1 // pred_check
      _
    $region63: #{policy_net_forward.1} parent=1 // pred_check_branch
      %3267 = sbr.rel (0) target = $region65
    $region64: #{policy_net_forward.1} parent=1 // pred_region
      _
    $region65: #{policy_net_forward.1} parent=1 // pred_fallthru
      _
    // Predicated region
    $region66: #{policy_net_forward.1} parent=1 // pred_check
      _
    $region67: #{policy_net_forward.1} parent=1 // pred_check_branch
      %3269 = sbr.rel (0) target = $region69
    $region68: #{policy_net_forward.1} parent=1 // pred_region
      _
    $region69: #{policy_net_forward.1} parent=1 // pred_fallthru
      _
    // Predicated region
    $region70: #{policy_net_forward.1} parent=1 // pred_check
      _
    $region71: #{policy_net_forward.1} parent=1 // pred_check_branch
      %3271 = sbr.rel (0) target = $region73
    $region72: #{policy_net_forward.1} parent=1 // pred_region
      _
    $region73: #{policy_net_forward.1} parent=1 // pred_fallthru
      _
    // Predicated region
    $region74: #{policy_net_forward.1} parent=1 // pred_check
      _
    $region75: #{policy_net_forward.1} parent=1 // pred_check_branch
      %3273 = sbr.rel (0) target = $region77
    $region76: #{policy_net_forward.1} parent=1 // pred_region
      _
    $region77: #{policy_net_forward.1} parent=1 // pred_fallthru
      _
    %3274 = vsyncpa [#allocation4], 1
    %3275 = vsyncpa [#allocation6], 1

</llo_original>
